<compile_context>
chip_gen: v7x
topology: tpu7x:2x2x1
jax: 0.10.0
libtpu: 0.0.40
codegen_flags: <defaults>
</compile_context>

<pallas_src>
import functools

import jax
import jax.numpy as jnp
from jax.experimental import pallas as pl
from jax.experimental.pallas import tpu as pltpu


def _layernorm(x, gamma, beta, eps=1e-5):
    mu = jnp.mean(x, axis=-1, keepdims=True)
    var = jnp.mean((x - mu) ** 2, axis=-1, keepdims=True)
    return (x - mu) * jax.lax.rsqrt(var + eps) * gamma + beta


def pretransformer_kernel(
    x_ref,                         # (R, IN)   bf16   R = BC*S fused rows
    w_head_ref, b_head_ref,        # (IN, H) bf16, (1, H) f32
    w_qkv_ref, b_qkv_ref,          # (H, 3H) bf16, (1, 3H) f32   columns = q|k|v, head-contig
    w_ao_ref, b_ao_ref,            # (H, H) bf16,  (1, H) f32
    ln1_g_ref, ln1_b_ref,          # (1, H) f32
    w_ff1_ref, b_ff1_ref,          # (H, 2H) bf16, (1, 2H) f32
    w_ff2_ref, b_ff2_ref,          # (2H, H) bf16, (1, H) f32
    ln2_g_ref, ln2_b_ref,          # (1, H) f32
    w_fc_ref, b_fc_ref,            # (H, OUT_PAD) bf16, (1, OUT_PAD) f32
    o_ref,                         # (R, OUT_PAD)  bf16  (lane-dense store)
    ctx_ref,                       # (R, H) f32 VMEM scratch: per-head context slab
    *, BC, S, H, NH,
):
    HD = H // NH
    scale = 1.0 / (HD ** 0.5)
    bf16, f32 = jnp.bfloat16, jnp.float32

    # hoist parameter loads (one load each per grid step)
    b_head = b_head_ref[...]
    b_qkv = b_qkv_ref[...]
    b_ao = b_ao_ref[...]
    ln1_g, ln1_b = ln1_g_ref[...], ln1_b_ref[...]
    b_ff1 = b_ff1_ref[...]
    b_ff2 = b_ff2_ref[...]
    ln2_g, ln2_b = ln2_g_ref[...], ln2_b_ref[...]
    b_fc = b_fc_ref[...]

    # ---- head_conv: Linear(input_size -> hidden_size), all BC*S rows fused ----
    x = x_ref[...]                                                           # bf16 (R, IN)
    h0 = jnp.dot(x, w_head_ref[...], preferred_element_type=f32) + b_head    # (R, H) f32

    # ---- TransformerEncoderLayer (post-norm, ReLU) ----
    # TODO(synk): dropout (p=0.1) omitted — forward matches eval()/inference mode.

    # fused qkv projection, unpadded width 3H
    qkv = jnp.dot(h0.astype(bf16), w_qkv_ref[...], preferred_element_type=f32) + b_qkv

    # per-(batch, head) scaled dot-product attention; each head context goes straight into
    # the VMEM slab so live register state stays bounded to one head.
    # TODO(synk): for S >~ 1-2K, tile KV (flash-style online softmax) to bound VMEM (v7x).
    for b in range(BC):
        r0 = b * S
        for h in range(NH):
            c = h * HD
            q = qkv[r0:r0 + S, 0 * H + c:0 * H + c + HD].astype(bf16)        # (S, HD)
            k = qkv[r0:r0 + S, 1 * H + c:1 * H + c + HD].astype(bf16)
            v = qkv[r0:r0 + S, 2 * H + c:2 * H + c + HD].astype(bf16)
            s_ = jax.lax.dot_general(                                        # q @ k.T
                q, k, (((1,), (1,)), ((), ())), preferred_element_type=f32) * scale
            s_ = s_ - jnp.max(s_, axis=-1, keepdims=True)
            p = jnp.exp(s_)
            p = p / jnp.sum(p, axis=-1, keepdims=True)    # exact division (tolerance-safe)
            ctx_ref[r0:r0 + S, c:c + HD] = jnp.dot(
                p.astype(bf16), v, preferred_element_type=f32)               # (S, HD)

    # single attention out-projection over all fused rows
    attn = jnp.dot(ctx_ref[...].astype(bf16), w_ao_ref[...],
                   preferred_element_type=f32) + b_ao

    # residual + layernorm 1 (f32)
    y = _layernorm(h0 + attn, ln1_g, ln1_b)

    # feed-forward: Linear -> ReLU -> Linear
    f = jnp.dot(y.astype(bf16), w_ff1_ref[...], preferred_element_type=f32) + b_ff1
    f = jnp.maximum(f, 0.0)
    f = jnp.dot(f.astype(bf16), w_ff2_ref[...], preferred_element_type=f32) + b_ff2

    # residual + layernorm 2 (f32)
    z = _layernorm(y + f, ln2_g, ln2_b)

    # ---- forwardCalculation: Linear(hidden -> output), lane-dense bf16 store ----
    out = jnp.dot(z.astype(bf16), w_fc_ref[...], preferred_element_type=f32) + b_fc
    o_ref[...] = out.astype(o_ref.dtype)


def _round_up(n, m):
    return ((n + m - 1) // m) * m


def _num_chunks(B, S, target_rows=256):
    """Grid length G (divides B). Each step fuses (B//G)*S rows into the matmul M dim.
    Prefer >= target_rows rows/step (MXU row utilization, amortized step overhead) with a
    row count that's a multiple of 16 (bf16 sublane tile); the largest such G keeps a finer
    parallel axis for megacore sharding on v7x.  Falls back to a single step when B*S is
    small (e.g. the demo shapes)."""
    for g in range(B, 0, -1):
        if B % g:
            continue
        rows = (B // g) * S
        if rows >= target_rows and rows % 16 == 0:
            return g
    return 1


def _pick_vmem_limit(need_bytes):
    """Size the scoped-VMEM limit from what the kernel actually holds instead of a
    hard-coded constant (v7x has only 64 MiB physical VMEM; v5e/v6e have 128 MiB)."""
    try:
        phys = int(pltpu.get_tpu_info().vmem_capacity_bytes)
    except Exception:
        phys = 64 * 1024 * 1024  # conservative (v7x)
    need = int(need_bytes) + (8 << 20)   # headroom for intermediates / compiler scratch
    return int(min(max(need, 32 << 20), (phys * 3) // 4))


def pretransformer_forward(x_sbi, params, *, num_heads=4):
    """x_sbi: (S, B, input_size) like the PyTorch module. Returns (S, B, output_size) f32."""
    S, B, IN = x_sbi.shape
    H = params["w_head"].shape[1]
    OUT = params["w_fc"].shape[1]
    NH = num_heads
    assert H % NH == 0
    OUT_PAD = _round_up(OUT, 128)            # lane-dense output store
    f32, bf16 = jnp.float32, jnp.bfloat16

    G = _num_chunks(B, S)                    # grid steps (parallel axis)
    BC = B // G                              # batches per step
    R = BC * S                               # fused rows per step (matmul M dim)

    # (S,B,IN) -> batch-major rows (B*S, IN): each batch's sequence is a contiguous row
    # block; activations in bf16 (halves the only per-step DMA traffic).
    x_rows = jnp.transpose(x_sbi, (1, 0, 2)).reshape(B * S, IN).astype(bf16)

    # lane-dense final projection (pad OUT -> OUT_PAD with zeros)
    w_fc_pad = jnp.zeros((H, OUT_PAD), f32).at[:, :OUT].set(params["w_fc"]).astype(bf16)
    b_fc_pad = jnp.zeros((1, OUT_PAD), f32).at[:, :OUT].set(params["b_fc"])

    # NOTE: w_qkv assumes an x @ W layout with columns ordered q|k|v, head-contiguous
    # (porting real nn.MultiheadAttention in_proj_weight (3H, H) needs a transpose).
    args = (
        x_rows,
        params["w_head"].astype(bf16), params["b_head"],
        params["w_qkv"].astype(bf16), params["b_qkv"],
        params["w_ao"].astype(bf16), params["b_ao"],
        params["ln1_g"], params["ln1_b"],
        params["w_ff1"].astype(bf16), params["b_ff1"],
        params["w_ff2"].astype(bf16), params["b_ff2"],
        params["ln2_g"], params["ln2_b"],
        w_fc_pad, b_fc_pad,
    )

    kernel = functools.partial(pretransformer_kernel, BC=BC, S=S, H=H, NH=NH)

    weight_bytes = sum(int(a.size) * a.dtype.itemsize for a in args[1:])
    block_bytes = R * IN * 2 + R * OUT_PAD * 2           # bf16 x / out blocks
    vmem_limit = _pick_vmem_limit(2 * weight_bytes + 4 * block_bytes)

    def run(single_buffer_weights):
        def w_spec(a):
            # constant-index (VMEM-resident) weights; single-buffer to halve resident VMEM
            if single_buffer_weights:
                return pl.BlockSpec(a.shape, lambda g: (0, 0),
                                    pipeline_mode=pl.Buffered(1))
            return pl.BlockSpec(a.shape, lambda g: (0, 0))

        in_specs = [pl.BlockSpec((R, IN), lambda g: (g, 0))]
        in_specs += [w_spec(a) for a in args[1:]]
        out_specs = pl.BlockSpec((R, OUT_PAD), lambda g: (g, 0))

        return pl.pallas_call(
            kernel,
            grid=(G,),
            out_shape=jax.ShapeDtypeStruct((B * S, OUT_PAD), bf16),
            in_specs=in_specs,
            out_specs=out_specs,
            scratch_shapes=[pltpu.VMEM((R, H), f32)],    # per-head context slab
            compiler_params=pltpu.CompilerParams(
                dimension_semantics=("parallel",),       # megacore-shard row chunks (v7x)
                vmem_limit_bytes=vmem_limit,
            ),
        )(*args)

    try:
        out = run(single_buffer_weights=True)
        out = jax.block_until_ready(out)
    except Exception:
        # pipeline_mode=pl.Buffered(1) unsupported on this jax build; default buffering.
        out = run(single_buffer_weights=False)

    # strip output padding, upcast, back to PyTorch layout (S, B, OUT)
    out = out.reshape(B, S, OUT_PAD)[:, :, :OUT].astype(f32)
    return jnp.transpose(out, (1, 0, 2))


def pretransformer_reference(x_sbi, params, *, num_heads=4):
    """Pure-JAX f32 reference of the PyTorch forward (eval mode)."""
    S, B, IN = x_sbi.shape
    H = params["w_head"].shape[1]
    NH = num_heads
    HD = H // NH
    h0 = (x_sbi.reshape(S * B, IN) @ params["w_head"] + params["b_head"]).reshape(S, B, H)
    qkv = h0 @ params["w_qkv"] + params["b_qkv"]
    q, k, v = qkv[..., :H], qkv[..., H:2 * H], qkv[..., 2 * H:]

    def split(t):  # (S,B,H) -> (B,NH,S,HD)
        return jnp.transpose(t.reshape(S, B, NH, HD), (1, 2, 0, 3))

    qh, kh, vh = split(q), split(k), split(v)
    s_ = jnp.einsum("bnsd,bntd->bnst", qh, kh) / (HD ** 0.5)
    p = jax.nn.softmax(s_, axis=-1)
    ctx = jnp.einsum("bnst,bntd->bnsd", p, vh)
    ctx = jnp.transpose(ctx, (2, 0, 1, 3)).reshape(S, B, H)
    attn = ctx @ params["w_ao"] + params["b_ao"]

    def ln(t, g, b):
        mu = t.mean(-1, keepdims=True)
        var = ((t - mu) ** 2).mean(-1, keepdims=True)
        return (t - mu) * jax.lax.rsqrt(var + 1e-5) * g + b

    y = ln(h0 + attn, params["ln1_g"], params["ln1_b"])
    f = jnp.maximum(y @ params["w_ff1"] + params["b_ff1"], 0.0)
    f = f @ params["w_ff2"] + params["b_ff2"]
    z = ln(y + f, params["ln2_g"], params["ln2_b"])
    return z @ params["w_fc"] + params["b_fc"]


def init_params(key, in_size, hidden, out_size):
    """Deterministic synthetic parameters matching PreTransformer's shapes (f32 master)."""
    keys = jax.random.split(key, 12)

    def u(k, shape, fan_in):
        bound = 1.0 / (fan_in ** 0.5)
        return jax.random.uniform(k, shape, jnp.float32, -bound, bound)

    H = hidden
    return {
        "w_head": u(keys[0], (in_size, H), in_size),
        "b_head": u(keys[1], (1, H), in_size),
        "w_qkv": u(keys[2], (H, 3 * H), H),
        "b_qkv": u(keys[3], (1, 3 * H), H),
        "w_ao": u(keys[4], (H, H), H),
        "b_ao": u(keys[5], (1, H), H),
        "ln1_g": jnp.ones((1, H), jnp.float32),
        "ln1_b": jnp.zeros((1, H), jnp.float32),
        "w_ff1": u(keys[6], (H, 2 * H), H),
        "b_ff1": u(keys[7], (1, 2 * H), H),
        "w_ff2": u(keys[8], (2 * H, H), 2 * H),
        "b_ff2": u(keys[9], (1, H), 2 * H),
        "ln2_g": jnp.ones((1, H), jnp.float32),
        "ln2_b": jnp.zeros((1, H), jnp.float32),
        "w_fc": u(keys[10], (H, out_size), H),
        "b_fc": u(keys[11], (1, out_size), H),
    }


if __name__ == "__main__":
    # hidden_size must be divisible by nhead=4 for the TransformerEncoderLayer
    S, B, IN, H, OUT = 8, 2, 16, 32, 8
    key = jax.random.PRNGKey(0)
    k_x, k_p = jax.random.split(key)

    x = jax.random.normal(k_x, (S, B, IN), jnp.float32)
    params = init_params(k_p, IN, H, OUT)

    y = pretransformer_forward(x, params, num_heads=4)
    y = jax.block_until_ready(y)
    assert y.shape == (S, B, OUT), y.shape
    assert bool(jnp.all(jnp.isfinite(y)))

    # loose tolerance vs. f32 reference (kernel uses bf16 matmul operands / bf16 store)
    y_ref = pretransformer_reference(x, params, num_heads=4)
    err = float(jnp.max(jnp.abs(y - y_ref)))
    assert err < 0.1, f"max abs err {err}"

    print("KERNEL_OK")
</pallas_src>

<mosaic_0001>
module attributes {stable_mosaic.version = 11 : i64} {
  func.func @pretransformer_kernel(%arg0: i32, %arg1: memref<16x16xbf16, #tpu.memory_space<vmem>>, %arg2: memref<16x32xbf16, #tpu.memory_space<vmem>>, %arg3: memref<1x32xf32, #tpu.memory_space<vmem>>, %arg4: memref<32x96xbf16, #tpu.memory_space<vmem>>, %arg5: memref<1x96xf32, #tpu.memory_space<vmem>>, %arg6: memref<32x32xbf16, #tpu.memory_space<vmem>>, %arg7: memref<1x32xf32, #tpu.memory_space<vmem>>, %arg8: memref<1x32xf32, #tpu.memory_space<vmem>>, %arg9: memref<1x32xf32, #tpu.memory_space<vmem>>, %arg10: memref<32x64xbf16, #tpu.memory_space<vmem>>, %arg11: memref<1x64xf32, #tpu.memory_space<vmem>>, %arg12: memref<64x32xbf16, #tpu.memory_space<vmem>>, %arg13: memref<1x32xf32, #tpu.memory_space<vmem>>, %arg14: memref<1x32xf32, #tpu.memory_space<vmem>>, %arg15: memref<1x32xf32, #tpu.memory_space<vmem>>, %arg16: memref<32x128xbf16, #tpu.memory_space<vmem>>, %arg17: memref<1x128xf32, #tpu.memory_space<vmem>>, %arg18: memref<16x128xbf16, #tpu.memory_space<vmem>>, %arg19: memref<16x32xf32, #tpu.memory_space<vmem>>) attributes {dimension_semantics = [#tpu.dimension_semantics<parallel>], iteration_bounds = array<i64: 1>, scalar_prefetch = 0 : i64, scratch_operands = 1 : i64, tpu.core_type = #tpu.core_type<tc>, window_params = [{transform_indices = @transform_0, window_bounds = array<i64: 16, 16>}, {pipeline_mode = #tpu.pipeline_mode<synchronous>, transform_indices = @transform_1, window_bounds = array<i64: 16, 32>}, {pipeline_mode = #tpu.pipeline_mode<synchronous>, transform_indices = @transform_2, window_bounds = array<i64: 1, 32>}, {pipeline_mode = #tpu.pipeline_mode<synchronous>, transform_indices = @transform_3, window_bounds = array<i64: 32, 96>}, {pipeline_mode = #tpu.pipeline_mode<synchronous>, transform_indices = @transform_4, window_bounds = array<i64: 1, 96>}, {pipeline_mode = #tpu.pipeline_mode<synchronous>, transform_indices = @transform_5, window_bounds = array<i64: 32, 32>}, {pipeline_mode = #tpu.pipeline_mode<synchronous>, transform_indices = @transform_6, window_bounds = array<i64: 1, 32>}, {pipeline_mode = #tpu.pipeline_mode<synchronous>, transform_indices = @transform_7, window_bounds = array<i64: 1, 32>}, {pipeline_mode = #tpu.pipeline_mode<synchronous>, transform_indices = @transform_8, window_bounds = array<i64: 1, 32>}, {pipeline_mode = #tpu.pipeline_mode<synchronous>, transform_indices = @transform_9, window_bounds = array<i64: 32, 64>}, {pipeline_mode = #tpu.pipeline_mode<synchronous>, transform_indices = @transform_10, window_bounds = array<i64: 1, 64>}, {pipeline_mode = #tpu.pipeline_mode<synchronous>, transform_indices = @transform_11, window_bounds = array<i64: 64, 32>}, {pipeline_mode = #tpu.pipeline_mode<synchronous>, transform_indices = @transform_12, window_bounds = array<i64: 1, 32>}, {pipeline_mode = #tpu.pipeline_mode<synchronous>, transform_indices = @transform_13, window_bounds = array<i64: 1, 32>}, {pipeline_mode = #tpu.pipeline_mode<synchronous>, transform_indices = @transform_14, window_bounds = array<i64: 1, 32>}, {pipeline_mode = #tpu.pipeline_mode<synchronous>, transform_indices = @transform_15, window_bounds = array<i64: 32, 128>}, {pipeline_mode = #tpu.pipeline_mode<synchronous>, transform_indices = @transform_16, window_bounds = array<i64: 1, 128>}, {transform_indices = @transform_17, window_bounds = array<i64: 16, 128>}]} {
    %c0 = arith.constant 0 : index
    %c0_0 = arith.constant 0 : index
    %0 = vector.load %arg3[%c0, %c0_0] : memref<1x32xf32, #tpu.memory_space<vmem>>, vector<1x32xf32>
    %c0_1 = arith.constant 0 : index
    %c0_2 = arith.constant 0 : index
    %1 = vector.load %arg5[%c0_1, %c0_2] : memref<1x96xf32, #tpu.memory_space<vmem>>, vector<1x96xf32>
    %c0_3 = arith.constant 0 : index
    %c0_4 = arith.constant 0 : index
    %2 = vector.load %arg7[%c0_3, %c0_4] : memref<1x32xf32, #tpu.memory_space<vmem>>, vector<1x32xf32>
    %c0_5 = arith.constant 0 : index
    %c0_6 = arith.constant 0 : index
    %3 = vector.load %arg8[%c0_5, %c0_6] : memref<1x32xf32, #tpu.memory_space<vmem>>, vector<1x32xf32>
    %c0_7 = arith.constant 0 : index
    %c0_8 = arith.constant 0 : index
    %4 = vector.load %arg9[%c0_7, %c0_8] : memref<1x32xf32, #tpu.memory_space<vmem>>, vector<1x32xf32>
    %c0_9 = arith.constant 0 : index
    %c0_10 = arith.constant 0 : index
    %5 = vector.load %arg11[%c0_9, %c0_10] : memref<1x64xf32, #tpu.memory_space<vmem>>, vector<1x64xf32>
    %c0_11 = arith.constant 0 : index
    %c0_12 = arith.constant 0 : index
    %6 = vector.load %arg13[%c0_11, %c0_12] : memref<1x32xf32, #tpu.memory_space<vmem>>, vector<1x32xf32>
    %c0_13 = arith.constant 0 : index
    %c0_14 = arith.constant 0 : index
    %7 = vector.load %arg14[%c0_13, %c0_14] : memref<1x32xf32, #tpu.memory_space<vmem>>, vector<1x32xf32>
    %c0_15 = arith.constant 0 : index
    %c0_16 = arith.constant 0 : index
    %8 = vector.load %arg15[%c0_15, %c0_16] : memref<1x32xf32, #tpu.memory_space<vmem>>, vector<1x32xf32>
    %c0_17 = arith.constant 0 : index
    %c0_18 = arith.constant 0 : index
    %9 = vector.load %arg17[%c0_17, %c0_18] : memref<1x128xf32, #tpu.memory_space<vmem>>, vector<1x128xf32>
    %c0_19 = arith.constant 0 : index
    %c0_20 = arith.constant 0 : index
    %10 = vector.load %arg1[%c0_19, %c0_20] : memref<16x16xbf16, #tpu.memory_space<vmem>>, vector<16x16xbf16>
    %c0_21 = arith.constant 0 : index
    %c0_22 = arith.constant 0 : index
    %11 = vector.load %arg2[%c0_21, %c0_22] : memref<16x32xbf16, #tpu.memory_space<vmem>>, vector<16x32xbf16>
    %cst = arith.constant dense<0.000000e+00> : vector<16x32xf32>
    %12 = tpu.matmul %10, %11, %cst {dimension_numbers = #tpu.dot_dimension_numbers<[1], [0], [0], [1], [0, 0, 1, 1], [], []>} : vector<16x16xbf16>, vector<16x32xbf16>, vector<16x32xf32> -> vector<16x32xf32>
    %13 = vector.broadcast %0 : vector<1x32xf32> to vector<16x32xf32>
    %14 = arith.addf %12, %13 : vector<16x32xf32>
    %15 = arith.truncf %14 : vector<16x32xf32> to vector<16x32xbf16>
    %c0_23 = arith.constant 0 : index
    %c0_24 = arith.constant 0 : index
    %16 = vector.load %arg4[%c0_23, %c0_24] : memref<32x96xbf16, #tpu.memory_space<vmem>>, vector<32x96xbf16>
    %cst_25 = arith.constant dense<0.000000e+00> : vector<16x96xf32>
    %17 = tpu.matmul %15, %16, %cst_25 {dimension_numbers = #tpu.dot_dimension_numbers<[1], [0], [0], [1], [0, 0, 1, 1], [], []>} : vector<16x32xbf16>, vector<32x96xbf16>, vector<16x96xf32> -> vector<16x96xf32>
    %18 = vector.broadcast %1 : vector<1x96xf32> to vector<16x96xf32>
    %19 = arith.addf %17, %18 : vector<16x96xf32>
    %20 = vector.extract_strided_slice %19 {offsets = [0, 0], sizes = [8, 8], strides = [1, 1]} : vector<16x96xf32> to vector<8x8xf32>
    %21 = arith.truncf %20 : vector<8x8xf32> to vector<8x8xbf16>
    %22 = vector.extract_strided_slice %19 {offsets = [0, 32], sizes = [8, 8], strides = [1, 1]} : vector<16x96xf32> to vector<8x8xf32>
    %23 = arith.truncf %22 : vector<8x8xf32> to vector<8x8xbf16>
    %24 = vector.extract_strided_slice %19 {offsets = [0, 64], sizes = [8, 8], strides = [1, 1]} : vector<16x96xf32> to vector<8x8xf32>
    %25 = arith.truncf %24 : vector<8x8xf32> to vector<8x8xbf16>
    %cst_26 = arith.constant dense<0.000000e+00> : vector<8x8xf32>
    %26 = tpu.matmul %21, %23, %cst_26 {dimension_numbers = #tpu.dot_dimension_numbers<[1], [1], [0], [0], [0, 0, 1, 0], [], []>} : vector<8x8xbf16>, vector<8x8xbf16>, vector<8x8xf32> -> vector<8x8xf32>
    %cst_27 = arith.constant 0.353553385 : f32
    %27 = vector.broadcast %cst_27 : f32 to vector<8x8xf32>
    %28 = arith.mulf %26, %27 : vector<8x8xf32>
    %cst_28 = arith.constant dense<0xFF800000> : vector<8xf32>
    %29 = vector.multi_reduction <maximumf>, %28, %cst_28 [1] : vector<8x8xf32> to vector<8xf32>
    %30 = vector.shape_cast %29 : vector<8xf32> to vector<8x1xf32>
    %31 = vector.broadcast %30 : vector<8x1xf32> to vector<8x8xf32>
    %32 = arith.subf %28, %31 : vector<8x8xf32>
    %33 = math.exp %32 : vector<8x8xf32>
    %cst_29 = arith.constant dense<0.000000e+00> : vector<8xf32>
    %34 = vector.multi_reduction <add>, %33, %cst_29 [1] : vector<8x8xf32> to vector<8xf32>
    %35 = vector.shape_cast %34 : vector<8xf32> to vector<8x1xf32>
    %36 = vector.broadcast %35 : vector<8x1xf32> to vector<8x8xf32>
    %37 = arith.divf %33, %36 : vector<8x8xf32>
    %38 = arith.truncf %37 : vector<8x8xf32> to vector<8x8xbf16>
    %cst_30 = arith.constant dense<0.000000e+00> : vector<8x8xf32>
    %39 = tpu.matmul %38, %25, %cst_30 {dimension_numbers = #tpu.dot_dimension_numbers<[1], [0], [0], [1], [0, 0, 1, 1], [], []>} : vector<8x8xbf16>, vector<8x8xbf16>, vector<8x8xf32> -> vector<8x8xf32>
    %c0_31 = arith.constant 0 : index
    %c0_32 = arith.constant 0 : index
    %40 = vector.load %arg19[%c0_31, %c0_32] : memref<16x32xf32, #tpu.memory_space<vmem>>, vector<8x8xf32>
    tpu.vector_store %arg19[%c0_31, %c0_32], %39 {strides = array<i32>} : memref<16x32xf32, #tpu.memory_space<vmem>>, vector<8x8xf32>,
    %41 = vector.extract_strided_slice %19 {offsets = [0, 8], sizes = [8, 8], strides = [1, 1]} : vector<16x96xf32> to vector<8x8xf32>
    %42 = arith.truncf %41 : vector<8x8xf32> to vector<8x8xbf16>
    %43 = vector.extract_strided_slice %19 {offsets = [0, 40], sizes = [8, 8], strides = [1, 1]} : vector<16x96xf32> to vector<8x8xf32>
    %44 = arith.truncf %43 : vector<8x8xf32> to vector<8x8xbf16>
    %45 = vector.extract_strided_slice %19 {offsets = [0, 72], sizes = [8, 8], strides = [1, 1]} : vector<16x96xf32> to vector<8x8xf32>
    %46 = arith.truncf %45 : vector<8x8xf32> to vector<8x8xbf16>
    %cst_33 = arith.constant dense<0.000000e+00> : vector<8x8xf32>
    %47 = tpu.matmul %42, %44, %cst_33 {dimension_numbers = #tpu.dot_dimension_numbers<[1], [1], [0], [0], [0, 0, 1, 0], [], []>} : vector<8x8xbf16>, vector<8x8xbf16>, vector<8x8xf32> -> vector<8x8xf32>
    %cst_34 = arith.constant 0.353553385 : f32
    %48 = vector.broadcast %cst_34 : f32 to vector<8x8xf32>
    %49 = arith.mulf %47, %48 : vector<8x8xf32>
    %cst_35 = arith.constant dense<0xFF800000> : vector<8xf32>
    %50 = vector.multi_reduction <maximumf>, %49, %cst_35 [1] : vector<8x8xf32> to vector<8xf32>
    %51 = vector.shape_cast %50 : vector<8xf32> to vector<8x1xf32>
    %52 = vector.broadcast %51 : vector<8x1xf32> to vector<8x8xf32>
    %53 = arith.subf %49, %52 : vector<8x8xf32>
    %54 = math.exp %53 : vector<8x8xf32>
    %cst_36 = arith.constant dense<0.000000e+00> : vector<8xf32>
    %55 = vector.multi_reduction <add>, %54, %cst_36 [1] : vector<8x8xf32> to vector<8xf32>
    %56 = vector.shape_cast %55 : vector<8xf32> to vector<8x1xf32>
    %57 = vector.broadcast %56 : vector<8x1xf32> to vector<8x8xf32>
    %58 = arith.divf %54, %57 : vector<8x8xf32>
    %59 = arith.truncf %58 : vector<8x8xf32> to vector<8x8xbf16>
    %cst_37 = arith.constant dense<0.000000e+00> : vector<8x8xf32>
    %60 = tpu.matmul %59, %46, %cst_37 {dimension_numbers = #tpu.dot_dimension_numbers<[1], [0], [0], [1], [0, 0, 1, 1], [], []>} : vector<8x8xbf16>, vector<8x8xbf16>, vector<8x8xf32> -> vector<8x8xf32>
    %c0_38 = arith.constant 0 : index
    %c8 = arith.constant 8 : index
    %61 = vector.load %arg19[%c0_38, %c8] : memref<16x32xf32, #tpu.memory_space<vmem>>, vector<8x8xf32>
    tpu.vector_store %arg19[%c0_38, %c8], %60 {strides = array<i32>} : memref<16x32xf32, #tpu.memory_space<vmem>>, vector<8x8xf32>,
    %62 = vector.extract_strided_slice %19 {offsets = [0, 16], sizes = [8, 8], strides = [1, 1]} : vector<16x96xf32> to vector<8x8xf32>
    %63 = arith.truncf %62 : vector<8x8xf32> to vector<8x8xbf16>
    %64 = vector.extract_strided_slice %19 {offsets = [0, 48], sizes = [8, 8], strides = [1, 1]} : vector<16x96xf32> to vector<8x8xf32>
    %65 = arith.truncf %64 : vector<8x8xf32> to vector<8x8xbf16>
    %66 = vector.extract_strided_slice %19 {offsets = [0, 80], sizes = [8, 8], strides = [1, 1]} : vector<16x96xf32> to vector<8x8xf32>
    %67 = arith.truncf %66 : vector<8x8xf32> to vector<8x8xbf16>
    %cst_39 = arith.constant dense<0.000000e+00> : vector<8x8xf32>
    %68 = tpu.matmul %63, %65, %cst_39 {dimension_numbers = #tpu.dot_dimension_numbers<[1], [1], [0], [0], [0, 0, 1, 0], [], []>} : vector<8x8xbf16>, vector<8x8xbf16>, vector<8x8xf32> -> vector<8x8xf32>
    %cst_40 = arith.constant 0.353553385 : f32
    %69 = vector.broadcast %cst_40 : f32 to vector<8x8xf32>
    %70 = arith.mulf %68, %69 : vector<8x8xf32>
    %cst_41 = arith.constant dense<0xFF800000> : vector<8xf32>
    %71 = vector.multi_reduction <maximumf>, %70, %cst_41 [1] : vector<8x8xf32> to vector<8xf32>
    %72 = vector.shape_cast %71 : vector<8xf32> to vector<8x1xf32>
    %73 = vector.broadcast %72 : vector<8x1xf32> to vector<8x8xf32>
    %74 = arith.subf %70, %73 : vector<8x8xf32>
    %75 = math.exp %74 : vector<8x8xf32>
    %cst_42 = arith.constant dense<0.000000e+00> : vector<8xf32>
    %76 = vector.multi_reduction <add>, %75, %cst_42 [1] : vector<8x8xf32> to vector<8xf32>
    %77 = vector.shape_cast %76 : vector<8xf32> to vector<8x1xf32>
    %78 = vector.broadcast %77 : vector<8x1xf32> to vector<8x8xf32>
    %79 = arith.divf %75, %78 : vector<8x8xf32>
    %80 = arith.truncf %79 : vector<8x8xf32> to vector<8x8xbf16>
    %cst_43 = arith.constant dense<0.000000e+00> : vector<8x8xf32>
    %81 = tpu.matmul %80, %67, %cst_43 {dimension_numbers = #tpu.dot_dimension_numbers<[1], [0], [0], [1], [0, 0, 1, 1], [], []>} : vector<8x8xbf16>, vector<8x8xbf16>, vector<8x8xf32> -> vector<8x8xf32>
    %c0_44 = arith.constant 0 : index
    %c16 = arith.constant 16 : index
    %82 = vector.load %arg19[%c0_44, %c16] : memref<16x32xf32, #tpu.memory_space<vmem>>, vector<8x8xf32>
    tpu.vector_store %arg19[%c0_44, %c16], %81 {strides = array<i32>} : memref<16x32xf32, #tpu.memory_space<vmem>>, vector<8x8xf32>,
    %83 = vector.extract_strided_slice %19 {offsets = [0, 24], sizes = [8, 8], strides = [1, 1]} : vector<16x96xf32> to vector<8x8xf32>
    %84 = arith.truncf %83 : vector<8x8xf32> to vector<8x8xbf16>
    %85 = vector.extract_strided_slice %19 {offsets = [0, 56], sizes = [8, 8], strides = [1, 1]} : vector<16x96xf32> to vector<8x8xf32>
    %86 = arith.truncf %85 : vector<8x8xf32> to vector<8x8xbf16>
    %87 = vector.extract_strided_slice %19 {offsets = [0, 88], sizes = [8, 8], strides = [1, 1]} : vector<16x96xf32> to vector<8x8xf32>
    %88 = arith.truncf %87 : vector<8x8xf32> to vector<8x8xbf16>
    %cst_45 = arith.constant dense<0.000000e+00> : vector<8x8xf32>
    %89 = tpu.matmul %84, %86, %cst_45 {dimension_numbers = #tpu.dot_dimension_numbers<[1], [1], [0], [0], [0, 0, 1, 0], [], []>} : vector<8x8xbf16>, vector<8x8xbf16>, vector<8x8xf32> -> vector<8x8xf32>
    %cst_46 = arith.constant 0.353553385 : f32
    %90 = vector.broadcast %cst_46 : f32 to vector<8x8xf32>
    %91 = arith.mulf %89, %90 : vector<8x8xf32>
    %cst_47 = arith.constant dense<0xFF800000> : vector<8xf32>
    %92 = vector.multi_reduction <maximumf>, %91, %cst_47 [1] : vector<8x8xf32> to vector<8xf32>
    %93 = vector.shape_cast %92 : vector<8xf32> to vector<8x1xf32>
    %94 = vector.broadcast %93 : vector<8x1xf32> to vector<8x8xf32>
    %95 = arith.subf %91, %94 : vector<8x8xf32>
    %96 = math.exp %95 : vector<8x8xf32>
    %cst_48 = arith.constant dense<0.000000e+00> : vector<8xf32>
    %97 = vector.multi_reduction <add>, %96, %cst_48 [1] : vector<8x8xf32> to vector<8xf32>
    %98 = vector.shape_cast %97 : vector<8xf32> to vector<8x1xf32>
    %99 = vector.broadcast %98 : vector<8x1xf32> to vector<8x8xf32>
    %100 = arith.divf %96, %99 : vector<8x8xf32>
    %101 = arith.truncf %100 : vector<8x8xf32> to vector<8x8xbf16>
    %cst_49 = arith.constant dense<0.000000e+00> : vector<8x8xf32>
    %102 = tpu.matmul %101, %88, %cst_49 {dimension_numbers = #tpu.dot_dimension_numbers<[1], [0], [0], [1], [0, 0, 1, 1], [], []>} : vector<8x8xbf16>, vector<8x8xbf16>, vector<8x8xf32> -> vector<8x8xf32>
    %c0_50 = arith.constant 0 : index
    %c24 = arith.constant 24 : index
    %103 = vector.load %arg19[%c0_50, %c24] : memref<16x32xf32, #tpu.memory_space<vmem>>, vector<8x8xf32>
    tpu.vector_store %arg19[%c0_50, %c24], %102 {strides = array<i32>} : memref<16x32xf32, #tpu.memory_space<vmem>>, vector<8x8xf32>,
    %104 = vector.extract_strided_slice %19 {offsets = [8, 0], sizes = [8, 8], strides = [1, 1]} : vector<16x96xf32> to vector<8x8xf32>
    %105 = arith.truncf %104 : vector<8x8xf32> to vector<8x8xbf16>
    %106 = vector.extract_strided_slice %19 {offsets = [8, 32], sizes = [8, 8], strides = [1, 1]} : vector<16x96xf32> to vector<8x8xf32>
    %107 = arith.truncf %106 : vector<8x8xf32> to vector<8x8xbf16>
    %108 = vector.extract_strided_slice %19 {offsets = [8, 64], sizes = [8, 8], strides = [1, 1]} : vector<16x96xf32> to vector<8x8xf32>
    %109 = arith.truncf %108 : vector<8x8xf32> to vector<8x8xbf16>
    %cst_51 = arith.constant dense<0.000000e+00> : vector<8x8xf32>
    %110 = tpu.matmul %105, %107, %cst_51 {dimension_numbers = #tpu.dot_dimension_numbers<[1], [1], [0], [0], [0, 0, 1, 0], [], []>} : vector<8x8xbf16>, vector<8x8xbf16>, vector<8x8xf32> -> vector<8x8xf32>
    %cst_52 = arith.constant 0.353553385 : f32
    %111 = vector.broadcast %cst_52 : f32 to vector<8x8xf32>
    %112 = arith.mulf %110, %111 : vector<8x8xf32>
    %cst_53 = arith.constant dense<0xFF800000> : vector<8xf32>
    %113 = vector.multi_reduction <maximumf>, %112, %cst_53 [1] : vector<8x8xf32> to vector<8xf32>
    %114 = vector.shape_cast %113 : vector<8xf32> to vector<8x1xf32>
    %115 = vector.broadcast %114 : vector<8x1xf32> to vector<8x8xf32>
    %116 = arith.subf %112, %115 : vector<8x8xf32>
    %117 = math.exp %116 : vector<8x8xf32>
    %cst_54 = arith.constant dense<0.000000e+00> : vector<8xf32>
    %118 = vector.multi_reduction <add>, %117, %cst_54 [1] : vector<8x8xf32> to vector<8xf32>
    %119 = vector.shape_cast %118 : vector<8xf32> to vector<8x1xf32>
    %120 = vector.broadcast %119 : vector<8x1xf32> to vector<8x8xf32>
    %121 = arith.divf %117, %120 : vector<8x8xf32>
    %122 = arith.truncf %121 : vector<8x8xf32> to vector<8x8xbf16>
    %cst_55 = arith.constant dense<0.000000e+00> : vector<8x8xf32>
    %123 = tpu.matmul %122, %109, %cst_55 {dimension_numbers = #tpu.dot_dimension_numbers<[1], [0], [0], [1], [0, 0, 1, 1], [], []>} : vector<8x8xbf16>, vector<8x8xbf16>, vector<8x8xf32> -> vector<8x8xf32>
    %c8_56 = arith.constant 8 : index
    %c0_57 = arith.constant 0 : index
    %124 = vector.load %arg19[%c8_56, %c0_57] : memref<16x32xf32, #tpu.memory_space<vmem>>, vector<8x8xf32>
    tpu.vector_store %arg19[%c8_56, %c0_57], %123 {strides = array<i32>} : memref<16x32xf32, #tpu.memory_space<vmem>>, vector<8x8xf32>,
    %125 = vector.extract_strided_slice %19 {offsets = [8, 8], sizes = [8, 8], strides = [1, 1]} : vector<16x96xf32> to vector<8x8xf32>
    %126 = arith.truncf %125 : vector<8x8xf32> to vector<8x8xbf16>
    %127 = vector.extract_strided_slice %19 {offsets = [8, 40], sizes = [8, 8], strides = [1, 1]} : vector<16x96xf32> to vector<8x8xf32>
    %128 = arith.truncf %127 : vector<8x8xf32> to vector<8x8xbf16>
    %129 = vector.extract_strided_slice %19 {offsets = [8, 72], sizes = [8, 8], strides = [1, 1]} : vector<16x96xf32> to vector<8x8xf32>
    %130 = arith.truncf %129 : vector<8x8xf32> to vector<8x8xbf16>
    %cst_58 = arith.constant dense<0.000000e+00> : vector<8x8xf32>
    %131 = tpu.matmul %126, %128, %cst_58 {dimension_numbers = #tpu.dot_dimension_numbers<[1], [1], [0], [0], [0, 0, 1, 0], [], []>} : vector<8x8xbf16>, vector<8x8xbf16>, vector<8x8xf32> -> vector<8x8xf32>
    %cst_59 = arith.constant 0.353553385 : f32
    %132 = vector.broadcast %cst_59 : f32 to vector<8x8xf32>
    %133 = arith.mulf %131, %132 : vector<8x8xf32>
    %cst_60 = arith.constant dense<0xFF800000> : vector<8xf32>
    %134 = vector.multi_reduction <maximumf>, %133, %cst_60 [1] : vector<8x8xf32> to vector<8xf32>
    %135 = vector.shape_cast %134 : vector<8xf32> to vector<8x1xf32>
    %136 = vector.broadcast %135 : vector<8x1xf32> to vector<8x8xf32>
    %137 = arith.subf %133, %136 : vector<8x8xf32>
    %138 = math.exp %137 : vector<8x8xf32>
    %cst_61 = arith.constant dense<0.000000e+00> : vector<8xf32>
    %139 = vector.multi_reduction <add>, %138, %cst_61 [1] : vector<8x8xf32> to vector<8xf32>
    %140 = vector.shape_cast %139 : vector<8xf32> to vector<8x1xf32>
    %141 = vector.broadcast %140 : vector<8x1xf32> to vector<8x8xf32>
    %142 = arith.divf %138, %141 : vector<8x8xf32>
    %143 = arith.truncf %142 : vector<8x8xf32> to vector<8x8xbf16>
    %cst_62 = arith.constant dense<0.000000e+00> : vector<8x8xf32>
    %144 = tpu.matmul %143, %130, %cst_62 {dimension_numbers = #tpu.dot_dimension_numbers<[1], [0], [0], [1], [0, 0, 1, 1], [], []>} : vector<8x8xbf16>, vector<8x8xbf16>, vector<8x8xf32> -> vector<8x8xf32>
    %c8_63 = arith.constant 8 : index
    %c8_64 = arith.constant 8 : index
    %145 = vector.load %arg19[%c8_63, %c8_64] : memref<16x32xf32, #tpu.memory_space<vmem>>, vector<8x8xf32>
    tpu.vector_store %arg19[%c8_63, %c8_64], %144 {strides = array<i32>} : memref<16x32xf32, #tpu.memory_space<vmem>>, vector<8x8xf32>,
    %146 = vector.extract_strided_slice %19 {offsets = [8, 16], sizes = [8, 8], strides = [1, 1]} : vector<16x96xf32> to vector<8x8xf32>
    %147 = arith.truncf %146 : vector<8x8xf32> to vector<8x8xbf16>
    %148 = vector.extract_strided_slice %19 {offsets = [8, 48], sizes = [8, 8], strides = [1, 1]} : vector<16x96xf32> to vector<8x8xf32>
    %149 = arith.truncf %148 : vector<8x8xf32> to vector<8x8xbf16>
    %150 = vector.extract_strided_slice %19 {offsets = [8, 80], sizes = [8, 8], strides = [1, 1]} : vector<16x96xf32> to vector<8x8xf32>
    %151 = arith.truncf %150 : vector<8x8xf32> to vector<8x8xbf16>
    %cst_65 = arith.constant dense<0.000000e+00> : vector<8x8xf32>
    %152 = tpu.matmul %147, %149, %cst_65 {dimension_numbers = #tpu.dot_dimension_numbers<[1], [1], [0], [0], [0, 0, 1, 0], [], []>} : vector<8x8xbf16>, vector<8x8xbf16>, vector<8x8xf32> -> vector<8x8xf32>
    %cst_66 = arith.constant 0.353553385 : f32
    %153 = vector.broadcast %cst_66 : f32 to vector<8x8xf32>
    %154 = arith.mulf %152, %153 : vector<8x8xf32>
    %cst_67 = arith.constant dense<0xFF800000> : vector<8xf32>
    %155 = vector.multi_reduction <maximumf>, %154, %cst_67 [1] : vector<8x8xf32> to vector<8xf32>
    %156 = vector.shape_cast %155 : vector<8xf32> to vector<8x1xf32>
    %157 = vector.broadcast %156 : vector<8x1xf32> to vector<8x8xf32>
    %158 = arith.subf %154, %157 : vector<8x8xf32>
    %159 = math.exp %158 : vector<8x8xf32>
    %cst_68 = arith.constant dense<0.000000e+00> : vector<8xf32>
    %160 = vector.multi_reduction <add>, %159, %cst_68 [1] : vector<8x8xf32> to vector<8xf32>
    %161 = vector.shape_cast %160 : vector<8xf32> to vector<8x1xf32>
    %162 = vector.broadcast %161 : vector<8x1xf32> to vector<8x8xf32>
    %163 = arith.divf %159, %162 : vector<8x8xf32>
    %164 = arith.truncf %163 : vector<8x8xf32> to vector<8x8xbf16>
    %cst_69 = arith.constant dense<0.000000e+00> : vector<8x8xf32>
    %165 = tpu.matmul %164, %151, %cst_69 {dimension_numbers = #tpu.dot_dimension_numbers<[1], [0], [0], [1], [0, 0, 1, 1], [], []>} : vector<8x8xbf16>, vector<8x8xbf16>, vector<8x8xf32> -> vector<8x8xf32>
    %c8_70 = arith.constant 8 : index
    %c16_71 = arith.constant 16 : index
    %166 = vector.load %arg19[%c8_70, %c16_71] : memref<16x32xf32, #tpu.memory_space<vmem>>, vector<8x8xf32>
    tpu.vector_store %arg19[%c8_70, %c16_71], %165 {strides = array<i32>} : memref<16x32xf32, #tpu.memory_space<vmem>>, vector<8x8xf32>,
    %167 = vector.extract_strided_slice %19 {offsets = [8, 24], sizes = [8, 8], strides = [1, 1]} : vector<16x96xf32> to vector<8x8xf32>
    %168 = arith.truncf %167 : vector<8x8xf32> to vector<8x8xbf16>
    %169 = vector.extract_strided_slice %19 {offsets = [8, 56], sizes = [8, 8], strides = [1, 1]} : vector<16x96xf32> to vector<8x8xf32>
    %170 = arith.truncf %169 : vector<8x8xf32> to vector<8x8xbf16>
    %171 = vector.extract_strided_slice %19 {offsets = [8, 88], sizes = [8, 8], strides = [1, 1]} : vector<16x96xf32> to vector<8x8xf32>
    %172 = arith.truncf %171 : vector<8x8xf32> to vector<8x8xbf16>
    %cst_72 = arith.constant dense<0.000000e+00> : vector<8x8xf32>
    %173 = tpu.matmul %168, %170, %cst_72 {dimension_numbers = #tpu.dot_dimension_numbers<[1], [1], [0], [0], [0, 0, 1, 0], [], []>} : vector<8x8xbf16>, vector<8x8xbf16>, vector<8x8xf32> -> vector<8x8xf32>
    %cst_73 = arith.constant 0.353553385 : f32
    %174 = vector.broadcast %cst_73 : f32 to vector<8x8xf32>
    %175 = arith.mulf %173, %174 : vector<8x8xf32>
    %cst_74 = arith.constant dense<0xFF800000> : vector<8xf32>
    %176 = vector.multi_reduction <maximumf>, %175, %cst_74 [1] : vector<8x8xf32> to vector<8xf32>
    %177 = vector.shape_cast %176 : vector<8xf32> to vector<8x1xf32>
    %178 = vector.broadcast %177 : vector<8x1xf32> to vector<8x8xf32>
    %179 = arith.subf %175, %178 : vector<8x8xf32>
    %180 = math.exp %179 : vector<8x8xf32>
    %cst_75 = arith.constant dense<0.000000e+00> : vector<8xf32>
    %181 = vector.multi_reduction <add>, %180, %cst_75 [1] : vector<8x8xf32> to vector<8xf32>
    %182 = vector.shape_cast %181 : vector<8xf32> to vector<8x1xf32>
    %183 = vector.broadcast %182 : vector<8x1xf32> to vector<8x8xf32>
    %184 = arith.divf %180, %183 : vector<8x8xf32>
    %185 = arith.truncf %184 : vector<8x8xf32> to vector<8x8xbf16>
    %cst_76 = arith.constant dense<0.000000e+00> : vector<8x8xf32>
    %186 = tpu.matmul %185, %172, %cst_76 {dimension_numbers = #tpu.dot_dimension_numbers<[1], [0], [0], [1], [0, 0, 1, 1], [], []>} : vector<8x8xbf16>, vector<8x8xbf16>, vector<8x8xf32> -> vector<8x8xf32>
    %c8_77 = arith.constant 8 : index
    %c24_78 = arith.constant 24 : index
    %187 = vector.load %arg19[%c8_77, %c24_78] : memref<16x32xf32, #tpu.memory_space<vmem>>, vector<8x8xf32>
    tpu.vector_store %arg19[%c8_77, %c24_78], %186 {strides = array<i32>} : memref<16x32xf32, #tpu.memory_space<vmem>>, vector<8x8xf32>,
    %c0_79 = arith.constant 0 : index
    %c0_80 = arith.constant 0 : index
    %188 = vector.load %arg19[%c0_79, %c0_80] : memref<16x32xf32, #tpu.memory_space<vmem>>, vector<16x32xf32>
    %189 = arith.truncf %188 : vector<16x32xf32> to vector<16x32xbf16>
    %c0_81 = arith.constant 0 : index
    %c0_82 = arith.constant 0 : index
    %190 = vector.load %arg6[%c0_81, %c0_82] : memref<32x32xbf16, #tpu.memory_space<vmem>>, vector<32x32xbf16>
    %cst_83 = arith.constant dense<0.000000e+00> : vector<16x32xf32>
    %191 = tpu.matmul %189, %190, %cst_83 {dimension_numbers = #tpu.dot_dimension_numbers<[1], [0], [0], [1], [0, 0, 1, 1], [], []>} : vector<16x32xbf16>, vector<32x32xbf16>, vector<16x32xf32> -> vector<16x32xf32>
    %192 = vector.broadcast %2 : vector<1x32xf32> to vector<16x32xf32>
    %193 = arith.addf %191, %192 : vector<16x32xf32>
    %194 = arith.addf %14, %193 : vector<16x32xf32>
    %cst_84 = arith.constant dense<0.000000e+00> : vector<16xf32>
    %195 = vector.multi_reduction <add>, %194, %cst_84 [1] : vector<16x32xf32> to vector<16xf32>
    %196 = vector.shape_cast %195 : vector<16xf32> to vector<16x1xf32>
    %cst_85 = arith.constant 3.200000e+01 : f32
    %197 = vector.broadcast %cst_85 : f32 to vector<16x1xf32>
    %198 = arith.divf %196, %197 : vector<16x1xf32>
    %199 = vector.broadcast %198 : vector<16x1xf32> to vector<16x32xf32>
    %200 = arith.subf %194, %199 : vector<16x32xf32>
    %201 = arith.mulf %200, %200 : vector<16x32xf32>
    %cst_86 = arith.constant dense<0.000000e+00> : vector<16xf32>
    %202 = vector.multi_reduction <add>, %201, %cst_86 [1] : vector<16x32xf32> to vector<16xf32>
    %203 = vector.shape_cast %202 : vector<16xf32> to vector<16x1xf32>
    %cst_87 = arith.constant 3.200000e+01 : f32
    %204 = vector.broadcast %cst_87 : f32 to vector<16x1xf32>
    %205 = arith.divf %203, %204 : vector<16x1xf32>
    %206 = vector.broadcast %198 : vector<16x1xf32> to vector<16x32xf32>
    %207 = arith.subf %194, %206 : vector<16x32xf32>
    %cst_88 = arith.constant 9.99999974E-6 : f32
    %208 = vector.broadcast %cst_88 : f32 to vector<16x1xf32>
    %209 = arith.addf %205, %208 : vector<16x1xf32>
    %210 = math.rsqrt %209 : vector<16x1xf32>
    %211 = vector.broadcast %210 : vector<16x1xf32> to vector<16x32xf32>
    %212 = arith.mulf %207, %211 : vector<16x32xf32>
    %213 = vector.broadcast %3 : vector<1x32xf32> to vector<16x32xf32>
    %214 = arith.mulf %212, %213 : vector<16x32xf32>
    %215 = vector.broadcast %4 : vector<1x32xf32> to vector<16x32xf32>
    %216 = arith.addf %214, %215 : vector<16x32xf32>
    %217 = arith.truncf %216 : vector<16x32xf32> to vector<16x32xbf16>
    %c0_89 = arith.constant 0 : index
    %c0_90 = arith.constant 0 : index
    %218 = vector.load %arg10[%c0_89, %c0_90] : memref<32x64xbf16, #tpu.memory_space<vmem>>, vector<32x64xbf16>
    %cst_91 = arith.constant dense<0.000000e+00> : vector<16x64xf32>
    %219 = tpu.matmul %217, %218, %cst_91 {dimension_numbers = #tpu.dot_dimension_numbers<[1], [0], [0], [1], [0, 0, 1, 1], [], []>} : vector<16x32xbf16>, vector<32x64xbf16>, vector<16x64xf32> -> vector<16x64xf32>
    %220 = vector.broadcast %5 : vector<1x64xf32> to vector<16x64xf32>
    %221 = arith.addf %219, %220 : vector<16x64xf32>
    %cst_92 = arith.constant 0.000000e+00 : f32
    %222 = vector.broadcast %cst_92 : f32 to vector<16x64xf32>
    %223 = arith.maximumf %221, %222 : vector<16x64xf32>
    %224 = arith.truncf %223 : vector<16x64xf32> to vector<16x64xbf16>
    %c0_93 = arith.constant 0 : index
    %c0_94 = arith.constant 0 : index
    %225 = vector.load %arg12[%c0_93, %c0_94] : memref<64x32xbf16, #tpu.memory_space<vmem>>, vector<64x32xbf16>
    %cst_95 = arith.constant dense<0.000000e+00> : vector<16x32xf32>
    %226 = tpu.matmul %224, %225, %cst_95 {dimension_numbers = #tpu.dot_dimension_numbers<[1], [0], [0], [1], [0, 0, 1, 1], [], []>} : vector<16x64xbf16>, vector<64x32xbf16>, vector<16x32xf32> -> vector<16x32xf32>
    %227 = vector.broadcast %6 : vector<1x32xf32> to vector<16x32xf32>
    %228 = arith.addf %226, %227 : vector<16x32xf32>
    %229 = arith.addf %216, %228 : vector<16x32xf32>
    %cst_96 = arith.constant dense<0.000000e+00> : vector<16xf32>
    %230 = vector.multi_reduction <add>, %229, %cst_96 [1] : vector<16x32xf32> to vector<16xf32>
    %231 = vector.shape_cast %230 : vector<16xf32> to vector<16x1xf32>
    %cst_97 = arith.constant 3.200000e+01 : f32
    %232 = vector.broadcast %cst_97 : f32 to vector<16x1xf32>
    %233 = arith.divf %231, %232 : vector<16x1xf32>
    %234 = vector.broadcast %233 : vector<16x1xf32> to vector<16x32xf32>
    %235 = arith.subf %229, %234 : vector<16x32xf32>
    %236 = arith.mulf %235, %235 : vector<16x32xf32>
    %cst_98 = arith.constant dense<0.000000e+00> : vector<16xf32>
    %237 = vector.multi_reduction <add>, %236, %cst_98 [1] : vector<16x32xf32> to vector<16xf32>
    %238 = vector.shape_cast %237 : vector<16xf32> to vector<16x1xf32>
    %cst_99 = arith.constant 3.200000e+01 : f32
    %239 = vector.broadcast %cst_99 : f32 to vector<16x1xf32>
    %240 = arith.divf %238, %239 : vector<16x1xf32>
    %241 = vector.broadcast %233 : vector<16x1xf32> to vector<16x32xf32>
    %242 = arith.subf %229, %241 : vector<16x32xf32>
    %cst_100 = arith.constant 9.99999974E-6 : f32
    %243 = vector.broadcast %cst_100 : f32 to vector<16x1xf32>
    %244 = arith.addf %240, %243 : vector<16x1xf32>
    %245 = math.rsqrt %244 : vector<16x1xf32>
    %246 = vector.broadcast %245 : vector<16x1xf32> to vector<16x32xf32>
    %247 = arith.mulf %242, %246 : vector<16x32xf32>
    %248 = vector.broadcast %7 : vector<1x32xf32> to vector<16x32xf32>
    %249 = arith.mulf %247, %248 : vector<16x32xf32>
    %250 = vector.broadcast %8 : vector<1x32xf32> to vector<16x32xf32>
    %251 = arith.addf %249, %250 : vector<16x32xf32>
    %252 = arith.truncf %251 : vector<16x32xf32> to vector<16x32xbf16>
    %c0_101 = arith.constant 0 : index
    %c0_102 = arith.constant 0 : index
    %253 = vector.load %arg16[%c0_101, %c0_102] : memref<32x128xbf16, #tpu.memory_space<vmem>>, vector<32x128xbf16>
    %cst_103 = arith.constant dense<0.000000e+00> : vector<16x128xf32>
    %254 = tpu.matmul %252, %253, %cst_103 {dimension_numbers = #tpu.dot_dimension_numbers<[1], [0], [0], [1], [0, 0, 1, 1], [], []>} : vector<16x32xbf16>, vector<32x128xbf16>, vector<16x128xf32> -> vector<16x128xf32>
    %255 = vector.broadcast %9 : vector<1x128xf32> to vector<16x128xf32>
    %256 = arith.addf %254, %255 : vector<16x128xf32>
    %257 = arith.truncf %256 : vector<16x128xf32> to vector<16x128xbf16>
    %c0_104 = arith.constant 0 : index
    %c0_105 = arith.constant 0 : index
    %258 = vector.load %arg18[%c0_104, %c0_105] : memref<16x128xbf16, #tpu.memory_space<vmem>>, vector<16x128xbf16>
    tpu.vector_store %arg18[%c0_104, %c0_105], %257 {strides = array<i32>} : memref<16x128xbf16, #tpu.memory_space<vmem>>, vector<16x128xbf16>,
    return
  }
  func.func @transform_0(%arg0: i32) -> (i32, i32) {
    %c0_i32 = arith.constant 0 : i32
    %c0_i32_0 = arith.constant 0 : i32
    return %arg0, %c0_i32 : i32, i32
  }
  func.func @transform_1(%arg0: i32) -> (i32, i32) {
    %c0_i32 = arith.constant 0 : i32
    %c0_i32_0 = arith.constant 0 : i32
    %c0_i32_1 = arith.constant 0 : i32
    return %c0_i32, %c0_i32_0 : i32, i32
  }
  func.func @transform_2(%arg0: i32) -> (i32, i32) {
    %c0_i32 = arith.constant 0 : i32
    %c0_i32_0 = arith.constant 0 : i32
    %c0_i32_1 = arith.constant 0 : i32
    return %c0_i32, %c0_i32_0 : i32, i32
  }
  func.func @transform_3(%arg0: i32) -> (i32, i32) {
    %c0_i32 = arith.constant 0 : i32
    %c0_i32_0 = arith.constant 0 : i32
    %c0_i32_1 = arith.constant 0 : i32
    return %c0_i32, %c0_i32_0 : i32, i32
  }
  func.func @transform_4(%arg0: i32) -> (i32, i32) {
    %c0_i32 = arith.constant 0 : i32
    %c0_i32_0 = arith.constant 0 : i32
    %c0_i32_1 = arith.constant 0 : i32
    return %c0_i32, %c0_i32_0 : i32, i32
  }
  func.func @transform_5(%arg0: i32) -> (i32, i32) {
    %c0_i32 = arith.constant 0 : i32
    %c0_i32_0 = arith.constant 0 : i32
    %c0_i32_1 = arith.constant 0 : i32
    return %c0_i32, %c0_i32_0 : i32, i32
  }
  func.func @transform_6(%arg0: i32) -> (i32, i32) {
    %c0_i32 = arith.constant 0 : i32
    %c0_i32_0 = arith.constant 0 : i32
    %c0_i32_1 = arith.constant 0 : i32
    return %c0_i32, %c0_i32_0 : i32, i32
  }
  func.func @transform_7(%arg0: i32) -> (i32, i32) {
    %c0_i32 = arith.constant 0 : i32
    %c0_i32_0 = arith.constant 0 : i32
    %c0_i32_1 = arith.constant 0 : i32
    return %c0_i32, %c0_i32_0 : i32, i32
  }
  func.func @transform_8(%arg0: i32) -> (i32, i32) {
    %c0_i32 = arith.constant 0 : i32
    %c0_i32_0 = arith.constant 0 : i32
    %c0_i32_1 = arith.constant 0 : i32
    return %c0_i32, %c0_i32_0 : i32, i32
  }
  func.func @transform_9(%arg0: i32) -> (i32, i32) {
    %c0_i32 = arith.constant 0 : i32
    %c0_i32_0 = arith.constant 0 : i32
    %c0_i32_1 = arith.constant 0 : i32
    return %c0_i32, %c0_i32_0 : i32, i32
  }
  func.func @transform_10(%arg0: i32) -> (i32, i32) {
    %c0_i32 = arith.constant 0 : i32
    %c0_i32_0 = arith.constant 0 : i32
    %c0_i32_1 = arith.constant 0 : i32
    return %c0_i32, %c0_i32_0 : i32, i32
  }
  func.func @transform_11(%arg0: i32) -> (i32, i32) {
    %c0_i32 = arith.constant 0 : i32
    %c0_i32_0 = arith.constant 0 : i32
    %c0_i32_1 = arith.constant 0 : i32
    return %c0_i32, %c0_i32_0 : i32, i32
  }
  func.func @transform_12(%arg0: i32) -> (i32, i32) {
    %c0_i32 = arith.constant 0 : i32
    %c0_i32_0 = arith.constant 0 : i32
    %c0_i32_1 = arith.constant 0 : i32
    return %c0_i32, %c0_i32_0 : i32, i32
  }
  func.func @transform_13(%arg0: i32) -> (i32, i32) {
    %c0_i32 = arith.constant 0 : i32
    %c0_i32_0 = arith.constant 0 : i32
    %c0_i32_1 = arith.constant 0 : i32
    return %c0_i32, %c0_i32_0 : i32, i32
  }
  func.func @transform_14(%arg0: i32) -> (i32, i32) {
    %c0_i32 = arith.constant 0 : i32
    %c0_i32_0 = arith.constant 0 : i32
    %c0_i32_1 = arith.constant 0 : i32
    return %c0_i32, %c0_i32_0 : i32, i32
  }
  func.func @transform_15(%arg0: i32) -> (i32, i32) {
    %c0_i32 = arith.constant 0 : i32
    %c0_i32_0 = arith.constant 0 : i32
    %c0_i32_1 = arith.constant 0 : i32
    return %c0_i32, %c0_i32_0 : i32, i32
  }
  func.func @transform_16(%arg0: i32) -> (i32, i32) {
    %c0_i32 = arith.constant 0 : i32
    %c0_i32_0 = arith.constant 0 : i32
    %c0_i32_1 = arith.constant 0 : i32
    return %c0_i32, %c0_i32_0 : i32, i32
  }
  func.func @transform_17(%arg0: i32) -> (i32, i32) {
    %c0_i32 = arith.constant 0 : i32
    %c0_i32_0 = arith.constant 0 : i32
    return %arg0, %c0_i32 : i32, i32
  }
}

module attributes {stable_mosaic.version = 11 : i64} {
  func.func @pretransformer_kernel(%arg0: i32, %arg1: memref<16x16xbf16, #tpu.memory_space<vmem>>, %arg2: memref<16x32xbf16, #tpu.memory_space<vmem>>, %arg3: memref<1x32xf32, #tpu.memory_space<vmem>>, %arg4: memref<32x96xbf16, #tpu.memory_space<vmem>>, %arg5: memref<1x96xf32, #tpu.memory_space<vmem>>, %arg6: memref<32x32xbf16, #tpu.memory_space<vmem>>, %arg7: memref<1x32xf32, #tpu.memory_space<vmem>>, %arg8: memref<1x32xf32, #tpu.memory_space<vmem>>, %arg9: memref<1x32xf32, #tpu.memory_space<vmem>>, %arg10: memref<32x64xbf16, #tpu.memory_space<vmem>>, %arg11: memref<1x64xf32, #tpu.memory_space<vmem>>, %arg12: memref<64x32xbf16, #tpu.memory_space<vmem>>, %arg13: memref<1x32xf32, #tpu.memory_space<vmem>>, %arg14: memref<1x32xf32, #tpu.memory_space<vmem>>, %arg15: memref<1x32xf32, #tpu.memory_space<vmem>>, %arg16: memref<32x128xbf16, #tpu.memory_space<vmem>>, %arg17: memref<1x128xf32, #tpu.memory_space<vmem>>, %arg18: memref<16x128xbf16, #tpu.memory_space<vmem>>, %arg19: memref<16x32xf32, #tpu.memory_space<vmem>>) attributes {dimension_semantics = [#tpu.dimension_semantics<parallel>], iteration_bounds = array<i64: 1>, scalar_prefetch = 0 : i64, scratch_operands = 1 : i64, tpu.core_type = #tpu.core_type<tc>, window_params = [{transform_indices = @transform_0, window_bounds = array<i64: 16, 16>}, {pipeline_mode = #tpu.pipeline_mode<synchronous>, transform_indices = @transform_1, window_bounds = array<i64: 16, 32>}, {pipeline_mode = #tpu.pipeline_mode<synchronous>, transform_indices = @transform_2, window_bounds = array<i64: 1, 32>}, {pipeline_mode = #tpu.pipeline_mode<synchronous>, transform_indices = @transform_3, window_bounds = array<i64: 32, 96>}, {pipeline_mode = #tpu.pipeline_mode<synchronous>, transform_indices = @transform_4, window_bounds = array<i64: 1, 96>}, {pipeline_mode = #tpu.pipeline_mode<synchronous>, transform_indices = @transform_5, window_bounds = array<i64: 32, 32>}, {pipeline_mode = #tpu.pipeline_mode<synchronous>, transform_indices = @transform_6, window_bounds = array<i64: 1, 32>}, {pipeline_mode = #tpu.pipeline_mode<synchronous>, transform_indices = @transform_7, window_bounds = array<i64: 1, 32>}, {pipeline_mode = #tpu.pipeline_mode<synchronous>, transform_indices = @transform_8, window_bounds = array<i64: 1, 32>}, {pipeline_mode = #tpu.pipeline_mode<synchronous>, transform_indices = @transform_9, window_bounds = array<i64: 32, 64>}, {pipeline_mode = #tpu.pipeline_mode<synchronous>, transform_indices = @transform_10, window_bounds = array<i64: 1, 64>}, {pipeline_mode = #tpu.pipeline_mode<synchronous>, transform_indices = @transform_11, window_bounds = array<i64: 64, 32>}, {pipeline_mode = #tpu.pipeline_mode<synchronous>, transform_indices = @transform_12, window_bounds = array<i64: 1, 32>}, {pipeline_mode = #tpu.pipeline_mode<synchronous>, transform_indices = @transform_13, window_bounds = array<i64: 1, 32>}, {pipeline_mode = #tpu.pipeline_mode<synchronous>, transform_indices = @transform_14, window_bounds = array<i64: 1, 32>}, {pipeline_mode = #tpu.pipeline_mode<synchronous>, transform_indices = @transform_15, window_bounds = array<i64: 32, 128>}, {pipeline_mode = #tpu.pipeline_mode<synchronous>, transform_indices = @transform_16, window_bounds = array<i64: 1, 128>}, {transform_indices = @transform_17, window_bounds = array<i64: 16, 128>}]} {
    %c0 = arith.constant 0 : index
    %c0_0 = arith.constant 0 : index
    %0 = vector.load %arg3[%c0, %c0_0] : memref<1x32xf32, #tpu.memory_space<vmem>>, vector<1x32xf32>
    %c0_1 = arith.constant 0 : index
    %c0_2 = arith.constant 0 : index
    %1 = vector.load %arg5[%c0_1, %c0_2] : memref<1x96xf32, #tpu.memory_space<vmem>>, vector<1x96xf32>
    %c0_3 = arith.constant 0 : index
    %c0_4 = arith.constant 0 : index
    %2 = vector.load %arg7[%c0_3, %c0_4] : memref<1x32xf32, #tpu.memory_space<vmem>>, vector<1x32xf32>
    %c0_5 = arith.constant 0 : index
    %c0_6 = arith.constant 0 : index
    %3 = vector.load %arg8[%c0_5, %c0_6] : memref<1x32xf32, #tpu.memory_space<vmem>>, vector<1x32xf32>
    %c0_7 = arith.constant 0 : index
    %c0_8 = arith.constant 0 : index
    %4 = vector.load %arg9[%c0_7, %c0_8] : memref<1x32xf32, #tpu.memory_space<vmem>>, vector<1x32xf32>
    %c0_9 = arith.constant 0 : index
    %c0_10 = arith.constant 0 : index
    %5 = vector.load %arg11[%c0_9, %c0_10] : memref<1x64xf32, #tpu.memory_space<vmem>>, vector<1x64xf32>
    %c0_11 = arith.constant 0 : index
    %c0_12 = arith.constant 0 : index
    %6 = vector.load %arg13[%c0_11, %c0_12] : memref<1x32xf32, #tpu.memory_space<vmem>>, vector<1x32xf32>
    %c0_13 = arith.constant 0 : index
    %c0_14 = arith.constant 0 : index
    %7 = vector.load %arg14[%c0_13, %c0_14] : memref<1x32xf32, #tpu.memory_space<vmem>>, vector<1x32xf32>
    %c0_15 = arith.constant 0 : index
    %c0_16 = arith.constant 0 : index
    %8 = vector.load %arg15[%c0_15, %c0_16] : memref<1x32xf32, #tpu.memory_space<vmem>>, vector<1x32xf32>
    %c0_17 = arith.constant 0 : index
    %c0_18 = arith.constant 0 : index
    %9 = vector.load %arg17[%c0_17, %c0_18] : memref<1x128xf32, #tpu.memory_space<vmem>>, vector<1x128xf32>
    %c0_19 = arith.constant 0 : index
    %c0_20 = arith.constant 0 : index
    %10 = vector.load %arg1[%c0_19, %c0_20] : memref<16x16xbf16, #tpu.memory_space<vmem>>, vector<16x16xbf16>
    %c0_21 = arith.constant 0 : index
    %c0_22 = arith.constant 0 : index
    %11 = vector.load %arg2[%c0_21, %c0_22] : memref<16x32xbf16, #tpu.memory_space<vmem>>, vector<16x32xbf16>
    %cst = arith.constant dense<0.000000e+00> : vector<16x32xf32>
    %12 = tpu.matmul %10, %11, %cst {dimension_numbers = #tpu.dot_dimension_numbers<[1], [0], [0], [1], [0, 0, 1, 1], [], []>} : vector<16x16xbf16>, vector<16x32xbf16>, vector<16x32xf32> -> vector<16x32xf32>
    %13 = vector.broadcast %0 : vector<1x32xf32> to vector<16x32xf32>
    %14 = arith.addf %12, %13 : vector<16x32xf32>
    %15 = arith.truncf %14 : vector<16x32xf32> to vector<16x32xbf16>
    %c0_23 = arith.constant 0 : index
    %c0_24 = arith.constant 0 : index
    %16 = vector.load %arg4[%c0_23, %c0_24] : memref<32x96xbf16, #tpu.memory_space<vmem>>, vector<32x96xbf16>
    %cst_25 = arith.constant dense<0.000000e+00> : vector<16x96xf32>
    %17 = tpu.matmul %15, %16, %cst_25 {dimension_numbers = #tpu.dot_dimension_numbers<[1], [0], [0], [1], [0, 0, 1, 1], [], []>} : vector<16x32xbf16>, vector<32x96xbf16>, vector<16x96xf32> -> vector<16x96xf32>
    %18 = vector.broadcast %1 : vector<1x96xf32> to vector<16x96xf32>
    %19 = arith.addf %17, %18 : vector<16x96xf32>
    %20 = vector.extract_strided_slice %19 {offsets = [0, 0], sizes = [8, 8], strides = [1, 1]} : vector<16x96xf32> to vector<8x8xf32>
    %21 = arith.truncf %20 : vector<8x8xf32> to vector<8x8xbf16>
    %22 = vector.extract_strided_slice %19 {offsets = [0, 32], sizes = [8, 8], strides = [1, 1]} : vector<16x96xf32> to vector<8x8xf32>
    %23 = arith.truncf %22 : vector<8x8xf32> to vector<8x8xbf16>
    %24 = vector.extract_strided_slice %19 {offsets = [0, 64], sizes = [8, 8], strides = [1, 1]} : vector<16x96xf32> to vector<8x8xf32>
    %25 = arith.truncf %24 : vector<8x8xf32> to vector<8x8xbf16>
    %cst_26 = arith.constant dense<0.000000e+00> : vector<8x8xf32>
    %26 = tpu.matmul %21, %23, %cst_26 {dimension_numbers = #tpu.dot_dimension_numbers<[1], [1], [0], [0], [0, 0, 1, 0], [], []>} : vector<8x8xbf16>, vector<8x8xbf16>, vector<8x8xf32> -> vector<8x8xf32>
    %cst_27 = arith.constant 0.353553385 : f32
    %27 = vector.broadcast %cst_27 : f32 to vector<8x8xf32>
    %28 = arith.mulf %26, %27 : vector<8x8xf32>
    %cst_28 = arith.constant dense<0xFF800000> : vector<8xf32>
    %29 = vector.multi_reduction <maximumf>, %28, %cst_28 [1] : vector<8x8xf32> to vector<8xf32>
    %30 = vector.shape_cast %29 : vector<8xf32> to vector<8x1xf32>
    %31 = vector.broadcast %30 : vector<8x1xf32> to vector<8x8xf32>
    %32 = arith.subf %28, %31 : vector<8x8xf32>
    %33 = math.exp %32 : vector<8x8xf32>
    %cst_29 = arith.constant dense<0.000000e+00> : vector<8xf32>
    %34 = vector.multi_reduction <add>, %33, %cst_29 [1] : vector<8x8xf32> to vector<8xf32>
    %35 = vector.shape_cast %34 : vector<8xf32> to vector<8x1xf32>
    %36 = vector.broadcast %35 : vector<8x1xf32> to vector<8x8xf32>
    %37 = arith.divf %33, %36 : vector<8x8xf32>
    %38 = arith.truncf %37 : vector<8x8xf32> to vector<8x8xbf16>
    %cst_30 = arith.constant dense<0.000000e+00> : vector<8x8xf32>
    %39 = tpu.matmul %38, %25, %cst_30 {dimension_numbers = #tpu.dot_dimension_numbers<[1], [0], [0], [1], [0, 0, 1, 1], [], []>} : vector<8x8xbf16>, vector<8x8xbf16>, vector<8x8xf32> -> vector<8x8xf32>
    %c0_31 = arith.constant 0 : index
    %c0_32 = arith.constant 0 : index
    %40 = vector.load %arg19[%c0_31, %c0_32] : memref<16x32xf32, #tpu.memory_space<vmem>>, vector<8x8xf32>
    tpu.vector_store %arg19[%c0_31, %c0_32], %39 {strides = array<i32>} : memref<16x32xf32, #tpu.memory_space<vmem>>, vector<8x8xf32>,
    %41 = vector.extract_strided_slice %19 {offsets = [0, 8], sizes = [8, 8], strides = [1, 1]} : vector<16x96xf32> to vector<8x8xf32>
    %42 = arith.truncf %41 : vector<8x8xf32> to vector<8x8xbf16>
    %43 = vector.extract_strided_slice %19 {offsets = [0, 40], sizes = [8, 8], strides = [1, 1]} : vector<16x96xf32> to vector<8x8xf32>
    %44 = arith.truncf %43 : vector<8x8xf32> to vector<8x8xbf16>
    %45 = vector.extract_strided_slice %19 {offsets = [0, 72], sizes = [8, 8], strides = [1, 1]} : vector<16x96xf32> to vector<8x8xf32>
    %46 = arith.truncf %45 : vector<8x8xf32> to vector<8x8xbf16>
    %cst_33 = arith.constant dense<0.000000e+00> : vector<8x8xf32>
    %47 = tpu.matmul %42, %44, %cst_33 {dimension_numbers = #tpu.dot_dimension_numbers<[1], [1], [0], [0], [0, 0, 1, 0], [], []>} : vector<8x8xbf16>, vector<8x8xbf16>, vector<8x8xf32> -> vector<8x8xf32>
    %cst_34 = arith.constant 0.353553385 : f32
    %48 = vector.broadcast %cst_34 : f32 to vector<8x8xf32>
    %49 = arith.mulf %47, %48 : vector<8x8xf32>
    %cst_35 = arith.constant dense<0xFF800000> : vector<8xf32>
    %50 = vector.multi_reduction <maximumf>, %49, %cst_35 [1] : vector<8x8xf32> to vector<8xf32>
    %51 = vector.shape_cast %50 : vector<8xf32> to vector<8x1xf32>
    %52 = vector.broadcast %51 : vector<8x1xf32> to vector<8x8xf32>
    %53 = arith.subf %49, %52 : vector<8x8xf32>
    %54 = math.exp %53 : vector<8x8xf32>
    %cst_36 = arith.constant dense<0.000000e+00> : vector<8xf32>
    %55 = vector.multi_reduction <add>, %54, %cst_36 [1] : vector<8x8xf32> to vector<8xf32>
    %56 = vector.shape_cast %55 : vector<8xf32> to vector<8x1xf32>
    %57 = vector.broadcast %56 : vector<8x1xf32> to vector<8x8xf32>
    %58 = arith.divf %54, %57 : vector<8x8xf32>
    %59 = arith.truncf %58 : vector<8x8xf32> to vector<8x8xbf16>
    %cst_37 = arith.constant dense<0.000000e+00> : vector<8x8xf32>
    %60 = tpu.matmul %59, %46, %cst_37 {dimension_numbers = #tpu.dot_dimension_numbers<[1], [0], [0], [1], [0, 0, 1, 1], [], []>} : vector<8x8xbf16>, vector<8x8xbf16>, vector<8x8xf32> -> vector<8x8xf32>
    %c0_38 = arith.constant 0 : index
    %c8 = arith.constant 8 : index
    %61 = vector.load %arg19[%c0_38, %c8] : memref<16x32xf32, #tpu.memory_space<vmem>>, vector<8x8xf32>
    tpu.vector_store %arg19[%c0_38, %c8], %60 {strides = array<i32>} : memref<16x32xf32, #tpu.memory_space<vmem>>, vector<8x8xf32>,
    %62 = vector.extract_strided_slice %19 {offsets = [0, 16], sizes = [8, 8], strides = [1, 1]} : vector<16x96xf32> to vector<8x8xf32>
    %63 = arith.truncf %62 : vector<8x8xf32> to vector<8x8xbf16>
    %64 = vector.extract_strided_slice %19 {offsets = [0, 48], sizes = [8, 8], strides = [1, 1]} : vector<16x96xf32> to vector<8x8xf32>
    %65 = arith.truncf %64 : vector<8x8xf32> to vector<8x8xbf16>
    %66 = vector.extract_strided_slice %19 {offsets = [0, 80], sizes = [8, 8], strides = [1, 1]} : vector<16x96xf32> to vector<8x8xf32>
    %67 = arith.truncf %66 : vector<8x8xf32> to vector<8x8xbf16>
    %cst_39 = arith.constant dense<0.000000e+00> : vector<8x8xf32>
    %68 = tpu.matmul %63, %65, %cst_39 {dimension_numbers = #tpu.dot_dimension_numbers<[1], [1], [0], [0], [0, 0, 1, 0], [], []>} : vector<8x8xbf16>, vector<8x8xbf16>, vector<8x8xf32> -> vector<8x8xf32>
    %cst_40 = arith.constant 0.353553385 : f32
    %69 = vector.broadcast %cst_40 : f32 to vector<8x8xf32>
    %70 = arith.mulf %68, %69 : vector<8x8xf32>
    %cst_41 = arith.constant dense<0xFF800000> : vector<8xf32>
    %71 = vector.multi_reduction <maximumf>, %70, %cst_41 [1] : vector<8x8xf32> to vector<8xf32>
    %72 = vector.shape_cast %71 : vector<8xf32> to vector<8x1xf32>
    %73 = vector.broadcast %72 : vector<8x1xf32> to vector<8x8xf32>
    %74 = arith.subf %70, %73 : vector<8x8xf32>
    %75 = math.exp %74 : vector<8x8xf32>
    %cst_42 = arith.constant dense<0.000000e+00> : vector<8xf32>
    %76 = vector.multi_reduction <add>, %75, %cst_42 [1] : vector<8x8xf32> to vector<8xf32>
    %77 = vector.shape_cast %76 : vector<8xf32> to vector<8x1xf32>
    %78 = vector.broadcast %77 : vector<8x1xf32> to vector<8x8xf32>
    %79 = arith.divf %75, %78 : vector<8x8xf32>
    %80 = arith.truncf %79 : vector<8x8xf32> to vector<8x8xbf16>
    %cst_43 = arith.constant dense<0.000000e+00> : vector<8x8xf32>
    %81 = tpu.matmul %80, %67, %cst_43 {dimension_numbers = #tpu.dot_dimension_numbers<[1], [0], [0], [1], [0, 0, 1, 1], [], []>} : vector<8x8xbf16>, vector<8x8xbf16>, vector<8x8xf32> -> vector<8x8xf32>
    %c0_44 = arith.constant 0 : index
    %c16 = arith.constant 16 : index
    %82 = vector.load %arg19[%c0_44, %c16] : memref<16x32xf32, #tpu.memory_space<vmem>>, vector<8x8xf32>
    tpu.vector_store %arg19[%c0_44, %c16], %81 {strides = array<i32>} : memref<16x32xf32, #tpu.memory_space<vmem>>, vector<8x8xf32>,
    %83 = vector.extract_strided_slice %19 {offsets = [0, 24], sizes = [8, 8], strides = [1, 1]} : vector<16x96xf32> to vector<8x8xf32>
    %84 = arith.truncf %83 : vector<8x8xf32> to vector<8x8xbf16>
    %85 = vector.extract_strided_slice %19 {offsets = [0, 56], sizes = [8, 8], strides = [1, 1]} : vector<16x96xf32> to vector<8x8xf32>
    %86 = arith.truncf %85 : vector<8x8xf32> to vector<8x8xbf16>
    %87 = vector.extract_strided_slice %19 {offsets = [0, 88], sizes = [8, 8], strides = [1, 1]} : vector<16x96xf32> to vector<8x8xf32>
    %88 = arith.truncf %87 : vector<8x8xf32> to vector<8x8xbf16>
    %cst_45 = arith.constant dense<0.000000e+00> : vector<8x8xf32>
    %89 = tpu.matmul %84, %86, %cst_45 {dimension_numbers = #tpu.dot_dimension_numbers<[1], [1], [0], [0], [0, 0, 1, 0], [], []>} : vector<8x8xbf16>, vector<8x8xbf16>, vector<8x8xf32> -> vector<8x8xf32>
    %cst_46 = arith.constant 0.353553385 : f32
    %90 = vector.broadcast %cst_46 : f32 to vector<8x8xf32>
    %91 = arith.mulf %89, %90 : vector<8x8xf32>
    %cst_47 = arith.constant dense<0xFF800000> : vector<8xf32>
    %92 = vector.multi_reduction <maximumf>, %91, %cst_47 [1] : vector<8x8xf32> to vector<8xf32>
    %93 = vector.shape_cast %92 : vector<8xf32> to vector<8x1xf32>
    %94 = vector.broadcast %93 : vector<8x1xf32> to vector<8x8xf32>
    %95 = arith.subf %91, %94 : vector<8x8xf32>
    %96 = math.exp %95 : vector<8x8xf32>
    %cst_48 = arith.constant dense<0.000000e+00> : vector<8xf32>
    %97 = vector.multi_reduction <add>, %96, %cst_48 [1] : vector<8x8xf32> to vector<8xf32>
    %98 = vector.shape_cast %97 : vector<8xf32> to vector<8x1xf32>
    %99 = vector.broadcast %98 : vector<8x1xf32> to vector<8x8xf32>
    %100 = arith.divf %96, %99 : vector<8x8xf32>
    %101 = arith.truncf %100 : vector<8x8xf32> to vector<8x8xbf16>
    %cst_49 = arith.constant dense<0.000000e+00> : vector<8x8xf32>
    %102 = tpu.matmul %101, %88, %cst_49 {dimension_numbers = #tpu.dot_dimension_numbers<[1], [0], [0], [1], [0, 0, 1, 1], [], []>} : vector<8x8xbf16>, vector<8x8xbf16>, vector<8x8xf32> -> vector<8x8xf32>
    %c0_50 = arith.constant 0 : index
    %c24 = arith.constant 24 : index
    %103 = vector.load %arg19[%c0_50, %c24] : memref<16x32xf32, #tpu.memory_space<vmem>>, vector<8x8xf32>
    tpu.vector_store %arg19[%c0_50, %c24], %102 {strides = array<i32>} : memref<16x32xf32, #tpu.memory_space<vmem>>, vector<8x8xf32>,
    %104 = vector.extract_strided_slice %19 {offsets = [8, 0], sizes = [8, 8], strides = [1, 1]} : vector<16x96xf32> to vector<8x8xf32>
    %105 = arith.truncf %104 : vector<8x8xf32> to vector<8x8xbf16>
    %106 = vector.extract_strided_slice %19 {offsets = [8, 32], sizes = [8, 8], strides = [1, 1]} : vector<16x96xf32> to vector<8x8xf32>
    %107 = arith.truncf %106 : vector<8x8xf32> to vector<8x8xbf16>
    %108 = vector.extract_strided_slice %19 {offsets = [8, 64], sizes = [8, 8], strides = [1, 1]} : vector<16x96xf32> to vector<8x8xf32>
    %109 = arith.truncf %108 : vector<8x8xf32> to vector<8x8xbf16>
    %cst_51 = arith.constant dense<0.000000e+00> : vector<8x8xf32>
    %110 = tpu.matmul %105, %107, %cst_51 {dimension_numbers = #tpu.dot_dimension_numbers<[1], [1], [0], [0], [0, 0, 1, 0], [], []>} : vector<8x8xbf16>, vector<8x8xbf16>, vector<8x8xf32> -> vector<8x8xf32>
    %cst_52 = arith.constant 0.353553385 : f32
    %111 = vector.broadcast %cst_52 : f32 to vector<8x8xf32>
    %112 = arith.mulf %110, %111 : vector<8x8xf32>
    %cst_53 = arith.constant dense<0xFF800000> : vector<8xf32>
    %113 = vector.multi_reduction <maximumf>, %112, %cst_53 [1] : vector<8x8xf32> to vector<8xf32>
    %114 = vector.shape_cast %113 : vector<8xf32> to vector<8x1xf32>
    %115 = vector.broadcast %114 : vector<8x1xf32> to vector<8x8xf32>
    %116 = arith.subf %112, %115 : vector<8x8xf32>
    %117 = math.exp %116 : vector<8x8xf32>
    %cst_54 = arith.constant dense<0.000000e+00> : vector<8xf32>
    %118 = vector.multi_reduction <add>, %117, %cst_54 [1] : vector<8x8xf32> to vector<8xf32>
    %119 = vector.shape_cast %118 : vector<8xf32> to vector<8x1xf32>
    %120 = vector.broadcast %119 : vector<8x1xf32> to vector<8x8xf32>
    %121 = arith.divf %117, %120 : vector<8x8xf32>
    %122 = arith.truncf %121 : vector<8x8xf32> to vector<8x8xbf16>
    %cst_55 = arith.constant dense<0.000000e+00> : vector<8x8xf32>
    %123 = tpu.matmul %122, %109, %cst_55 {dimension_numbers = #tpu.dot_dimension_numbers<[1], [0], [0], [1], [0, 0, 1, 1], [], []>} : vector<8x8xbf16>, vector<8x8xbf16>, vector<8x8xf32> -> vector<8x8xf32>
    %c8_56 = arith.constant 8 : index
    %c0_57 = arith.constant 0 : index
    %124 = vector.load %arg19[%c8_56, %c0_57] : memref<16x32xf32, #tpu.memory_space<vmem>>, vector<8x8xf32>
    tpu.vector_store %arg19[%c8_56, %c0_57], %123 {strides = array<i32>} : memref<16x32xf32, #tpu.memory_space<vmem>>, vector<8x8xf32>,
    %125 = vector.extract_strided_slice %19 {offsets = [8, 8], sizes = [8, 8], strides = [1, 1]} : vector<16x96xf32> to vector<8x8xf32>
    %126 = arith.truncf %125 : vector<8x8xf32> to vector<8x8xbf16>
    %127 = vector.extract_strided_slice %19 {offsets = [8, 40], sizes = [8, 8], strides = [1, 1]} : vector<16x96xf32> to vector<8x8xf32>
    %128 = arith.truncf %127 : vector<8x8xf32> to vector<8x8xbf16>
    %129 = vector.extract_strided_slice %19 {offsets = [8, 72], sizes = [8, 8], strides = [1, 1]} : vector<16x96xf32> to vector<8x8xf32>
    %130 = arith.truncf %129 : vector<8x8xf32> to vector<8x8xbf16>
    %cst_58 = arith.constant dense<0.000000e+00> : vector<8x8xf32>
    %131 = tpu.matmul %126, %128, %cst_58 {dimension_numbers = #tpu.dot_dimension_numbers<[1], [1], [0], [0], [0, 0, 1, 0], [], []>} : vector<8x8xbf16>, vector<8x8xbf16>, vector<8x8xf32> -> vector<8x8xf32>
    %cst_59 = arith.constant 0.353553385 : f32
    %132 = vector.broadcast %cst_59 : f32 to vector<8x8xf32>
    %133 = arith.mulf %131, %132 : vector<8x8xf32>
    %cst_60 = arith.constant dense<0xFF800000> : vector<8xf32>
    %134 = vector.multi_reduction <maximumf>, %133, %cst_60 [1] : vector<8x8xf32> to vector<8xf32>
    %135 = vector.shape_cast %134 : vector<8xf32> to vector<8x1xf32>
    %136 = vector.broadcast %135 : vector<8x1xf32> to vector<8x8xf32>
    %137 = arith.subf %133, %136 : vector<8x8xf32>
    %138 = math.exp %137 : vector<8x8xf32>
    %cst_61 = arith.constant dense<0.000000e+00> : vector<8xf32>
    %139 = vector.multi_reduction <add>, %138, %cst_61 [1] : vector<8x8xf32> to vector<8xf32>
    %140 = vector.shape_cast %139 : vector<8xf32> to vector<8x1xf32>
    %141 = vector.broadcast %140 : vector<8x1xf32> to vector<8x8xf32>
    %142 = arith.divf %138, %141 : vector<8x8xf32>
    %143 = arith.truncf %142 : vector<8x8xf32> to vector<8x8xbf16>
    %cst_62 = arith.constant dense<0.000000e+00> : vector<8x8xf32>
    %144 = tpu.matmul %143, %130, %cst_62 {dimension_numbers = #tpu.dot_dimension_numbers<[1], [0], [0], [1], [0, 0, 1, 1], [], []>} : vector<8x8xbf16>, vector<8x8xbf16>, vector<8x8xf32> -> vector<8x8xf32>
    %c8_63 = arith.constant 8 : index
    %c8_64 = arith.constant 8 : index
    %145 = vector.load %arg19[%c8_63, %c8_64] : memref<16x32xf32, #tpu.memory_space<vmem>>, vector<8x8xf32>
    tpu.vector_store %arg19[%c8_63, %c8_64], %144 {strides = array<i32>} : memref<16x32xf32, #tpu.memory_space<vmem>>, vector<8x8xf32>,
    %146 = vector.extract_strided_slice %19 {offsets = [8, 16], sizes = [8, 8], strides = [1, 1]} : vector<16x96xf32> to vector<8x8xf32>
    %147 = arith.truncf %146 : vector<8x8xf32> to vector<8x8xbf16>
    %148 = vector.extract_strided_slice %19 {offsets = [8, 48], sizes = [8, 8], strides = [1, 1]} : vector<16x96xf32> to vector<8x8xf32>
    %149 = arith.truncf %148 : vector<8x8xf32> to vector<8x8xbf16>
    %150 = vector.extract_strided_slice %19 {offsets = [8, 80], sizes = [8, 8], strides = [1, 1]} : vector<16x96xf32> to vector<8x8xf32>
    %151 = arith.truncf %150 : vector<8x8xf32> to vector<8x8xbf16>
    %cst_65 = arith.constant dense<0.000000e+00> : vector<8x8xf32>
    %152 = tpu.matmul %147, %149, %cst_65 {dimension_numbers = #tpu.dot_dimension_numbers<[1], [1], [0], [0], [0, 0, 1, 0], [], []>} : vector<8x8xbf16>, vector<8x8xbf16>, vector<8x8xf32> -> vector<8x8xf32>
    %cst_66 = arith.constant 0.353553385 : f32
    %153 = vector.broadcast %cst_66 : f32 to vector<8x8xf32>
    %154 = arith.mulf %152, %153 : vector<8x8xf32>
    %cst_67 = arith.constant dense<0xFF800000> : vector<8xf32>
    %155 = vector.multi_reduction <maximumf>, %154, %cst_67 [1] : vector<8x8xf32> to vector<8xf32>
    %156 = vector.shape_cast %155 : vector<8xf32> to vector<8x1xf32>
    %157 = vector.broadcast %156 : vector<8x1xf32> to vector<8x8xf32>
    %158 = arith.subf %154, %157 : vector<8x8xf32>
    %159 = math.exp %158 : vector<8x8xf32>
    %cst_68 = arith.constant dense<0.000000e+00> : vector<8xf32>
    %160 = vector.multi_reduction <add>, %159, %cst_68 [1] : vector<8x8xf32> to vector<8xf32>
    %161 = vector.shape_cast %160 : vector<8xf32> to vector<8x1xf32>
    %162 = vector.broadcast %161 : vector<8x1xf32> to vector<8x8xf32>
    %163 = arith.divf %159, %162 : vector<8x8xf32>
    %164 = arith.truncf %163 : vector<8x8xf32> to vector<8x8xbf16>
    %cst_69 = arith.constant dense<0.000000e+00> : vector<8x8xf32>
    %165 = tpu.matmul %164, %151, %cst_69 {dimension_numbers = #tpu.dot_dimension_numbers<[1], [0], [0], [1], [0, 0, 1, 1], [], []>} : vector<8x8xbf16>, vector<8x8xbf16>, vector<8x8xf32> -> vector<8x8xf32>
    %c8_70 = arith.constant 8 : index
    %c16_71 = arith.constant 16 : index
    %166 = vector.load %arg19[%c8_70, %c16_71] : memref<16x32xf32, #tpu.memory_space<vmem>>, vector<8x8xf32>
    tpu.vector_store %arg19[%c8_70, %c16_71], %165 {strides = array<i32>} : memref<16x32xf32, #tpu.memory_space<vmem>>, vector<8x8xf32>,
    %167 = vector.extract_strided_slice %19 {offsets = [8, 24], sizes = [8, 8], strides = [1, 1]} : vector<16x96xf32> to vector<8x8xf32>
    %168 = arith.truncf %167 : vector<8x8xf32> to vector<8x8xbf16>
    %169 = vector.extract_strided_slice %19 {offsets = [8, 56], sizes = [8, 8], strides = [1, 1]} : vector<16x96xf32> to vector<8x8xf32>
    %170 = arith.truncf %169 : vector<8x8xf32> to vector<8x8xbf16>
    %171 = vector.extract_strided_slice %19 {offsets = [8, 88], sizes = [8, 8], strides = [1, 1]} : vector<16x96xf32> to vector<8x8xf32>
    %172 = arith.truncf %171 : vector<8x8xf32> to vector<8x8xbf16>
    %cst_72 = arith.constant dense<0.000000e+00> : vector<8x8xf32>
    %173 = tpu.matmul %168, %170, %cst_72 {dimension_numbers = #tpu.dot_dimension_numbers<[1], [1], [0], [0], [0, 0, 1, 0], [], []>} : vector<8x8xbf16>, vector<8x8xbf16>, vector<8x8xf32> -> vector<8x8xf32>
    %cst_73 = arith.constant 0.353553385 : f32
    %174 = vector.broadcast %cst_73 : f32 to vector<8x8xf32>
    %175 = arith.mulf %173, %174 : vector<8x8xf32>
    %cst_74 = arith.constant dense<0xFF800000> : vector<8xf32>
    %176 = vector.multi_reduction <maximumf>, %175, %cst_74 [1] : vector<8x8xf32> to vector<8xf32>
    %177 = vector.shape_cast %176 : vector<8xf32> to vector<8x1xf32>
    %178 = vector.broadcast %177 : vector<8x1xf32> to vector<8x8xf32>
    %179 = arith.subf %175, %178 : vector<8x8xf32>
    %180 = math.exp %179 : vector<8x8xf32>
    %cst_75 = arith.constant dense<0.000000e+00> : vector<8xf32>
    %181 = vector.multi_reduction <add>, %180, %cst_75 [1] : vector<8x8xf32> to vector<8xf32>
    %182 = vector.shape_cast %181 : vector<8xf32> to vector<8x1xf32>
    %183 = vector.broadcast %182 : vector<8x1xf32> to vector<8x8xf32>
    %184 = arith.divf %180, %183 : vector<8x8xf32>
    %185 = arith.truncf %184 : vector<8x8xf32> to vector<8x8xbf16>
    %cst_76 = arith.constant dense<0.000000e+00> : vector<8x8xf32>
    %186 = tpu.matmul %185, %172, %cst_76 {dimension_numbers = #tpu.dot_dimension_numbers<[1], [0], [0], [1], [0, 0, 1, 1], [], []>} : vector<8x8xbf16>, vector<8x8xbf16>, vector<8x8xf32> -> vector<8x8xf32>
    %c8_77 = arith.constant 8 : index
    %c24_78 = arith.constant 24 : index
    %187 = vector.load %arg19[%c8_77, %c24_78] : memref<16x32xf32, #tpu.memory_space<vmem>>, vector<8x8xf32>
    tpu.vector_store %arg19[%c8_77, %c24_78], %186 {strides = array<i32>} : memref<16x32xf32, #tpu.memory_space<vmem>>, vector<8x8xf32>,
    %c0_79 = arith.constant 0 : index
    %c0_80 = arith.constant 0 : index
    %188 = vector.load %arg19[%c0_79, %c0_80] : memref<16x32xf32, #tpu.memory_space<vmem>>, vector<16x32xf32>
    %189 = arith.truncf %188 : vector<16x32xf32> to vector<16x32xbf16>
    %c0_81 = arith.constant 0 : index
    %c0_82 = arith.constant 0 : index
    %190 = vector.load %arg6[%c0_81, %c0_82] : memref<32x32xbf16, #tpu.memory_space<vmem>>, vector<32x32xbf16>
    %cst_83 = arith.constant dense<0.000000e+00> : vector<16x32xf32>
    %191 = tpu.matmul %189, %190, %cst_83 {dimension_numbers = #tpu.dot_dimension_numbers<[1], [0], [0], [1], [0, 0, 1, 1], [], []>} : vector<16x32xbf16>, vector<32x32xbf16>, vector<16x32xf32> -> vector<16x32xf32>
    %192 = vector.broadcast %2 : vector<1x32xf32> to vector<16x32xf32>
    %193 = arith.addf %191, %192 : vector<16x32xf32>
    %194 = arith.addf %14, %193 : vector<16x32xf32>
    %cst_84 = arith.constant dense<0.000000e+00> : vector<16xf32>
    %195 = vector.multi_reduction <add>, %194, %cst_84 [1] : vector<16x32xf32> to vector<16xf32>
    %196 = vector.shape_cast %195 : vector<16xf32> to vector<16x1xf32>
    %cst_85 = arith.constant 3.200000e+01 : f32
    %197 = vector.broadcast %cst_85 : f32 to vector<16x1xf32>
    %198 = arith.divf %196, %197 : vector<16x1xf32>
    %199 = vector.broadcast %198 : vector<16x1xf32> to vector<16x32xf32>
    %200 = arith.subf %194, %199 : vector<16x32xf32>
    %201 = arith.mulf %200, %200 : vector<16x32xf32>
    %cst_86 = arith.constant dense<0.000000e+00> : vector<16xf32>
    %202 = vector.multi_reduction <add>, %201, %cst_86 [1] : vector<16x32xf32> to vector<16xf32>
    %203 = vector.shape_cast %202 : vector<16xf32> to vector<16x1xf32>
    %cst_87 = arith.constant 3.200000e+01 : f32
    %204 = vector.broadcast %cst_87 : f32 to vector<16x1xf32>
    %205 = arith.divf %203, %204 : vector<16x1xf32>
    %206 = vector.broadcast %198 : vector<16x1xf32> to vector<16x32xf32>
    %207 = arith.subf %194, %206 : vector<16x32xf32>
    %cst_88 = arith.constant 9.99999974E-6 : f32
    %208 = vector.broadcast %cst_88 : f32 to vector<16x1xf32>
    %209 = arith.addf %205, %208 : vector<16x1xf32>
    %210 = math.rsqrt %209 : vector<16x1xf32>
    %211 = vector.broadcast %210 : vector<16x1xf32> to vector<16x32xf32>
    %212 = arith.mulf %207, %211 : vector<16x32xf32>
    %213 = vector.broadcast %3 : vector<1x32xf32> to vector<16x32xf32>
    %214 = arith.mulf %212, %213 : vector<16x32xf32>
    %215 = vector.broadcast %4 : vector<1x32xf32> to vector<16x32xf32>
    %216 = arith.addf %214, %215 : vector<16x32xf32>
    %217 = arith.truncf %216 : vector<16x32xf32> to vector<16x32xbf16>
    %c0_89 = arith.constant 0 : index
    %c0_90 = arith.constant 0 : index
    %218 = vector.load %arg10[%c0_89, %c0_90] : memref<32x64xbf16, #tpu.memory_space<vmem>>, vector<32x64xbf16>
    %cst_91 = arith.constant dense<0.000000e+00> : vector<16x64xf32>
    %219 = tpu.matmul %217, %218, %cst_91 {dimension_numbers = #tpu.dot_dimension_numbers<[1], [0], [0], [1], [0, 0, 1, 1], [], []>} : vector<16x32xbf16>, vector<32x64xbf16>, vector<16x64xf32> -> vector<16x64xf32>
    %220 = vector.broadcast %5 : vector<1x64xf32> to vector<16x64xf32>
    %221 = arith.addf %219, %220 : vector<16x64xf32>
    %cst_92 = arith.constant 0.000000e+00 : f32
    %222 = vector.broadcast %cst_92 : f32 to vector<16x64xf32>
    %223 = arith.maximumf %221, %222 : vector<16x64xf32>
    %224 = arith.truncf %223 : vector<16x64xf32> to vector<16x64xbf16>
    %c0_93 = arith.constant 0 : index
    %c0_94 = arith.constant 0 : index
    %225 = vector.load %arg12[%c0_93, %c0_94] : memref<64x32xbf16, #tpu.memory_space<vmem>>, vector<64x32xbf16>
    %cst_95 = arith.constant dense<0.000000e+00> : vector<16x32xf32>
    %226 = tpu.matmul %224, %225, %cst_95 {dimension_numbers = #tpu.dot_dimension_numbers<[1], [0], [0], [1], [0, 0, 1, 1], [], []>} : vector<16x64xbf16>, vector<64x32xbf16>, vector<16x32xf32> -> vector<16x32xf32>
    %227 = vector.broadcast %6 : vector<1x32xf32> to vector<16x32xf32>
    %228 = arith.addf %226, %227 : vector<16x32xf32>
    %229 = arith.addf %216, %228 : vector<16x32xf32>
    %cst_96 = arith.constant dense<0.000000e+00> : vector<16xf32>
    %230 = vector.multi_reduction <add>, %229, %cst_96 [1] : vector<16x32xf32> to vector<16xf32>
    %231 = vector.shape_cast %230 : vector<16xf32> to vector<16x1xf32>
    %cst_97 = arith.constant 3.200000e+01 : f32
    %232 = vector.broadcast %cst_97 : f32 to vector<16x1xf32>
    %233 = arith.divf %231, %232 : vector<16x1xf32>
    %234 = vector.broadcast %233 : vector<16x1xf32> to vector<16x32xf32>
    %235 = arith.subf %229, %234 : vector<16x32xf32>
    %236 = arith.mulf %235, %235 : vector<16x32xf32>
    %cst_98 = arith.constant dense<0.000000e+00> : vector<16xf32>
    %237 = vector.multi_reduction <add>, %236, %cst_98 [1] : vector<16x32xf32> to vector<16xf32>
    %238 = vector.shape_cast %237 : vector<16xf32> to vector<16x1xf32>
    %cst_99 = arith.constant 3.200000e+01 : f32
    %239 = vector.broadcast %cst_99 : f32 to vector<16x1xf32>
    %240 = arith.divf %238, %239 : vector<16x1xf32>
    %241 = vector.broadcast %233 : vector<16x1xf32> to vector<16x32xf32>
    %242 = arith.subf %229, %241 : vector<16x32xf32>
    %cst_100 = arith.constant 9.99999974E-6 : f32
    %243 = vector.broadcast %cst_100 : f32 to vector<16x1xf32>
    %244 = arith.addf %240, %243 : vector<16x1xf32>
    %245 = math.rsqrt %244 : vector<16x1xf32>
    %246 = vector.broadcast %245 : vector<16x1xf32> to vector<16x32xf32>
    %247 = arith.mulf %242, %246 : vector<16x32xf32>
    %248 = vector.broadcast %7 : vector<1x32xf32> to vector<16x32xf32>
    %249 = arith.mulf %247, %248 : vector<16x32xf32>
    %250 = vector.broadcast %8 : vector<1x32xf32> to vector<16x32xf32>
    %251 = arith.addf %249, %250 : vector<16x32xf32>
    %252 = arith.truncf %251 : vector<16x32xf32> to vector<16x32xbf16>
    %c0_101 = arith.constant 0 : index
    %c0_102 = arith.constant 0 : index
    %253 = vector.load %arg16[%c0_101, %c0_102] : memref<32x128xbf16, #tpu.memory_space<vmem>>, vector<32x128xbf16>
    %cst_103 = arith.constant dense<0.000000e+00> : vector<16x128xf32>
    %254 = tpu.matmul %252, %253, %cst_103 {dimension_numbers = #tpu.dot_dimension_numbers<[1], [0], [0], [1], [0, 0, 1, 1], [], []>} : vector<16x32xbf16>, vector<32x128xbf16>, vector<16x128xf32> -> vector<16x128xf32>
    %255 = vector.broadcast %9 : vector<1x128xf32> to vector<16x128xf32>
    %256 = arith.addf %254, %255 : vector<16x128xf32>
    %257 = arith.truncf %256 : vector<16x128xf32> to vector<16x128xbf16>
    %c0_104 = arith.constant 0 : index
    %c0_105 = arith.constant 0 : index
    %258 = vector.load %arg18[%c0_104, %c0_105] : memref<16x128xbf16, #tpu.memory_space<vmem>>, vector<16x128xbf16>
    tpu.vector_store %arg18[%c0_104, %c0_105], %257 {strides = array<i32>} : memref<16x128xbf16, #tpu.memory_space<vmem>>, vector<16x128xbf16>,
    return
  }
  func.func @transform_0(%arg0: i32) -> (i32, i32) {
    %c0_i32 = arith.constant 0 : i32
    %c0_i32_0 = arith.constant 0 : i32
    return %arg0, %c0_i32 : i32, i32
  }
  func.func @transform_1(%arg0: i32) -> (i32, i32) {
    %c0_i32 = arith.constant 0 : i32
    %c0_i32_0 = arith.constant 0 : i32
    %c0_i32_1 = arith.constant 0 : i32
    return %c0_i32, %c0_i32_0 : i32, i32
  }
  func.func @transform_2(%arg0: i32) -> (i32, i32) {
    %c0_i32 = arith.constant 0 : i32
    %c0_i32_0 = arith.constant 0 : i32
    %c0_i32_1 = arith.constant 0 : i32
    return %c0_i32, %c0_i32_0 : i32, i32
  }
  func.func @transform_3(%arg0: i32) -> (i32, i32) {
    %c0_i32 = arith.constant 0 : i32
    %c0_i32_0 = arith.constant 0 : i32
    %c0_i32_1 = arith.constant 0 : i32
    return %c0_i32, %c0_i32_0 : i32, i32
  }
  func.func @transform_4(%arg0: i32) -> (i32, i32) {
    %c0_i32 = arith.constant 0 : i32
    %c0_i32_0 = arith.constant 0 : i32
    %c0_i32_1 = arith.constant 0 : i32
    return %c0_i32, %c0_i32_0 : i32, i32
  }
  func.func @transform_5(%arg0: i32) -> (i32, i32) {
    %c0_i32 = arith.constant 0 : i32
    %c0_i32_0 = arith.constant 0 : i32
    %c0_i32_1 = arith.constant 0 : i32
    return %c0_i32, %c0_i32_0 : i32, i32
  }
  func.func @transform_6(%arg0: i32) -> (i32, i32) {
    %c0_i32 = arith.constant 0 : i32
    %c0_i32_0 = arith.constant 0 : i32
    %c0_i32_1 = arith.constant 0 : i32
    return %c0_i32, %c0_i32_0 : i32, i32
  }
  func.func @transform_7(%arg0: i32) -> (i32, i32) {
    %c0_i32 = arith.constant 0 : i32
    %c0_i32_0 = arith.constant 0 : i32
    %c0_i32_1 = arith.constant 0 : i32
    return %c0_i32, %c0_i32_0 : i32, i32
  }
  func.func @transform_8(%arg0: i32) -> (i32, i32) {
    %c0_i32 = arith.constant 0 : i32
    %c0_i32_0 = arith.constant 0 : i32
    %c0_i32_1 = arith.constant 0 : i32
    return %c0_i32, %c0_i32_0 : i32, i32
  }
  func.func @transform_9(%arg0: i32) -> (i32, i32) {
    %c0_i32 = arith.constant 0 : i32
    %c0_i32_0 = arith.constant 0 : i32
    %c0_i32_1 = arith.constant 0 : i32
    return %c0_i32, %c0_i32_0 : i32, i32
  }
  func.func @transform_10(%arg0: i32) -> (i32, i32) {
    %c0_i32 = arith.constant 0 : i32
    %c0_i32_0 = arith.constant 0 : i32
    %c0_i32_1 = arith.constant 0 : i32
    return %c0_i32, %c0_i32_0 : i32, i32
  }
  func.func @transform_11(%arg0: i32) -> (i32, i32) {
    %c0_i32 = arith.constant 0 : i32
    %c0_i32_0 = arith.constant 0 : i32
    %c0_i32_1 = arith.constant 0 : i32
    return %c0_i32, %c0_i32_0 : i32, i32
  }
  func.func @transform_12(%arg0: i32) -> (i32, i32) {
    %c0_i32 = arith.constant 0 : i32
    %c0_i32_0 = arith.constant 0 : i32
    %c0_i32_1 = arith.constant 0 : i32
    return %c0_i32, %c0_i32_0 : i32, i32
  }
  func.func @transform_13(%arg0: i32) -> (i32, i32) {
    %c0_i32 = arith.constant 0 : i32
    %c0_i32_0 = arith.constant 0 : i32
    %c0_i32_1 = arith.constant 0 : i32
    return %c0_i32, %c0_i32_0 : i32, i32
  }
  func.func @transform_14(%arg0: i32) -> (i32, i32) {
    %c0_i32 = arith.constant 0 : i32
    %c0_i32_0 = arith.constant 0 : i32
    %c0_i32_1 = arith.constant 0 : i32
    return %c0_i32, %c0_i32_0 : i32, i32
  }
  func.func @transform_15(%arg0: i32) -> (i32, i32) {
    %c0_i32 = arith.constant 0 : i32
    %c0_i32_0 = arith.constant 0 : i32
    %c0_i32_1 = arith.constant 0 : i32
    return %c0_i32, %c0_i32_0 : i32, i32
  }
  func.func @transform_16(%arg0: i32) -> (i32, i32) {
    %c0_i32 = arith.constant 0 : i32
    %c0_i32_0 = arith.constant 0 : i32
    %c0_i32_1 = arith.constant 0 : i32
    return %c0_i32, %c0_i32_0 : i32, i32
  }
  func.func @transform_17(%arg0: i32) -> (i32, i32) {
    %c0_i32 = arith.constant 0 : i32
    %c0_i32_0 = arith.constant 0 : i32
    return %arg0, %c0_i32 : i32, i32
  }
}

</mosaic_0001>

<llo_original>
// kernel: tpu_custom_call.1
$region0: #{tpu_custom_call.1}
  #allocation0 [shape = 'u32[]', space=smem, size = 0x4, offset = 0x4, fixed_abs, tag = 'smem constant byte address 0x4 - core index']
  #allocation1 [shape = 'u32[144,128]{1,0:T(1,128)}', space=vmem, size = 0x12000, scoped, tag = 'internal scratch']
  #allocation2 [shape = 'f32[16,32]{1,0:T(8,128)}', space=vmem, size = 0x2000, scoped, tag = 'scratch operand']
  %s0 = inlined_call_operand.hbm [shape: bf16[16,16], index: 0, kind: input, shape index: {}]
  %s1 = inlined_call_operand.hbm [shape: bf16[16,32], index: 1, kind: input, shape index: {}]
  %s2 = inlined_call_operand.vmem [shape: f32[1,32], index: 2, kind: input, shape index: {}]
  %s3 = inlined_call_operand.vmem [shape: bf16[32,96], index: 3, kind: input, shape index: {}]
  %s4 = inlined_call_operand.vmem [shape: f32[1,96], index: 4, kind: input, shape index: {}]
  %s5 = inlined_call_operand.vmem [shape: bf16[32,32], index: 5, kind: input, shape index: {}]
  %s6 = inlined_call_operand.hbm [shape: f32[1,32], index: 6, kind: input, shape index: {}]
  %s7 = inlined_call_operand.hbm [shape: f32[1,32], index: 7, kind: input, shape index: {}]
  %s8 = inlined_call_operand.hbm [shape: f32[1,32], index: 8, kind: input, shape index: {}]
  %s9 = inlined_call_operand.vmem [shape: bf16[32,64], index: 9, kind: input, shape index: {}]
  %s10 = inlined_call_operand.vmem [shape: f32[1,64], index: 10, kind: input, shape index: {}]
  %s11 = inlined_call_operand.vmem [shape: bf16[64,32], index: 11, kind: input, shape index: {}]
  %s12 = inlined_call_operand.vmem [shape: f32[1,32], index: 12, kind: input, shape index: {}]
  %s13 = inlined_call_operand.vmem [shape: f32[1,32], index: 13, kind: input, shape index: {}]
  %s14 = inlined_call_operand.vmem [shape: f32[1,32], index: 14, kind: input, shape index: {}]
  %s15 = inlined_call_operand.vmem [shape: bf16[32,128], index: 15, kind: input, shape index: {}]
  %s16 = inlined_call_operand.vmem [shape: f32[1,128], index: 16, kind: input, shape index: {}]
  %s17 = inlined_call_operand.hbm [shape: bf16[16,128], index: 17, kind: output, shape index: {}]
  %s18 = sld [smem:[#allocation0]]
  $region98: #{tpu_custom_call.1} parent=0
    _
  %s20 = ssub.s32 1, %s18
  %s21 = scalar_select 0, %s20, %s18
  $region1: #{tpu_custom_call.1} parent=0
    #allocation3 [shape = 'u8[4096]{0}', space=vmem, size = 0x1000, scoped, tag = 'input window, operand 0, single buffered']
    #allocation4 [shape = 's32[1]{0}', space=sflag, size = 0x4, scoped, tag = 'scoped memory for tpu_custom_call.1']
    #allocation5 [shape = 's32[1]{0}', space=sflag, size = 0x4, scoped, tag = 'scoped memory for tpu_custom_call.1']
    #allocation6 [shape = 'u8[4096]{0}', space=vmem, size = 0x1000, scoped, tag = 'input window, operand 1, single buffered']
    #allocation7 [shape = 's32[1]{0}', space=sflag, size = 0x4, scoped, tag = 'scoped memory for tpu_custom_call.1']
    #allocation8 [shape = 'u8[512]{0}', space=vmem, size = 0x400, scoped, tag = 'input window, operand 6, single buffered']
    #allocation9 [shape = 'u8[512]{0}', space=vmem, size = 0x400, scoped, tag = 'input window, operand 7, single buffered']
    #allocation10 [shape = 's32[1]{0}', space=sflag, size = 0x4, scoped, tag = 'scoped memory for tpu_custom_call.1']
    #allocation11 [shape = 'u8[512]{0}', space=vmem, size = 0x400, scoped, tag = 'input window, operand 8, single buffered']
    #allocation12 [shape = 'u8[4096]{0}', space=vmem, size = 0x1000, scoped, tag = 'output window, operand 0, single buffered']
    %22 = vsyncpa [#allocation4], 0
    %23 = vsyncpa [#allocation7], 0
    %24 = vsyncpa [#allocation10], 0
    %25 = vsyncpa [#allocation5], 0
    // Predicated region
    $region2: #{tpu_custom_call.1} parent=1 // pred_check
      _
    $region3: #{tpu_custom_call.1} parent=1 // pred_check_branch
      %27 = sbr.rel (0) target = $region5
    $region4: #{tpu_custom_call.1} parent=1 // pred_region
      %s29 = ssub.s32 128, 128
      %30 = vsyncadd [#allocation4], %s29
      %s31 = sshll.u32 [#allocation3], 4
      %s32 = int_to_ptr.vmem [resolvable:$true] %s31
      %37 = dma.hbm_to_vmem [thread:$0]  %s0, 128, %s32, [#allocation4], 64, 64, 4
    $region5: #{tpu_custom_call.1} parent=1 // pred_fallthru
      _
    // Predicated region
    $region6: #{tpu_custom_call.1} parent=1 // pred_check
      _
    $region7: #{tpu_custom_call.1} parent=1 // pred_check_branch
      %39 = sbr.rel (0) target = $region9
    $region8: #{tpu_custom_call.1} parent=1 // pred_region
      %s41 = ssub.s32 128, 128
      %42 = vsyncadd [#allocation7], %s41
      %s43 = sshll.u32 [#allocation6], 4
      %s44 = int_to_ptr.vmem [resolvable:$true] %s43
      %49 = dma.hbm_to_vmem [thread:$0]  %s1, 128, %s44, [#allocation7], 64, 64, 4
    $region9: #{tpu_custom_call.1} parent=1 // pred_fallthru
      _
    // Predicated region
    $region10: #{tpu_custom_call.1} parent=1 // pred_check
      _
    $region11: #{tpu_custom_call.1} parent=1 // pred_check_branch
      %51 = sbr.rel (0) target = $region13
    $region12: #{tpu_custom_call.1} parent=1 // pred_region
      _
    $region13: #{tpu_custom_call.1} parent=1 // pred_fallthru
      _
    // Predicated region
    $region14: #{tpu_custom_call.1} parent=1 // pred_check
      _
    $region15: #{tpu_custom_call.1} parent=1 // pred_check_branch
      %53 = sbr.rel (0) target = $region17
    $region16: #{tpu_custom_call.1} parent=1 // pred_region
      _
    $region17: #{tpu_custom_call.1} parent=1 // pred_fallthru
      _
    // Predicated region
    $region18: #{tpu_custom_call.1} parent=1 // pred_check
      _
    $region19: #{tpu_custom_call.1} parent=1 // pred_check_branch
      %55 = sbr.rel (0) target = $region21
    $region20: #{tpu_custom_call.1} parent=1 // pred_region
      _
    $region21: #{tpu_custom_call.1} parent=1 // pred_fallthru
      _
    // Predicated region
    $region22: #{tpu_custom_call.1} parent=1 // pred_check
      _
    $region23: #{tpu_custom_call.1} parent=1 // pred_check_branch
      %57 = sbr.rel (0) target = $region25
    $region24: #{tpu_custom_call.1} parent=1 // pred_region
      _
    $region25: #{tpu_custom_call.1} parent=1 // pred_fallthru
      _
    // Predicated region
    $region26: #{tpu_custom_call.1} parent=1 // pred_check
      _
    $region27: #{tpu_custom_call.1} parent=1 // pred_check_branch
      %59 = sbr.rel (0) target = $region29
    $region28: #{tpu_custom_call.1} parent=1 // pred_region
      %s61 = ssub.s32 16, 16
      %62 = vsyncadd [#allocation7], %s61
      %s64 = sshll.u32 [#allocation8], 4
      %s65 = int_to_ptr.vmem [resolvable:$true] %s64
      %67 = dma.hbm_to_vmem [thread:$0]  %s6, 16, %s65, [#allocation7]
    $region29: #{tpu_custom_call.1} parent=1 // pred_fallthru
      _
    // Predicated region
    $region30: #{tpu_custom_call.1} parent=1 // pred_check
      _
    $region31: #{tpu_custom_call.1} parent=1 // pred_check_branch
      %69 = sbr.rel (0) target = $region33
    $region32: #{tpu_custom_call.1} parent=1 // pred_region
      %s71 = ssub.s32 16, 16
      %72 = vsyncadd [#allocation10], %s71
      %s74 = sshll.u32 [#allocation9], 4
      %s75 = int_to_ptr.vmem [resolvable:$true] %s74
      %77 = dma.hbm_to_vmem [thread:$0]  %s7, 16, %s75, [#allocation10]
    $region33: #{tpu_custom_call.1} parent=1 // pred_fallthru
      _
    // Predicated region
    $region34: #{tpu_custom_call.1} parent=1 // pred_check
      _
    $region35: #{tpu_custom_call.1} parent=1 // pred_check_branch
      %79 = sbr.rel (0) target = $region37
    $region36: #{tpu_custom_call.1} parent=1 // pred_region
      %s81 = ssub.s32 16, 16
      %82 = vsyncadd [#allocation10], %s81
      %s84 = sshll.u32 [#allocation11], 4
      %s85 = int_to_ptr.vmem [resolvable:$true] %s84
      %87 = dma.hbm_to_vmem [thread:$0]  %s8, 16, %s85, [#allocation10]
    $region37: #{tpu_custom_call.1} parent=1 // pred_fallthru
      _
    // Predicated region
    $region38: #{tpu_custom_call.1} parent=1 // pred_check
      _
    $region39: #{tpu_custom_call.1} parent=1 // pred_check_branch
      %89 = sbr.rel (0) target = $region41
    $region40: #{tpu_custom_call.1} parent=1 // pred_region
      _
    $region41: #{tpu_custom_call.1} parent=1 // pred_fallthru
      _
    // Predicated region
    $region42: #{tpu_custom_call.1} parent=1 // pred_check
      _
    $region43: #{tpu_custom_call.1} parent=1 // pred_check_branch
      %91 = sbr.rel (0) target = $region45
    $region44: #{tpu_custom_call.1} parent=1 // pred_region
      _
    $region45: #{tpu_custom_call.1} parent=1 // pred_fallthru
      _
    // Predicated region
    $region46: #{tpu_custom_call.1} parent=1 // pred_check
      _
    $region47: #{tpu_custom_call.1} parent=1 // pred_check_branch
      %93 = sbr.rel (0) target = $region49
    $region48: #{tpu_custom_call.1} parent=1 // pred_region
      _
    $region49: #{tpu_custom_call.1} parent=1 // pred_fallthru
      _
    // Predicated region
    $region50: #{tpu_custom_call.1} parent=1 // pred_check
      _
    $region51: #{tpu_custom_call.1} parent=1 // pred_check_branch
      %95 = sbr.rel (0) target = $region53
    $region52: #{tpu_custom_call.1} parent=1 // pred_region
      _
    $region53: #{tpu_custom_call.1} parent=1 // pred_fallthru
      _
    // Predicated region
    $region54: #{tpu_custom_call.1} parent=1 // pred_check
      _
    $region55: #{tpu_custom_call.1} parent=1 // pred_check_branch
      %97 = sbr.rel (0) target = $region57
    $region56: #{tpu_custom_call.1} parent=1 // pred_region
      _
    $region57: #{tpu_custom_call.1} parent=1 // pred_fallthru
      _
    // Predicated region
    $region58: #{tpu_custom_call.1} parent=1 // pred_check
      _
    $region59: #{tpu_custom_call.1} parent=1 // pred_check_branch
      %99 = sbr.rel (0) target = $region61
    $region60: #{tpu_custom_call.1} parent=1 // pred_region
      _
    $region61: #{tpu_custom_call.1} parent=1 // pred_fallthru
      _
    // Predicated region
    $region62: #{tpu_custom_call.1} parent=1 // pred_check
      _
    $region63: #{tpu_custom_call.1} parent=1 // pred_check_branch
      %101 = sbr.rel (0) target = $region65
    $region64: #{tpu_custom_call.1} parent=1 // pred_region
      _
    $region65: #{tpu_custom_call.1} parent=1 // pred_fallthru
      _
    // Predicated region
    $region66: #{tpu_custom_call.1} parent=1 // pred_check
      _
    $region67: #{tpu_custom_call.1} parent=1 // pred_check_branch
      %103 = sbr.rel (0) target = $region69
    $region68: #{tpu_custom_call.1} parent=1 // pred_region
      _
    $region69: #{tpu_custom_call.1} parent=1 // pred_fallthru
      _
    // Predicated region
    $region70: #{tpu_custom_call.1} parent=1 // pred_check
      _
    $region71: #{tpu_custom_call.1} parent=1 // pred_check_branch
      %105 = sbr.rel (0) target = $region73
    $region72: #{tpu_custom_call.1} parent=1 // pred_region
      %106 = dma.done [#allocation4], 128
    $region73: #{tpu_custom_call.1} parent=1 // pred_fallthru
      _
    // Predicated region
    $region74: #{tpu_custom_call.1} parent=1 // pred_check
      _
    $region75: #{tpu_custom_call.1} parent=1 // pred_check_branch
      %108 = sbr.rel (0) target = $region77
    $region76: #{tpu_custom_call.1} parent=1 // pred_region
      %109 = dma.done [#allocation7], 128
    $region77: #{tpu_custom_call.1} parent=1 // pred_fallthru
      _
    // Predicated region
    $region78: #{tpu_custom_call.1} parent=1 // pred_check
      _
    $region79: #{tpu_custom_call.1} parent=1 // pred_check_branch
      %111 = sbr.rel (0) target = $region81
    $region80: #{tpu_custom_call.1} parent=1 // pred_region
      %112 = dma.done [#allocation7], 16
    $region81: #{tpu_custom_call.1} parent=1 // pred_fallthru
      _
    // Predicated region
    $region82: #{tpu_custom_call.1} parent=1 // pred_check
      _
    $region83: #{tpu_custom_call.1} parent=1 // pred_check_branch
      %114 = sbr.rel (0) target = $region85
    $region84: #{tpu_custom_call.1} parent=1 // pred_region
      %115 = dma.done [#allocation10], 16
    $region85: #{tpu_custom_call.1} parent=1 // pred_fallthru
      _
    // Predicated region
    $region86: #{tpu_custom_call.1} parent=1 // pred_check
      _
    $region87: #{tpu_custom_call.1} parent=1 // pred_check_branch
      %117 = sbr.rel (0) target = $region89
    $region88: #{tpu_custom_call.1} parent=1 // pred_region
      %118 = dma.done [#allocation10], 16
    $region89: #{tpu_custom_call.1} parent=1 // pred_fallthru
      _
    %v120 = vld [vmem:[%s2] sm:$0x1]
    %v121 = vld [vmem:[%s4] sm:$0x1]
    %v122 = vld [vmem:[#allocation8] sm:$0x1]
    %v123 = vld [vmem:[#allocation9] sm:$0x1]
    %v124 = vld [vmem:[#allocation11] sm:$0x1]
    %v125 = vld [vmem:[%s10] sm:$0x1]
    %v126 = vld [vmem:[%s12] sm:$0x1]
    %v127 = vld [vmem:[%s13] sm:$0x1]
    %v128 = vld [vmem:[%s14] sm:$0x1]
    %v129 = vld [vmem:[%s16] sm:$0x1]
    %v130 = vld [vmem:[#allocation3] sm:$0xf]
    %v131 = vld [vmem:[#allocation3 + $0x4] sm:$0xf]
    %v132 = vld [vmem:[#allocation6] sm:$0xf]
    %v133 = vld [vmem:[#allocation6 + $0x4] sm:$0xf]
    %v135 = vlaneseq
    %v136 = vshrl.u32 %v135, 7
    %v137 = vsub.s32 0, %v136
    %v138 = vrot.slane %v120, %v137
    %v142 = vunpack.c.l.b16 %v130
    %v143 = vunpack.c.l.b16 %v131
    %v144 = vpack.c.b16 %v143, %v142
    %v147 = vunpack.c.l.b16 %v132
    %v148 = vunpack.c.l.b16 %v133
    %v149 = vpack.c.b16 %v148, %v147
    %vm151 = vcmask 130048
    %v153 = vsel %vm151, %v144, 0
    %155 = vmatprep.subr.bf16.mxu0 0
    %156 = vmatpush1.bf16.msra.mxu0 %v149
    %157 = vmatprep.subr.bf16.mxu0 0
    %158 = vmatpush1.bf16.msra.mxu0 0
    %159 = vmatprep.subr.bf16.mxu0 0
    %160 = vmatpush1.bf16.msra.mxu0 0
    %161 = vmatprep.subr.bf16.mxu0 0
    %162 = vmatpush1.bf16.msra.mxu0 0
    %163 = vmatprep.subr.bf16.mxu0 0
    %164 = vmatpush1.bf16.msra.mxu0 0
    %165 = vmatprep.subr.bf16.mxu0 0
    %166 = vmatpush1.bf16.msra.mxu0 0
    %167 = vmatprep.subr.bf16.mxu0 0
    %168 = vmatpush1.bf16.msra.mxu0 0
    %169 = vmatprep.subr.bf16.mxu0 0
    %170 = vmatpush1.bf16.msra.mxu0 0
    %171 = vmatprep.subr.bf16.mxu0 0
    %172 = vmatpush1.bf16.msra.mxu0 0
    %173 = vmatprep.subr.bf16.mxu0 0
    %174 = vmatpush1.bf16.msra.mxu0 0
    %175 = vmatprep.subr.bf16.mxu0 0
    %176 = vmatpush1.bf16.msra.mxu0 0
    %177 = vmatprep.subr.bf16.mxu0 0
    %178 = vmatpush1.bf16.msra.mxu0 0
    %179 = vmatprep.subr.bf16.mxu0 0
    %180 = vmatpush1.bf16.msra.mxu0 0
    %181 = vmatprep.subr.bf16.mxu0 0
    %182 = vmatpush1.bf16.msra.mxu0 0
    %183 = vmatprep.subr.bf16.mxu0 0
    %184 = vmatpush1.bf16.msra.mxu0 0
    %185 = vmatprep.subr.bf16.mxu0 0
    %186 = vmatpush1.bf16.msra.mxu0 0
    %187 = vmatprep.mubr.bf16.mxu0 0
    %188 = vmatmul.mubr.bf16.gmra.mrb[0].mxu0 %v153
    %v189 = vpop.f32.mrb[0].mxu0
    %v190 = vadd.f32 %v138, %v189
    %v191 = vpop.f32.mrb[0].mxu0
    %v192 = vpop.f32.mrb[0].mxu0
    %v193 = vadd.f32 %v138, %v192
    %v194 = vpop.f32.mrb[0].mxu0
    %195 = vdwg.mxu0
    %v196 = vpack.c.bf16 %v193, %v190
    %v197 = vld [vmem:[%s3] sm:$0xf]
    %v198 = vld [vmem:[%s3 + $0x4] sm:$0xf]
    %v199 = vld [vmem:[%s3 + $0x8] sm:$0xf]
    %v200 = vld [vmem:[%s3 + $0xc] sm:$0xf]
    %v202 = vlaneseq
    %v203 = vshrl.u32 %v202, 7
    %v204 = vsub.s32 0, %v203
    %v205 = vrot.slane %v121, %v204
    %v211 = vunpack.c.l.b16 %v197
    %v212 = vunpack.c.l.b16 %v198
    %v213 = vunpack.c.l.b16 %v199
    %v214 = vunpack.c.l.b16 %v200
    %v215 = vpack.c.b16 %v212, %v211
    %v216 = vpack.c.b16 %v214, %v213
    %vm219 = vcmask 261120
    %v221 = vsel %vm219, %v196, 0
    %223 = vmatprep.subr.bf16.mxu0 0
    %224 = vmatpush1.bf16.msra.mxu0 %v215
    %225 = vmatprep.subr.bf16.mxu0 0
    %226 = vmatpush1.bf16.msra.mxu0 %v216
    %227 = vmatprep.subr.bf16.mxu0 0
    %228 = vmatpush1.bf16.msra.mxu0 0
    %229 = vmatprep.subr.bf16.mxu0 0
    %230 = vmatpush1.bf16.msra.mxu0 0
    %231 = vmatprep.subr.bf16.mxu0 0
    %232 = vmatpush1.bf16.msra.mxu0 0
    %233 = vmatprep.subr.bf16.mxu0 0
    %234 = vmatpush1.bf16.msra.mxu0 0
    %235 = vmatprep.subr.bf16.mxu0 0
    %236 = vmatpush1.bf16.msra.mxu0 0
    %237 = vmatprep.subr.bf16.mxu0 0
    %238 = vmatpush1.bf16.msra.mxu0 0
    %239 = vmatprep.subr.bf16.mxu0 0
    %240 = vmatpush1.bf16.msra.mxu0 0
    %241 = vmatprep.subr.bf16.mxu0 0
    %242 = vmatpush1.bf16.msra.mxu0 0
    %243 = vmatprep.subr.bf16.mxu0 0
    %244 = vmatpush1.bf16.msra.mxu0 0
    %245 = vmatprep.subr.bf16.mxu0 0
    %246 = vmatpush1.bf16.msra.mxu0 0
    %247 = vmatprep.subr.bf16.mxu0 0
    %248 = vmatpush1.bf16.msra.mxu0 0
    %249 = vmatprep.subr.bf16.mxu0 0
    %250 = vmatpush1.bf16.msra.mxu0 0
    %251 = vmatprep.subr.bf16.mxu0 0
    %252 = vmatpush1.bf16.msra.mxu0 0
    %253 = vmatprep.subr.bf16.mxu0 0
    %254 = vmatpush1.bf16.msra.mxu0 0
    %255 = vmatprep.mubr.bf16.mxu0 0
    %256 = vmatmul.mubr.bf16.gmra.mrb[0].mxu0 %v221
    %v257 = vpop.f32.mrb[0].mxu0
    %v258 = vadd.f32 %v205, %v257
    %v259 = vpop.f32.mrb[0].mxu0
    %v260 = vpop.f32.mrb[0].mxu0
    %v261 = vadd.f32 %v205, %v260
    %v262 = vpop.f32.mrb[0].mxu0
    %263 = vdwg.mxu0
    %v264 = vpack.c.bf16 %v258, %v258
    %266 = vrot.lane.b32.xlu0 %v264, 96
    %v267 = vpop.permute.xlu0 %266
    %vm268 = vcmask 64512
    %v270 = vsel %vm268, %v264, 0
    %v273 = vsel %vm268, %v267, 0
    %275 = vmatprep.subr.bf16.mxu0 0
    %276 = vmatpush1.bf16.xpose.msra.mxu0 %v273
    %277 = vmatprep.subr.bf16.mxu0 0
    %278 = vmatpush1.bf16.xpose.msra.mxu0 0
    %279 = vmatprep.subr.bf16.mxu0 0
    %280 = vmatpush1.bf16.xpose.msra.mxu0 0
    %281 = vmatprep.subr.bf16.mxu0 0
    %282 = vmatpush1.bf16.xpose.msra.mxu0 0
    %283 = vmatprep.subr.bf16.mxu0 0
    %284 = vmatpush1.bf16.xpose.msra.mxu0 0
    %285 = vmatprep.subr.bf16.mxu0 0
    %286 = vmatpush1.bf16.xpose.msra.mxu0 0
    %287 = vmatprep.subr.bf16.mxu0 0
    %288 = vmatpush1.bf16.xpose.msra.mxu0 0
    %289 = vmatprep.subr.bf16.mxu0 0
    %290 = vmatpush1.bf16.xpose.msra.mxu0 0
    %291 = vmatprep.subr.bf16.mxu0 0
    %292 = vmatpush1.bf16.xpose.msra.mxu0 0
    %293 = vmatprep.subr.bf16.mxu0 0
    %294 = vmatpush1.bf16.xpose.msra.mxu0 0
    %295 = vmatprep.subr.bf16.mxu0 0
    %296 = vmatpush1.bf16.xpose.msra.mxu0 0
    %297 = vmatprep.subr.bf16.mxu0 0
    %298 = vmatpush1.bf16.xpose.msra.mxu0 0
    %299 = vmatprep.subr.bf16.mxu0 0
    %300 = vmatpush1.bf16.xpose.msra.mxu0 0
    %301 = vmatprep.subr.bf16.mxu0 0
    %302 = vmatpush1.bf16.xpose.msra.mxu0 0
    %303 = vmatprep.subr.bf16.mxu0 0
    %304 = vmatpush1.bf16.xpose.msra.mxu0 0
    %305 = vmatprep.subr.bf16.mxu0 0
    %306 = vmatpush1.bf16.xpose.msra.mxu0 0
    %307 = vmatprep.mubr.bf16.mxu0 0
    %308 = vmatmul.mubr.bf16.gmra.mrb[0].mxu0 %v270
    %v309 = vpop.f32.mrb[0].mxu0
    %v310 = vadd.f32 0.0, %v309
    %v311 = vpop.f32.mrb[0].mxu0
    %v312 = vpop.f32.mrb[0].mxu0
    %v313 = vpop.f32.mrb[0].mxu0
    %314 = vdwg.mxu0
    %v315 = vmul.f32 %v310, 0.35355338
    %v316 = vsel %vm268, %v315, -inf
    %317 = vmax.xlane.f32.xlu0 %v316
    %v318 = vpop.xlane.xlu0 %317
    %v319 = vsub.f32 %v315, %v318
    %v320 = vmul.f32 %v319, 1.442695
    %v321 = vpow.pop %v320
    %v322 = vsel %vm268, %v321, 0.0
    %323 = vadd.xlane.f32.xlu0 %v322
    %v324 = vpop.xlane.xlu0 %323
    %v325 = vrcp.pop %v324
    %v326 = vmul.f32 %v321, %v325
    %v327 = vpack.c.bf16 %v326, %v326
    %328 = vrot.lane.b32.xlu0 %v264, 64
    %v329 = vpop.permute.xlu0 %328
    %v331 = vsel %vm268, %v327, 0
    %vm333 = vcmask 1043456
    %v335 = vsel %vm333, %v329, 0
    %337 = vmatprep.subr.bf16.mxu0 0
    %338 = vmatpush1.bf16.msra.mxu0 %v335
    %339 = vmatprep.subr.bf16.mxu0 0
    %340 = vmatpush1.bf16.msra.mxu0 0
    %341 = vmatprep.subr.bf16.mxu0 0
    %342 = vmatpush1.bf16.msra.mxu0 0
    %343 = vmatprep.subr.bf16.mxu0 0
    %344 = vmatpush1.bf16.msra.mxu0 0
    %345 = vmatprep.subr.bf16.mxu0 0
    %346 = vmatpush1.bf16.msra.mxu0 0
    %347 = vmatprep.subr.bf16.mxu0 0
    %348 = vmatpush1.bf16.msra.mxu0 0
    %349 = vmatprep.subr.bf16.mxu0 0
    %350 = vmatpush1.bf16.msra.mxu0 0
    %351 = vmatprep.subr.bf16.mxu0 0
    %352 = vmatpush1.bf16.msra.mxu0 0
    %353 = vmatprep.subr.bf16.mxu0 0
    %354 = vmatpush1.bf16.msra.mxu0 0
    %355 = vmatprep.subr.bf16.mxu0 0
    %356 = vmatpush1.bf16.msra.mxu0 0
    %357 = vmatprep.subr.bf16.mxu0 0
    %358 = vmatpush1.bf16.msra.mxu0 0
    %359 = vmatprep.subr.bf16.mxu0 0
    %360 = vmatpush1.bf16.msra.mxu0 0
    %361 = vmatprep.subr.bf16.mxu0 0
    %362 = vmatpush1.bf16.msra.mxu0 0
    %363 = vmatprep.subr.bf16.mxu0 0
    %364 = vmatpush1.bf16.msra.mxu0 0
    %365 = vmatprep.subr.bf16.mxu0 0
    %366 = vmatpush1.bf16.msra.mxu0 0
    %367 = vmatprep.subr.bf16.mxu0 0
    %368 = vmatpush1.bf16.msra.mxu0 0
    %369 = vmatprep.mubr.bf16.mxu0 0
    %370 = vmatmul.mubr.bf16.gmra.mrb[0].mxu0 %v331
    %v371 = vpop.f32.mrb[0].mxu0
    %v372 = vadd.f32 0.0, %v371
    %v373 = vpop.f32.mrb[0].mxu0
    %v374 = vpop.f32.mrb[0].mxu0
    %v375 = vpop.f32.mrb[0].mxu0
    %376 = vdwg.mxu0
    %377 = vst.msk [vmem:[#allocation2] sm:$0xff] %vm268, %v372
    %378 = vrot.lane.b32.xlu0 %v264, 120
    %v379 = vpop.permute.xlu0 %378
    %380 = vrot.lane.b32.xlu0 %v264, 88
    %v381 = vpop.permute.xlu0 %380
    %v383 = vsel %vm268, %v379, 0
    %v386 = vsel %vm268, %v381, 0
    %388 = vmatprep.subr.bf16.mxu0 0
    %389 = vmatpush1.bf16.xpose.msra.mxu0 %v386
    %390 = vmatprep.subr.bf16.mxu0 0
    %391 = vmatpush1.bf16.xpose.msra.mxu0 0
    %392 = vmatprep.subr.bf16.mxu0 0
    %393 = vmatpush1.bf16.xpose.msra.mxu0 0
    %394 = vmatprep.subr.bf16.mxu0 0
    %395 = vmatpush1.bf16.xpose.msra.mxu0 0
    %396 = vmatprep.subr.bf16.mxu0 0
    %397 = vmatpush1.bf16.xpose.msra.mxu0 0
    %398 = vmatprep.subr.bf16.mxu0 0
    %399 = vmatpush1.bf16.xpose.msra.mxu0 0
    %400 = vmatprep.subr.bf16.mxu0 0
    %401 = vmatpush1.bf16.xpose.msra.mxu0 0
    %402 = vmatprep.subr.bf16.mxu0 0
    %403 = vmatpush1.bf16.xpose.msra.mxu0 0
    %404 = vmatprep.subr.bf16.mxu0 0
    %405 = vmatpush1.bf16.xpose.msra.mxu0 0
    %406 = vmatprep.subr.bf16.mxu0 0
    %407 = vmatpush1.bf16.xpose.msra.mxu0 0
    %408 = vmatprep.subr.bf16.mxu0 0
    %409 = vmatpush1.bf16.xpose.msra.mxu0 0
    %410 = vmatprep.subr.bf16.mxu0 0
    %411 = vmatpush1.bf16.xpose.msra.mxu0 0
    %412 = vmatprep.subr.bf16.mxu0 0
    %413 = vmatpush1.bf16.xpose.msra.mxu0 0
    %414 = vmatprep.subr.bf16.mxu0 0
    %415 = vmatpush1.bf16.xpose.msra.mxu0 0
    %416 = vmatprep.subr.bf16.mxu0 0
    %417 = vmatpush1.bf16.xpose.msra.mxu0 0
    %418 = vmatprep.subr.bf16.mxu0 0
    %419 = vmatpush1.bf16.xpose.msra.mxu0 0
    %420 = vmatprep.mubr.bf16.mxu0 0
    %421 = vmatmul.mubr.bf16.gmra.mrb[0].mxu0 %v383
    %v422 = vpop.f32.mrb[0].mxu0
    %v423 = vadd.f32 0.0, %v422
    %v424 = vpop.f32.mrb[0].mxu0
    %v425 = vpop.f32.mrb[0].mxu0
    %v426 = vpop.f32.mrb[0].mxu0
    %427 = vdwg.mxu0
    %v428 = vmul.f32 %v423, 0.35355338
    %v429 = vsel %vm268, %v428, -inf
    %430 = vmax.xlane.f32.xlu0 %v429
    %v431 = vpop.xlane.xlu0 %430
    %v432 = vsub.f32 %v428, %v431
    %v433 = vmul.f32 %v432, 1.442695
    %v434 = vpow.pop %v433
    %v435 = vsel %vm268, %v434, 0.0
    %436 = vadd.xlane.f32.xlu0 %v435
    %v437 = vpop.xlane.xlu0 %436
    %v438 = vrcp.pop %v437
    %v439 = vmul.f32 %v434, %v438
    %v440 = vpack.c.bf16 %v439, %v439
    %441 = vrot.lane.b32.xlu0 %v264, 56
    %v442 = vpop.permute.xlu0 %441
    %v444 = vsel %vm268, %v440, 0
    %v447 = vsel %vm333, %v442, 0
    %449 = vmatprep.subr.bf16.mxu0 0
    %450 = vmatpush1.bf16.msra.mxu0 %v447
    %451 = vmatprep.subr.bf16.mxu0 0
    %452 = vmatpush1.bf16.msra.mxu0 0
    %453 = vmatprep.subr.bf16.mxu0 0
    %454 = vmatpush1.bf16.msra.mxu0 0
    %455 = vmatprep.subr.bf16.mxu0 0
    %456 = vmatpush1.bf16.msra.mxu0 0
    %457 = vmatprep.subr.bf16.mxu0 0
    %458 = vmatpush1.bf16.msra.mxu0 0
    %459 = vmatprep.subr.bf16.mxu0 0
    %460 = vmatpush1.bf16.msra.mxu0 0
    %461 = vmatprep.subr.bf16.mxu0 0
    %462 = vmatpush1.bf16.msra.mxu0 0
    %463 = vmatprep.subr.bf16.mxu0 0
    %464 = vmatpush1.bf16.msra.mxu0 0
    %465 = vmatprep.subr.bf16.mxu0 0
    %466 = vmatpush1.bf16.msra.mxu0 0
    %467 = vmatprep.subr.bf16.mxu0 0
    %468 = vmatpush1.bf16.msra.mxu0 0
    %469 = vmatprep.subr.bf16.mxu0 0
    %470 = vmatpush1.bf16.msra.mxu0 0
    %471 = vmatprep.subr.bf16.mxu0 0
    %472 = vmatpush1.bf16.msra.mxu0 0
    %473 = vmatprep.subr.bf16.mxu0 0
    %474 = vmatpush1.bf16.msra.mxu0 0
    %475 = vmatprep.subr.bf16.mxu0 0
    %476 = vmatpush1.bf16.msra.mxu0 0
    %477 = vmatprep.subr.bf16.mxu0 0
    %478 = vmatpush1.bf16.msra.mxu0 0
    %479 = vmatprep.subr.bf16.mxu0 0
    %480 = vmatpush1.bf16.msra.mxu0 0
    %481 = vmatprep.mubr.bf16.mxu0 0
    %482 = vmatmul.mubr.bf16.gmra.mrb[0].mxu0 %v444
    %v483 = vpop.f32.mrb[0].mxu0
    %v484 = vadd.f32 0.0, %v483
    %v485 = vpop.f32.mrb[0].mxu0
    %v486 = vpop.f32.mrb[0].mxu0
    %v487 = vpop.f32.mrb[0].mxu0
    %488 = vdwg.mxu0
    %490 = vrot.lane.b32.xlu0 %v484, 8
    %v491 = vpop.permute.xlu0 %490
    %vm493 = vcmask 130112
    %494 = vst.msk [vmem:[#allocation2] sm:$0xff] %vm493, %v491
    %495 = vrot.lane.b32.xlu0 %v264, 112
    %v496 = vpop.permute.xlu0 %495
    %497 = vrot.lane.b32.xlu0 %v264, 80
    %v498 = vpop.permute.xlu0 %497
    %v500 = vsel %vm268, %v496, 0
    %v503 = vsel %vm268, %v498, 0
    %505 = vmatprep.subr.bf16.mxu0 0
    %506 = vmatpush1.bf16.xpose.msra.mxu0 %v503
    %507 = vmatprep.subr.bf16.mxu0 0
    %508 = vmatpush1.bf16.xpose.msra.mxu0 0
    %509 = vmatprep.subr.bf16.mxu0 0
    %510 = vmatpush1.bf16.xpose.msra.mxu0 0
    %511 = vmatprep.subr.bf16.mxu0 0
    %512 = vmatpush1.bf16.xpose.msra.mxu0 0
    %513 = vmatprep.subr.bf16.mxu0 0
    %514 = vmatpush1.bf16.xpose.msra.mxu0 0
    %515 = vmatprep.subr.bf16.mxu0 0
    %516 = vmatpush1.bf16.xpose.msra.mxu0 0
    %517 = vmatprep.subr.bf16.mxu0 0
    %518 = vmatpush1.bf16.xpose.msra.mxu0 0
    %519 = vmatprep.subr.bf16.mxu0 0
    %520 = vmatpush1.bf16.xpose.msra.mxu0 0
    %521 = vmatprep.subr.bf16.mxu0 0
    %522 = vmatpush1.bf16.xpose.msra.mxu0 0
    %523 = vmatprep.subr.bf16.mxu0 0
    %524 = vmatpush1.bf16.xpose.msra.mxu0 0
    %525 = vmatprep.subr.bf16.mxu0 0
    %526 = vmatpush1.bf16.xpose.msra.mxu0 0
    %527 = vmatprep.subr.bf16.mxu0 0
    %528 = vmatpush1.bf16.xpose.msra.mxu0 0
    %529 = vmatprep.subr.bf16.mxu0 0
    %530 = vmatpush1.bf16.xpose.msra.mxu0 0
    %531 = vmatprep.subr.bf16.mxu0 0
    %532 = vmatpush1.bf16.xpose.msra.mxu0 0
    %533 = vmatprep.subr.bf16.mxu0 0
    %534 = vmatpush1.bf16.xpose.msra.mxu0 0
    %535 = vmatprep.subr.bf16.mxu0 0
    %536 = vmatpush1.bf16.xpose.msra.mxu0 0
    %537 = vmatprep.mubr.bf16.mxu0 0
    %538 = vmatmul.mubr.bf16.gmra.mrb[0].mxu0 %v500
    %v539 = vpop.f32.mrb[0].mxu0
    %v540 = vadd.f32 0.0, %v539
    %v541 = vpop.f32.mrb[0].mxu0
    %v542 = vpop.f32.mrb[0].mxu0
    %v543 = vpop.f32.mrb[0].mxu0
    %544 = vdwg.mxu0
    %v545 = vmul.f32 %v540, 0.35355338
    %v546 = vsel %vm268, %v545, -inf
    %547 = vmax.xlane.f32.xlu0 %v546
    %v548 = vpop.xlane.xlu0 %547
    %v549 = vsub.f32 %v545, %v548
    %v550 = vmul.f32 %v549, 1.442695
    %v551 = vpow.pop %v550
    %v552 = vsel %vm268, %v551, 0.0
    %553 = vadd.xlane.f32.xlu0 %v552
    %v554 = vpop.xlane.xlu0 %553
    %v555 = vrcp.pop %v554
    %v556 = vmul.f32 %v551, %v555
    %v557 = vpack.c.bf16 %v556, %v556
    %558 = vrot.lane.b32.xlu0 %v264, 48
    %v559 = vpop.permute.xlu0 %558
    %v561 = vsel %vm268, %v557, 0
    %v564 = vsel %vm333, %v559, 0
    %566 = vmatprep.subr.bf16.mxu0 0
    %567 = vmatpush1.bf16.msra.mxu0 %v564
    %568 = vmatprep.subr.bf16.mxu0 0
    %569 = vmatpush1.bf16.msra.mxu0 0
    %570 = vmatprep.subr.bf16.mxu0 0
    %571 = vmatpush1.bf16.msra.mxu0 0
    %572 = vmatprep.subr.bf16.mxu0 0
    %573 = vmatpush1.bf16.msra.mxu0 0
    %574 = vmatprep.subr.bf16.mxu0 0
    %575 = vmatpush1.bf16.msra.mxu0 0
    %576 = vmatprep.subr.bf16.mxu0 0
    %577 = vmatpush1.bf16.msra.mxu0 0
    %578 = vmatprep.subr.bf16.mxu0 0
    %579 = vmatpush1.bf16.msra.mxu0 0
    %580 = vmatprep.subr.bf16.mxu0 0
    %581 = vmatpush1.bf16.msra.mxu0 0
    %582 = vmatprep.subr.bf16.mxu0 0
    %583 = vmatpush1.bf16.msra.mxu0 0
    %584 = vmatprep.subr.bf16.mxu0 0
    %585 = vmatpush1.bf16.msra.mxu0 0
    %586 = vmatprep.subr.bf16.mxu0 0
    %587 = vmatpush1.bf16.msra.mxu0 0
    %588 = vmatprep.subr.bf16.mxu0 0
    %589 = vmatpush1.bf16.msra.mxu0 0
    %590 = vmatprep.subr.bf16.mxu0 0
    %591 = vmatpush1.bf16.msra.mxu0 0
    %592 = vmatprep.subr.bf16.mxu0 0
    %593 = vmatpush1.bf16.msra.mxu0 0
    %594 = vmatprep.subr.bf16.mxu0 0
    %595 = vmatpush1.bf16.msra.mxu0 0
    %596 = vmatprep.subr.bf16.mxu0 0
    %597 = vmatpush1.bf16.msra.mxu0 0
    %598 = vmatprep.mubr.bf16.mxu0 0
    %599 = vmatmul.mubr.bf16.gmra.mrb[0].mxu0 %v561
    %v600 = vpop.f32.mrb[0].mxu0
    %v601 = vadd.f32 0.0, %v600
    %v602 = vpop.f32.mrb[0].mxu0
    %v603 = vpop.f32.mrb[0].mxu0
    %v604 = vpop.f32.mrb[0].mxu0
    %605 = vdwg.mxu0
    %607 = vrot.lane.b32.xlu0 %v601, 16
    %v608 = vpop.permute.xlu0 %607
    %vm610 = vcmask 195712
    %611 = vst.msk [vmem:[#allocation2] sm:$0xff] %vm610, %v608
    %612 = vrot.lane.b32.xlu0 %v264, 104
    %v613 = vpop.permute.xlu0 %612
    %614 = vrot.lane.b32.xlu0 %v264, 72
    %v615 = vpop.permute.xlu0 %614
    %v617 = vsel %vm268, %v613, 0
    %v620 = vsel %vm268, %v615, 0
    %622 = vmatprep.subr.bf16.mxu0 0
    %623 = vmatpush1.bf16.xpose.msra.mxu0 %v620
    %624 = vmatprep.subr.bf16.mxu0 0
    %625 = vmatpush1.bf16.xpose.msra.mxu0 0
    %626 = vmatprep.subr.bf16.mxu0 0
    %627 = vmatpush1.bf16.xpose.msra.mxu0 0
    %628 = vmatprep.subr.bf16.mxu0 0
    %629 = vmatpush1.bf16.xpose.msra.mxu0 0
    %630 = vmatprep.subr.bf16.mxu0 0
    %631 = vmatpush1.bf16.xpose.msra.mxu0 0
    %632 = vmatprep.subr.bf16.mxu0 0
    %633 = vmatpush1.bf16.xpose.msra.mxu0 0
    %634 = vmatprep.subr.bf16.mxu0 0
    %635 = vmatpush1.bf16.xpose.msra.mxu0 0
    %636 = vmatprep.subr.bf16.mxu0 0
    %637 = vmatpush1.bf16.xpose.msra.mxu0 0
    %638 = vmatprep.subr.bf16.mxu0 0
    %639 = vmatpush1.bf16.xpose.msra.mxu0 0
    %640 = vmatprep.subr.bf16.mxu0 0
    %641 = vmatpush1.bf16.xpose.msra.mxu0 0
    %642 = vmatprep.subr.bf16.mxu0 0
    %643 = vmatpush1.bf16.xpose.msra.mxu0 0
    %644 = vmatprep.subr.bf16.mxu0 0
    %645 = vmatpush1.bf16.xpose.msra.mxu0 0
    %646 = vmatprep.subr.bf16.mxu0 0
    %647 = vmatpush1.bf16.xpose.msra.mxu0 0
    %648 = vmatprep.subr.bf16.mxu0 0
    %649 = vmatpush1.bf16.xpose.msra.mxu0 0
    %650 = vmatprep.subr.bf16.mxu0 0
    %651 = vmatpush1.bf16.xpose.msra.mxu0 0
    %652 = vmatprep.subr.bf16.mxu0 0
    %653 = vmatpush1.bf16.xpose.msra.mxu0 0
    %654 = vmatprep.mubr.bf16.mxu0 0
    %655 = vmatmul.mubr.bf16.gmra.mrb[0].mxu0 %v617
    %v656 = vpop.f32.mrb[0].mxu0
    %v657 = vadd.f32 0.0, %v656
    %v658 = vpop.f32.mrb[0].mxu0
    %v659 = vpop.f32.mrb[0].mxu0
    %v660 = vpop.f32.mrb[0].mxu0
    %661 = vdwg.mxu0
    %v662 = vmul.f32 %v657, 0.35355338
    %v663 = vsel %vm268, %v662, -inf
    %664 = vmax.xlane.f32.xlu0 %v663
    %v665 = vpop.xlane.xlu0 %664
    %v666 = vsub.f32 %v662, %v665
    %v667 = vmul.f32 %v666, 1.442695
    %v668 = vpow.pop %v667
    %v669 = vsel %vm268, %v668, 0.0
    %670 = vadd.xlane.f32.xlu0 %v669
    %v671 = vpop.xlane.xlu0 %670
    %v672 = vrcp.pop %v671
    %v673 = vmul.f32 %v668, %v672
    %v674 = vpack.c.bf16 %v673, %v673
    %675 = vrot.lane.b32.xlu0 %v264, 40
    %v676 = vpop.permute.xlu0 %675
    %v678 = vsel %vm268, %v674, 0
    %v681 = vsel %vm333, %v676, 0
    %683 = vmatprep.subr.bf16.mxu0 0
    %684 = vmatpush1.bf16.msra.mxu0 %v681
    %685 = vmatprep.subr.bf16.mxu0 0
    %686 = vmatpush1.bf16.msra.mxu0 0
    %687 = vmatprep.subr.bf16.mxu0 0
    %688 = vmatpush1.bf16.msra.mxu0 0
    %689 = vmatprep.subr.bf16.mxu0 0
    %690 = vmatpush1.bf16.msra.mxu0 0
    %691 = vmatprep.subr.bf16.mxu0 0
    %692 = vmatpush1.bf16.msra.mxu0 0
    %693 = vmatprep.subr.bf16.mxu0 0
    %694 = vmatpush1.bf16.msra.mxu0 0
    %695 = vmatprep.subr.bf16.mxu0 0
    %696 = vmatpush1.bf16.msra.mxu0 0
    %697 = vmatprep.subr.bf16.mxu0 0
    %698 = vmatpush1.bf16.msra.mxu0 0
    %699 = vmatprep.subr.bf16.mxu0 0
    %700 = vmatpush1.bf16.msra.mxu0 0
    %701 = vmatprep.subr.bf16.mxu0 0
    %702 = vmatpush1.bf16.msra.mxu0 0
    %703 = vmatprep.subr.bf16.mxu0 0
    %704 = vmatpush1.bf16.msra.mxu0 0
    %705 = vmatprep.subr.bf16.mxu0 0
    %706 = vmatpush1.bf16.msra.mxu0 0
    %707 = vmatprep.subr.bf16.mxu0 0
    %708 = vmatpush1.bf16.msra.mxu0 0
    %709 = vmatprep.subr.bf16.mxu0 0
    %710 = vmatpush1.bf16.msra.mxu0 0
    %711 = vmatprep.subr.bf16.mxu0 0
    %712 = vmatpush1.bf16.msra.mxu0 0
    %713 = vmatprep.subr.bf16.mxu0 0
    %714 = vmatpush1.bf16.msra.mxu0 0
    %715 = vmatprep.mubr.bf16.mxu0 0
    %716 = vmatmul.mubr.bf16.gmra.mrb[0].mxu0 %v678
    %v717 = vpop.f32.mrb[0].mxu0
    %v718 = vadd.f32 0.0, %v717
    %v719 = vpop.f32.mrb[0].mxu0
    %v720 = vpop.f32.mrb[0].mxu0
    %v721 = vpop.f32.mrb[0].mxu0
    %722 = vdwg.mxu0
    %724 = vrot.lane.b32.xlu0 %v718, 24
    %v725 = vpop.permute.xlu0 %724
    %vm727 = vcmask 261312
    %728 = vst.msk [vmem:[#allocation2] sm:$0xff] %vm727, %v725
    %v729 = vpack.c.bf16 %v261, %v261
    %731 = vrot.lane.b32.xlu0 %v729, 96
    %v732 = vpop.permute.xlu0 %731
    %v734 = vsel %vm268, %v729, 0
    %v737 = vsel %vm268, %v732, 0
    %739 = vmatprep.subr.bf16.mxu0 0
    %740 = vmatpush1.bf16.xpose.msra.mxu0 %v737
    %741 = vmatprep.subr.bf16.mxu0 0
    %742 = vmatpush1.bf16.xpose.msra.mxu0 0
    %743 = vmatprep.subr.bf16.mxu0 0
    %744 = vmatpush1.bf16.xpose.msra.mxu0 0
    %745 = vmatprep.subr.bf16.mxu0 0
    %746 = vmatpush1.bf16.xpose.msra.mxu0 0
    %747 = vmatprep.subr.bf16.mxu0 0
    %748 = vmatpush1.bf16.xpose.msra.mxu0 0
    %749 = vmatprep.subr.bf16.mxu0 0
    %750 = vmatpush1.bf16.xpose.msra.mxu0 0
    %751 = vmatprep.subr.bf16.mxu0 0
    %752 = vmatpush1.bf16.xpose.msra.mxu0 0
    %753 = vmatprep.subr.bf16.mxu0 0
    %754 = vmatpush1.bf16.xpose.msra.mxu0 0
    %755 = vmatprep.subr.bf16.mxu0 0
    %756 = vmatpush1.bf16.xpose.msra.mxu0 0
    %757 = vmatprep.subr.bf16.mxu0 0
    %758 = vmatpush1.bf16.xpose.msra.mxu0 0
    %759 = vmatprep.subr.bf16.mxu0 0
    %760 = vmatpush1.bf16.xpose.msra.mxu0 0
    %761 = vmatprep.subr.bf16.mxu0 0
    %762 = vmatpush1.bf16.xpose.msra.mxu0 0
    %763 = vmatprep.subr.bf16.mxu0 0
    %764 = vmatpush1.bf16.xpose.msra.mxu0 0
    %765 = vmatprep.subr.bf16.mxu0 0
    %766 = vmatpush1.bf16.xpose.msra.mxu0 0
    %767 = vmatprep.subr.bf16.mxu0 0
    %768 = vmatpush1.bf16.xpose.msra.mxu0 0
    %769 = vmatprep.subr.bf16.mxu0 0
    %770 = vmatpush1.bf16.xpose.msra.mxu0 0
    %771 = vmatprep.mubr.bf16.mxu0 0
    %772 = vmatmul.mubr.bf16.gmra.mrb[0].mxu0 %v734
    %v773 = vpop.f32.mrb[0].mxu0
    %v774 = vadd.f32 0.0, %v773
    %v775 = vpop.f32.mrb[0].mxu0
    %v776 = vpop.f32.mrb[0].mxu0
    %v777 = vpop.f32.mrb[0].mxu0
    %778 = vdwg.mxu0
    %v779 = vmul.f32 %v774, 0.35355338
    %v780 = vsel %vm268, %v779, -inf
    %781 = vmax.xlane.f32.xlu0 %v780
    %v782 = vpop.xlane.xlu0 %781
    %v783 = vsub.f32 %v779, %v782
    %v784 = vmul.f32 %v783, 1.442695
    %v785 = vpow.pop %v784
    %v786 = vsel %vm268, %v785, 0.0
    %787 = vadd.xlane.f32.xlu0 %v786
    %v788 = vpop.xlane.xlu0 %787
    %v789 = vrcp.pop %v788
    %v790 = vmul.f32 %v785, %v789
    %v791 = vpack.c.bf16 %v790, %v790
    %792 = vrot.lane.b32.xlu0 %v729, 64
    %v793 = vpop.permute.xlu0 %792
    %v795 = vsel %vm268, %v791, 0
    %v798 = vsel %vm333, %v793, 0
    %800 = vmatprep.subr.bf16.mxu0 0
    %801 = vmatpush1.bf16.msra.mxu0 %v798
    %802 = vmatprep.subr.bf16.mxu0 0
    %803 = vmatpush1.bf16.msra.mxu0 0
    %804 = vmatprep.subr.bf16.mxu0 0
    %805 = vmatpush1.bf16.msra.mxu0 0
    %806 = vmatprep.subr.bf16.mxu0 0
    %807 = vmatpush1.bf16.msra.mxu0 0
    %808 = vmatprep.subr.bf16.mxu0 0
    %809 = vmatpush1.bf16.msra.mxu0 0
    %810 = vmatprep.subr.bf16.mxu0 0
    %811 = vmatpush1.bf16.msra.mxu0 0
    %812 = vmatprep.subr.bf16.mxu0 0
    %813 = vmatpush1.bf16.msra.mxu0 0
    %814 = vmatprep.subr.bf16.mxu0 0
    %815 = vmatpush1.bf16.msra.mxu0 0
    %816 = vmatprep.subr.bf16.mxu0 0
    %817 = vmatpush1.bf16.msra.mxu0 0
    %818 = vmatprep.subr.bf16.mxu0 0
    %819 = vmatpush1.bf16.msra.mxu0 0
    %820 = vmatprep.subr.bf16.mxu0 0
    %821 = vmatpush1.bf16.msra.mxu0 0
    %822 = vmatprep.subr.bf16.mxu0 0
    %823 = vmatpush1.bf16.msra.mxu0 0
    %824 = vmatprep.subr.bf16.mxu0 0
    %825 = vmatpush1.bf16.msra.mxu0 0
    %826 = vmatprep.subr.bf16.mxu0 0
    %827 = vmatpush1.bf16.msra.mxu0 0
    %828 = vmatprep.subr.bf16.mxu0 0
    %829 = vmatpush1.bf16.msra.mxu0 0
    %830 = vmatprep.subr.bf16.mxu0 0
    %831 = vmatpush1.bf16.msra.mxu0 0
    %832 = vmatprep.mubr.bf16.mxu0 0
    %833 = vmatmul.mubr.bf16.gmra.mrb[0].mxu0 %v795
    %v834 = vpop.f32.mrb[0].mxu0
    %v835 = vadd.f32 0.0, %v834
    %v836 = vpop.f32.mrb[0].mxu0
    %v837 = vpop.f32.mrb[0].mxu0
    %v838 = vpop.f32.mrb[0].mxu0
    %839 = vdwg.mxu0
    %840 = vst.msk [vmem:[#allocation2 + $0x8] sm:$0xff] %vm268, %v835
    %841 = vrot.lane.b32.xlu0 %v729, 120
    %v842 = vpop.permute.xlu0 %841
    %843 = vrot.lane.b32.xlu0 %v729, 88
    %v844 = vpop.permute.xlu0 %843
    %v846 = vsel %vm268, %v842, 0
    %v849 = vsel %vm268, %v844, 0
    %851 = vmatprep.subr.bf16.mxu0 0
    %852 = vmatpush1.bf16.xpose.msra.mxu0 %v849
    %853 = vmatprep.subr.bf16.mxu0 0
    %854 = vmatpush1.bf16.xpose.msra.mxu0 0
    %855 = vmatprep.subr.bf16.mxu0 0
    %856 = vmatpush1.bf16.xpose.msra.mxu0 0
    %857 = vmatprep.subr.bf16.mxu0 0
    %858 = vmatpush1.bf16.xpose.msra.mxu0 0
    %859 = vmatprep.subr.bf16.mxu0 0
    %860 = vmatpush1.bf16.xpose.msra.mxu0 0
    %861 = vmatprep.subr.bf16.mxu0 0
    %862 = vmatpush1.bf16.xpose.msra.mxu0 0
    %863 = vmatprep.subr.bf16.mxu0 0
    %864 = vmatpush1.bf16.xpose.msra.mxu0 0
    %865 = vmatprep.subr.bf16.mxu0 0
    %866 = vmatpush1.bf16.xpose.msra.mxu0 0
    %867 = vmatprep.subr.bf16.mxu0 0
    %868 = vmatpush1.bf16.xpose.msra.mxu0 0
    %869 = vmatprep.subr.bf16.mxu0 0
    %870 = vmatpush1.bf16.xpose.msra.mxu0 0
    %871 = vmatprep.subr.bf16.mxu0 0
    %872 = vmatpush1.bf16.xpose.msra.mxu0 0
    %873 = vmatprep.subr.bf16.mxu0 0
    %874 = vmatpush1.bf16.xpose.msra.mxu0 0
    %875 = vmatprep.subr.bf16.mxu0 0
    %876 = vmatpush1.bf16.xpose.msra.mxu0 0
    %877 = vmatprep.subr.bf16.mxu0 0
    %878 = vmatpush1.bf16.xpose.msra.mxu0 0
    %879 = vmatprep.subr.bf16.mxu0 0
    %880 = vmatpush1.bf16.xpose.msra.mxu0 0
    %881 = vmatprep.subr.bf16.mxu0 0
    %882 = vmatpush1.bf16.xpose.msra.mxu0 0
    %883 = vmatprep.mubr.bf16.mxu0 0
    %884 = vmatmul.mubr.bf16.gmra.mrb[0].mxu0 %v846
    %v885 = vpop.f32.mrb[0].mxu0
    %v886 = vadd.f32 0.0, %v885
    %v887 = vpop.f32.mrb[0].mxu0
    %v888 = vpop.f32.mrb[0].mxu0
    %v889 = vpop.f32.mrb[0].mxu0
    %890 = vdwg.mxu0
    %v891 = vmul.f32 %v886, 0.35355338
    %v892 = vsel %vm268, %v891, -inf
    %893 = vmax.xlane.f32.xlu0 %v892
    %v894 = vpop.xlane.xlu0 %893
    %v895 = vsub.f32 %v891, %v894
    %v896 = vmul.f32 %v895, 1.442695
    %v897 = vpow.pop %v896
    %v898 = vsel %vm268, %v897, 0.0
    %899 = vadd.xlane.f32.xlu0 %v898
    %v900 = vpop.xlane.xlu0 %899
    %v901 = vrcp.pop %v900
    %v902 = vmul.f32 %v897, %v901
    %v903 = vpack.c.bf16 %v902, %v902
    %904 = vrot.lane.b32.xlu0 %v729, 56
    %v905 = vpop.permute.xlu0 %904
    %v907 = vsel %vm268, %v903, 0
    %v910 = vsel %vm333, %v905, 0
    %912 = vmatprep.subr.bf16.mxu0 0
    %913 = vmatpush1.bf16.msra.mxu0 %v910
    %914 = vmatprep.subr.bf16.mxu0 0
    %915 = vmatpush1.bf16.msra.mxu0 0
    %916 = vmatprep.subr.bf16.mxu0 0
    %917 = vmatpush1.bf16.msra.mxu0 0
    %918 = vmatprep.subr.bf16.mxu0 0
    %919 = vmatpush1.bf16.msra.mxu0 0
    %920 = vmatprep.subr.bf16.mxu0 0
    %921 = vmatpush1.bf16.msra.mxu0 0
    %922 = vmatprep.subr.bf16.mxu0 0
    %923 = vmatpush1.bf16.msra.mxu0 0
    %924 = vmatprep.subr.bf16.mxu0 0
    %925 = vmatpush1.bf16.msra.mxu0 0
    %926 = vmatprep.subr.bf16.mxu0 0
    %927 = vmatpush1.bf16.msra.mxu0 0
    %928 = vmatprep.subr.bf16.mxu0 0
    %929 = vmatpush1.bf16.msra.mxu0 0
    %930 = vmatprep.subr.bf16.mxu0 0
    %931 = vmatpush1.bf16.msra.mxu0 0
    %932 = vmatprep.subr.bf16.mxu0 0
    %933 = vmatpush1.bf16.msra.mxu0 0
    %934 = vmatprep.subr.bf16.mxu0 0
    %935 = vmatpush1.bf16.msra.mxu0 0
    %936 = vmatprep.subr.bf16.mxu0 0
    %937 = vmatpush1.bf16.msra.mxu0 0
    %938 = vmatprep.subr.bf16.mxu0 0
    %939 = vmatpush1.bf16.msra.mxu0 0
    %940 = vmatprep.subr.bf16.mxu0 0
    %941 = vmatpush1.bf16.msra.mxu0 0
    %942 = vmatprep.subr.bf16.mxu0 0
    %943 = vmatpush1.bf16.msra.mxu0 0
    %944 = vmatprep.mubr.bf16.mxu0 0
    %945 = vmatmul.mubr.bf16.gmra.mrb[0].mxu0 %v907
    %v946 = vpop.f32.mrb[0].mxu0
    %v947 = vadd.f32 0.0, %v946
    %v948 = vpop.f32.mrb[0].mxu0
    %v949 = vpop.f32.mrb[0].mxu0
    %v950 = vpop.f32.mrb[0].mxu0
    %951 = vdwg.mxu0
    %953 = vrot.lane.b32.xlu0 %v947, 8
    %v954 = vpop.permute.xlu0 %953
    %956 = vst.msk [vmem:[#allocation2 + $0x8] sm:$0xff] %vm493, %v954
    %957 = vrot.lane.b32.xlu0 %v729, 112
    %v958 = vpop.permute.xlu0 %957
    %959 = vrot.lane.b32.xlu0 %v729, 80
    %v960 = vpop.permute.xlu0 %959
    %v962 = vsel %vm268, %v958, 0
    %v965 = vsel %vm268, %v960, 0
    %967 = vmatprep.subr.bf16.mxu0 0
    %968 = vmatpush1.bf16.xpose.msra.mxu0 %v965
    %969 = vmatprep.subr.bf16.mxu0 0
    %970 = vmatpush1.bf16.xpose.msra.mxu0 0
    %971 = vmatprep.subr.bf16.mxu0 0
    %972 = vmatpush1.bf16.xpose.msra.mxu0 0
    %973 = vmatprep.subr.bf16.mxu0 0
    %974 = vmatpush1.bf16.xpose.msra.mxu0 0
    %975 = vmatprep.subr.bf16.mxu0 0
    %976 = vmatpush1.bf16.xpose.msra.mxu0 0
    %977 = vmatprep.subr.bf16.mxu0 0
    %978 = vmatpush1.bf16.xpose.msra.mxu0 0
    %979 = vmatprep.subr.bf16.mxu0 0
    %980 = vmatpush1.bf16.xpose.msra.mxu0 0
    %981 = vmatprep.subr.bf16.mxu0 0
    %982 = vmatpush1.bf16.xpose.msra.mxu0 0
    %983 = vmatprep.subr.bf16.mxu0 0
    %984 = vmatpush1.bf16.xpose.msra.mxu0 0
    %985 = vmatprep.subr.bf16.mxu0 0
    %986 = vmatpush1.bf16.xpose.msra.mxu0 0
    %987 = vmatprep.subr.bf16.mxu0 0
    %988 = vmatpush1.bf16.xpose.msra.mxu0 0
    %989 = vmatprep.subr.bf16.mxu0 0
    %990 = vmatpush1.bf16.xpose.msra.mxu0 0
    %991 = vmatprep.subr.bf16.mxu0 0
    %992 = vmatpush1.bf16.xpose.msra.mxu0 0
    %993 = vmatprep.subr.bf16.mxu0 0
    %994 = vmatpush1.bf16.xpose.msra.mxu0 0
    %995 = vmatprep.subr.bf16.mxu0 0
    %996 = vmatpush1.bf16.xpose.msra.mxu0 0
    %997 = vmatprep.subr.bf16.mxu0 0
    %998 = vmatpush1.bf16.xpose.msra.mxu0 0
    %999 = vmatprep.mubr.bf16.mxu0 0
    %1000 = vmatmul.mubr.bf16.gmra.mrb[0].mxu0 %v962
    %v1001 = vpop.f32.mrb[0].mxu0
    %v1002 = vadd.f32 0.0, %v1001
    %v1003 = vpop.f32.mrb[0].mxu0
    %v1004 = vpop.f32.mrb[0].mxu0
    %v1005 = vpop.f32.mrb[0].mxu0
    %1006 = vdwg.mxu0
    %v1007 = vmul.f32 %v1002, 0.35355338
    %v1008 = vsel %vm268, %v1007, -inf
    %1009 = vmax.xlane.f32.xlu0 %v1008
    %v1010 = vpop.xlane.xlu0 %1009
    %v1011 = vsub.f32 %v1007, %v1010
    %v1012 = vmul.f32 %v1011, 1.442695
    %v1013 = vpow.pop %v1012
    %v1014 = vsel %vm268, %v1013, 0.0
    %1015 = vadd.xlane.f32.xlu0 %v1014
    %v1016 = vpop.xlane.xlu0 %1015
    %v1017 = vrcp.pop %v1016
    %v1018 = vmul.f32 %v1013, %v1017
    %v1019 = vpack.c.bf16 %v1018, %v1018
    %1020 = vrot.lane.b32.xlu0 %v729, 48
    %v1021 = vpop.permute.xlu0 %1020
    %v1023 = vsel %vm268, %v1019, 0
    %v1026 = vsel %vm333, %v1021, 0
    %1028 = vmatprep.subr.bf16.mxu0 0
    %1029 = vmatpush1.bf16.msra.mxu0 %v1026
    %1030 = vmatprep.subr.bf16.mxu0 0
    %1031 = vmatpush1.bf16.msra.mxu0 0
    %1032 = vmatprep.subr.bf16.mxu0 0
    %1033 = vmatpush1.bf16.msra.mxu0 0
    %1034 = vmatprep.subr.bf16.mxu0 0
    %1035 = vmatpush1.bf16.msra.mxu0 0
    %1036 = vmatprep.subr.bf16.mxu0 0
    %1037 = vmatpush1.bf16.msra.mxu0 0
    %1038 = vmatprep.subr.bf16.mxu0 0
    %1039 = vmatpush1.bf16.msra.mxu0 0
    %1040 = vmatprep.subr.bf16.mxu0 0
    %1041 = vmatpush1.bf16.msra.mxu0 0
    %1042 = vmatprep.subr.bf16.mxu0 0
    %1043 = vmatpush1.bf16.msra.mxu0 0
    %1044 = vmatprep.subr.bf16.mxu0 0
    %1045 = vmatpush1.bf16.msra.mxu0 0
    %1046 = vmatprep.subr.bf16.mxu0 0
    %1047 = vmatpush1.bf16.msra.mxu0 0
    %1048 = vmatprep.subr.bf16.mxu0 0
    %1049 = vmatpush1.bf16.msra.mxu0 0
    %1050 = vmatprep.subr.bf16.mxu0 0
    %1051 = vmatpush1.bf16.msra.mxu0 0
    %1052 = vmatprep.subr.bf16.mxu0 0
    %1053 = vmatpush1.bf16.msra.mxu0 0
    %1054 = vmatprep.subr.bf16.mxu0 0
    %1055 = vmatpush1.bf16.msra.mxu0 0
    %1056 = vmatprep.subr.bf16.mxu0 0
    %1057 = vmatpush1.bf16.msra.mxu0 0
    %1058 = vmatprep.subr.bf16.mxu0 0
    %1059 = vmatpush1.bf16.msra.mxu0 0
    %1060 = vmatprep.mubr.bf16.mxu0 0
    %1061 = vmatmul.mubr.bf16.gmra.mrb[0].mxu0 %v1023
    %v1062 = vpop.f32.mrb[0].mxu0
    %v1063 = vadd.f32 0.0, %v1062
    %v1064 = vpop.f32.mrb[0].mxu0
    %v1065 = vpop.f32.mrb[0].mxu0
    %v1066 = vpop.f32.mrb[0].mxu0
    %1067 = vdwg.mxu0
    %1069 = vrot.lane.b32.xlu0 %v1063, 16
    %v1070 = vpop.permute.xlu0 %1069
    %1072 = vst.msk [vmem:[#allocation2 + $0x8] sm:$0xff] %vm610, %v1070
    %1073 = vrot.lane.b32.xlu0 %v729, 104
    %v1074 = vpop.permute.xlu0 %1073
    %1075 = vrot.lane.b32.xlu0 %v729, 72
    %v1076 = vpop.permute.xlu0 %1075
    %v1078 = vsel %vm268, %v1074, 0
    %v1081 = vsel %vm268, %v1076, 0
    %1083 = vmatprep.subr.bf16.mxu0 0
    %1084 = vmatpush1.bf16.xpose.msra.mxu0 %v1081
    %1085 = vmatprep.subr.bf16.mxu0 0
    %1086 = vmatpush1.bf16.xpose.msra.mxu0 0
    %1087 = vmatprep.subr.bf16.mxu0 0
    %1088 = vmatpush1.bf16.xpose.msra.mxu0 0
    %1089 = vmatprep.subr.bf16.mxu0 0
    %1090 = vmatpush1.bf16.xpose.msra.mxu0 0
    %1091 = vmatprep.subr.bf16.mxu0 0
    %1092 = vmatpush1.bf16.xpose.msra.mxu0 0
    %1093 = vmatprep.subr.bf16.mxu0 0
    %1094 = vmatpush1.bf16.xpose.msra.mxu0 0
    %1095 = vmatprep.subr.bf16.mxu0 0
    %1096 = vmatpush1.bf16.xpose.msra.mxu0 0
    %1097 = vmatprep.subr.bf16.mxu0 0
    %1098 = vmatpush1.bf16.xpose.msra.mxu0 0
    %1099 = vmatprep.subr.bf16.mxu0 0
    %1100 = vmatpush1.bf16.xpose.msra.mxu0 0
    %1101 = vmatprep.subr.bf16.mxu0 0
    %1102 = vmatpush1.bf16.xpose.msra.mxu0 0
    %1103 = vmatprep.subr.bf16.mxu0 0
    %1104 = vmatpush1.bf16.xpose.msra.mxu0 0
    %1105 = vmatprep.subr.bf16.mxu0 0
    %1106 = vmatpush1.bf16.xpose.msra.mxu0 0
    %1107 = vmatprep.subr.bf16.mxu0 0
    %1108 = vmatpush1.bf16.xpose.msra.mxu0 0
    %1109 = vmatprep.subr.bf16.mxu0 0
    %1110 = vmatpush1.bf16.xpose.msra.mxu0 0
    %1111 = vmatprep.subr.bf16.mxu0 0
    %1112 = vmatpush1.bf16.xpose.msra.mxu0 0
    %1113 = vmatprep.subr.bf16.mxu0 0
    %1114 = vmatpush1.bf16.xpose.msra.mxu0 0
    %1115 = vmatprep.mubr.bf16.mxu0 0
    %1116 = vmatmul.mubr.bf16.gmra.mrb[0].mxu0 %v1078
    %v1117 = vpop.f32.mrb[0].mxu0
    %v1118 = vadd.f32 0.0, %v1117
    %v1119 = vpop.f32.mrb[0].mxu0
    %v1120 = vpop.f32.mrb[0].mxu0
    %v1121 = vpop.f32.mrb[0].mxu0
    %1122 = vdwg.mxu0
    %v1123 = vmul.f32 %v1118, 0.35355338
    %v1124 = vsel %vm268, %v1123, -inf
    %1125 = vmax.xlane.f32.xlu0 %v1124
    %v1126 = vpop.xlane.xlu0 %1125
    %v1127 = vsub.f32 %v1123, %v1126
    %v1128 = vmul.f32 %v1127, 1.442695
    %v1129 = vpow.pop %v1128
    %v1130 = vsel %vm268, %v1129, 0.0
    %1131 = vadd.xlane.f32.xlu0 %v1130
    %v1132 = vpop.xlane.xlu0 %1131
    %v1133 = vrcp.pop %v1132
    %v1134 = vmul.f32 %v1129, %v1133
    %v1135 = vpack.c.bf16 %v1134, %v1134
    %1136 = vrot.lane.b32.xlu0 %v729, 40
    %v1137 = vpop.permute.xlu0 %1136
    %v1139 = vsel %vm268, %v1135, 0
    %v1142 = vsel %vm333, %v1137, 0
    %1144 = vmatprep.subr.bf16.mxu0 0
    %1145 = vmatpush1.bf16.msra.mxu0 %v1142
    %1146 = vmatprep.subr.bf16.mxu0 0
    %1147 = vmatpush1.bf16.msra.mxu0 0
    %1148 = vmatprep.subr.bf16.mxu0 0
    %1149 = vmatpush1.bf16.msra.mxu0 0
    %1150 = vmatprep.subr.bf16.mxu0 0
    %1151 = vmatpush1.bf16.msra.mxu0 0
    %1152 = vmatprep.subr.bf16.mxu0 0
    %1153 = vmatpush1.bf16.msra.mxu0 0
    %1154 = vmatprep.subr.bf16.mxu0 0
    %1155 = vmatpush1.bf16.msra.mxu0 0
    %1156 = vmatprep.subr.bf16.mxu0 0
    %1157 = vmatpush1.bf16.msra.mxu0 0
    %1158 = vmatprep.subr.bf16.mxu0 0
    %1159 = vmatpush1.bf16.msra.mxu0 0
    %1160 = vmatprep.subr.bf16.mxu0 0
    %1161 = vmatpush1.bf16.msra.mxu0 0
    %1162 = vmatprep.subr.bf16.mxu0 0
    %1163 = vmatpush1.bf16.msra.mxu0 0
    %1164 = vmatprep.subr.bf16.mxu0 0
    %1165 = vmatpush1.bf16.msra.mxu0 0
    %1166 = vmatprep.subr.bf16.mxu0 0
    %1167 = vmatpush1.bf16.msra.mxu0 0
    %1168 = vmatprep.subr.bf16.mxu0 0
    %1169 = vmatpush1.bf16.msra.mxu0 0
    %1170 = vmatprep.subr.bf16.mxu0 0
    %1171 = vmatpush1.bf16.msra.mxu0 0
    %1172 = vmatprep.subr.bf16.mxu0 0
    %1173 = vmatpush1.bf16.msra.mxu0 0
    %1174 = vmatprep.subr.bf16.mxu0 0
    %1175 = vmatpush1.bf16.msra.mxu0 0
    %1176 = vmatprep.mubr.bf16.mxu0 0
    %1177 = vmatmul.mubr.bf16.gmra.mrb[0].mxu0 %v1139
    %v1178 = vpop.f32.mrb[0].mxu0
    %v1179 = vadd.f32 0.0, %v1178
    %v1180 = vpop.f32.mrb[0].mxu0
    %v1181 = vpop.f32.mrb[0].mxu0
    %v1182 = vpop.f32.mrb[0].mxu0
    %1183 = vdwg.mxu0
    %1185 = vrot.lane.b32.xlu0 %v1179, 24
    %v1186 = vpop.permute.xlu0 %1185
    %1188 = vst.msk [vmem:[#allocation2 + $0x8] sm:$0xff] %vm727, %v1186
    %v1189 = vld [vmem:[#allocation2] sm:$0xff]
    %v1190 = vld [vmem:[#allocation2 + $0x8] sm:$0xff]
    %v1191 = vpack.c.bf16 %v1190, %v1189
    %v1192 = vld [vmem:[%s5] sm:$0xf]
    %v1193 = vld [vmem:[%s5 + $0x4] sm:$0xf]
    %v1194 = vld [vmem:[%s5 + $0x8] sm:$0xf]
    %v1195 = vld [vmem:[%s5 + $0xc] sm:$0xf]
    %v1197 = vlaneseq
    %v1198 = vshrl.u32 %v1197, 7
    %v1199 = vsub.s32 0, %v1198
    %v1200 = vrot.slane %v122, %v1199
    %v1206 = vunpack.c.l.b16 %v1192
    %v1207 = vunpack.c.l.b16 %v1193
    %v1208 = vunpack.c.l.b16 %v1194
    %v1209 = vunpack.c.l.b16 %v1195
    %v1210 = vpack.c.b16 %v1207, %v1206
    %v1211 = vpack.c.b16 %v1209, %v1208
    %v1215 = vsel %vm219, %v1191, 0
    %1217 = vmatprep.subr.bf16.mxu0 0
    %1218 = vmatpush1.bf16.msra.mxu0 %v1210
    %1219 = vmatprep.subr.bf16.mxu0 0
    %1220 = vmatpush1.bf16.msra.mxu0 %v1211
    %1221 = vmatprep.subr.bf16.mxu0 0
    %1222 = vmatpush1.bf16.msra.mxu0 0
    %1223 = vmatprep.subr.bf16.mxu0 0
    %1224 = vmatpush1.bf16.msra.mxu0 0
    %1225 = vmatprep.subr.bf16.mxu0 0
    %1226 = vmatpush1.bf16.msra.mxu0 0
    %1227 = vmatprep.subr.bf16.mxu0 0
    %1228 = vmatpush1.bf16.msra.mxu0 0
    %1229 = vmatprep.subr.bf16.mxu0 0
    %1230 = vmatpush1.bf16.msra.mxu0 0
    %1231 = vmatprep.subr.bf16.mxu0 0
    %1232 = vmatpush1.bf16.msra.mxu0 0
    %1233 = vmatprep.subr.bf16.mxu0 0
    %1234 = vmatpush1.bf16.msra.mxu0 0
    %1235 = vmatprep.subr.bf16.mxu0 0
    %1236 = vmatpush1.bf16.msra.mxu0 0
    %1237 = vmatprep.subr.bf16.mxu0 0
    %1238 = vmatpush1.bf16.msra.mxu0 0
    %1239 = vmatprep.subr.bf16.mxu0 0
    %1240 = vmatpush1.bf16.msra.mxu0 0
    %1241 = vmatprep.subr.bf16.mxu0 0
    %1242 = vmatpush1.bf16.msra.mxu0 0
    %1243 = vmatprep.subr.bf16.mxu0 0
    %1244 = vmatpush1.bf16.msra.mxu0 0
    %1245 = vmatprep.subr.bf16.mxu0 0
    %1246 = vmatpush1.bf16.msra.mxu0 0
    %1247 = vmatprep.subr.bf16.mxu0 0
    %1248 = vmatpush1.bf16.msra.mxu0 0
    %1249 = vmatprep.mubr.bf16.mxu0 0
    %1250 = vmatmul.mubr.bf16.gmra.mrb[0].mxu0 %v1215
    %v1251 = vpop.f32.mrb[0].mxu0
    %v1252 = vadd.f32 %v1200, %v1251
    %v1253 = vpop.f32.mrb[0].mxu0
    %v1254 = vpop.f32.mrb[0].mxu0
    %v1255 = vadd.f32 %v1200, %v1254
    %v1256 = vpop.f32.mrb[0].mxu0
    %1257 = vdwg.mxu0
    %v1258 = vadd.f32 %v190, %v1252
    %v1259 = vadd.f32 %v193, %v1255
    %v1260 = vsel %vm219, %v1258, 0.0
    %1261 = vadd.xlane.f32.xlu0 %v1260
    %v1262 = vpop.xlane.xlu0 %1261
    %v1263 = vsel %vm219, %v1259, 0.0
    %1264 = vadd.xlane.f32.xlu0 %v1263
    %v1265 = vpop.xlane.xlu0 %1264
    %v1266 = vrcp.pop 32.0
    %v1267 = vmul.f32 %v1262, %v1266
    %v1268 = vmul.f32 %v1265, %v1266
    %v1269 = vsub.f32 %v1258, %v1267
    %v1270 = vsub.f32 %v1259, %v1268
    %v1271 = vmul.f32 %v1269, %v1269
    %v1272 = vmul.f32 %v1270, %v1270
    %v1273 = vsel %vm219, %v1271, 0.0
    %1274 = vadd.xlane.f32.xlu0 %v1273
    %v1275 = vpop.xlane.xlu0 %1274
    %v1276 = vsel %vm219, %v1272, 0.0
    %1277 = vadd.xlane.f32.xlu0 %v1276
    %v1278 = vpop.xlane.xlu0 %1277
    %v1279 = vmul.f32 %v1275, %v1266
    %v1280 = vmul.f32 %v1278, %v1266
    %v1281 = vadd.f32 %v1279, 1e-05
    %v1282 = vadd.f32 %v1280, 1e-05
    %v1283 = vrsqrt.pop %v1281
    %v1284 = vrsqrt.pop %v1282
    %v1285 = vmul.f32 %v1269, %v1283
    %v1286 = vmul.f32 %v1270, %v1284
    %v1288 = vlaneseq
    %v1289 = vshrl.u32 %v1288, 7
    %v1290 = vsub.s32 0, %v1289
    %v1291 = vrot.slane %v123, %v1290
    %v1293 = vmul.f32 %v1285, %v1291
    %v1294 = vmul.f32 %v1286, %v1291
    %v1296 = vlaneseq
    %v1297 = vshrl.u32 %v1296, 7
    %v1298 = vsub.s32 0, %v1297
    %v1299 = vrot.slane %v124, %v1298
    %v1301 = vadd.f32 %v1293, %v1299
    %v1302 = vadd.f32 %v1294, %v1299
    %v1303 = vpack.c.bf16 %v1302, %v1301
    %v1304 = vld [vmem:[%s9] sm:$0xf]
    %v1305 = vld [vmem:[%s9 + $0x4] sm:$0xf]
    %v1306 = vld [vmem:[%s9 + $0x8] sm:$0xf]
    %v1307 = vld [vmem:[%s9 + $0xc] sm:$0xf]
    %v1309 = vlaneseq
    %v1310 = vshrl.u32 %v1309, 7
    %v1311 = vsub.s32 0, %v1310
    %v1312 = vrot.slane %v125, %v1311
    %v1318 = vunpack.c.l.b16 %v1304
    %v1319 = vunpack.c.l.b16 %v1305
    %v1320 = vunpack.c.l.b16 %v1306
    %v1321 = vunpack.c.l.b16 %v1307
    %v1322 = vpack.c.b16 %v1319, %v1318
    %v1323 = vpack.c.b16 %v1321, %v1320
    %v1327 = vsel %vm219, %v1303, 0
    %1329 = vmatprep.subr.bf16.mxu0 0
    %1330 = vmatpush1.bf16.msra.mxu0 %v1322
    %1331 = vmatprep.subr.bf16.mxu0 0
    %1332 = vmatpush1.bf16.msra.mxu0 %v1323
    %1333 = vmatprep.subr.bf16.mxu0 0
    %1334 = vmatpush1.bf16.msra.mxu0 0
    %1335 = vmatprep.subr.bf16.mxu0 0
    %1336 = vmatpush1.bf16.msra.mxu0 0
    %1337 = vmatprep.subr.bf16.mxu0 0
    %1338 = vmatpush1.bf16.msra.mxu0 0
    %1339 = vmatprep.subr.bf16.mxu0 0
    %1340 = vmatpush1.bf16.msra.mxu0 0
    %1341 = vmatprep.subr.bf16.mxu0 0
    %1342 = vmatpush1.bf16.msra.mxu0 0
    %1343 = vmatprep.subr.bf16.mxu0 0
    %1344 = vmatpush1.bf16.msra.mxu0 0
    %1345 = vmatprep.subr.bf16.mxu0 0
    %1346 = vmatpush1.bf16.msra.mxu0 0
    %1347 = vmatprep.subr.bf16.mxu0 0
    %1348 = vmatpush1.bf16.msra.mxu0 0
    %1349 = vmatprep.subr.bf16.mxu0 0
    %1350 = vmatpush1.bf16.msra.mxu0 0
    %1351 = vmatprep.subr.bf16.mxu0 0
    %1352 = vmatpush1.bf16.msra.mxu0 0
    %1353 = vmatprep.subr.bf16.mxu0 0
    %1354 = vmatpush1.bf16.msra.mxu0 0
    %1355 = vmatprep.subr.bf16.mxu0 0
    %1356 = vmatpush1.bf16.msra.mxu0 0
    %1357 = vmatprep.subr.bf16.mxu0 0
    %1358 = vmatpush1.bf16.msra.mxu0 0
    %1359 = vmatprep.subr.bf16.mxu0 0
    %1360 = vmatpush1.bf16.msra.mxu0 0
    %1361 = vmatprep.mubr.bf16.mxu0 0
    %1362 = vmatmul.mubr.bf16.gmra.mrb[0].mxu0 %v1327
    %v1363 = vpop.f32.mrb[0].mxu0
    %v1364 = vadd.f32 %v1312, %v1363
    %v1365 = vpop.f32.mrb[0].mxu0
    %v1366 = vpop.f32.mrb[0].mxu0
    %v1367 = vadd.f32 %v1312, %v1366
    %v1368 = vpop.f32.mrb[0].mxu0
    %1369 = vdwg.mxu0
    %v1370 = vmax.f32 %v1364, 0.0
    %v1371 = vmax.f32 %v1367, 0.0
    %v1372 = vpack.c.bf16 %v1371, %v1370
    %v1373 = vld [vmem:[%s11] sm:$0xf]
    %v1374 = vld [vmem:[%s11 + $0x4] sm:$0xf]
    %v1375 = vld [vmem:[%s11 + $0x8] sm:$0xf]
    %v1376 = vld [vmem:[%s11 + $0xc] sm:$0xf]
    %v1377 = vld [vmem:[%s11 + $0x10] sm:$0xf]
    %v1378 = vld [vmem:[%s11 + $0x14] sm:$0xf]
    %v1379 = vld [vmem:[%s11 + $0x18] sm:$0xf]
    %v1380 = vld [vmem:[%s11 + $0x1c] sm:$0xf]
    %v1382 = vlaneseq
    %v1383 = vshrl.u32 %v1382, 7
    %v1384 = vsub.s32 0, %v1383
    %v1385 = vrot.slane %v126, %v1384
    %v1395 = vunpack.c.l.b16 %v1373
    %v1396 = vunpack.c.l.b16 %v1374
    %v1397 = vunpack.c.l.b16 %v1375
    %v1398 = vunpack.c.l.b16 %v1376
    %v1399 = vunpack.c.l.b16 %v1377
    %v1400 = vunpack.c.l.b16 %v1378
    %v1401 = vunpack.c.l.b16 %v1379
    %v1402 = vunpack.c.l.b16 %v1380
    %v1403 = vpack.c.b16 %v1396, %v1395
    %v1404 = vpack.c.b16 %v1398, %v1397
    %v1405 = vpack.c.b16 %v1400, %v1399
    %v1406 = vpack.c.b16 %v1402, %v1401
    %vm1411 = vcmask 523264
    %v1413 = vsel %vm1411, %v1372, 0
    %1415 = vmatprep.subr.bf16.mxu0 0
    %1416 = vmatpush1.bf16.msra.mxu0 %v1403
    %1417 = vmatprep.subr.bf16.mxu0 0
    %1418 = vmatpush1.bf16.msra.mxu0 %v1404
    %1419 = vmatprep.subr.bf16.mxu0 0
    %1420 = vmatpush1.bf16.msra.mxu0 %v1405
    %1421 = vmatprep.subr.bf16.mxu0 0
    %1422 = vmatpush1.bf16.msra.mxu0 %v1406
    %1423 = vmatprep.subr.bf16.mxu0 0
    %1424 = vmatpush1.bf16.msra.mxu0 0
    %1425 = vmatprep.subr.bf16.mxu0 0
    %1426 = vmatpush1.bf16.msra.mxu0 0
    %1427 = vmatprep.subr.bf16.mxu0 0
    %1428 = vmatpush1.bf16.msra.mxu0 0
    %1429 = vmatprep.subr.bf16.mxu0 0
    %1430 = vmatpush1.bf16.msra.mxu0 0
    %1431 = vmatprep.subr.bf16.mxu0 0
    %1432 = vmatpush1.bf16.msra.mxu0 0
    %1433 = vmatprep.subr.bf16.mxu0 0
    %1434 = vmatpush1.bf16.msra.mxu0 0
    %1435 = vmatprep.subr.bf16.mxu0 0
    %1436 = vmatpush1.bf16.msra.mxu0 0
    %1437 = vmatprep.subr.bf16.mxu0 0
    %1438 = vmatpush1.bf16.msra.mxu0 0
    %1439 = vmatprep.subr.bf16.mxu0 0
    %1440 = vmatpush1.bf16.msra.mxu0 0
    %1441 = vmatprep.subr.bf16.mxu0 0
    %1442 = vmatpush1.bf16.msra.mxu0 0
    %1443 = vmatprep.subr.bf16.mxu0 0
    %1444 = vmatpush1.bf16.msra.mxu0 0
    %1445 = vmatprep.subr.bf16.mxu0 0
    %1446 = vmatpush1.bf16.msra.mxu0 0
    %1447 = vmatprep.mubr.bf16.mxu0 0
    %1448 = vmatmul.mubr.bf16.gmra.mrb[0].mxu0 %v1413
    %v1449 = vpop.f32.mrb[0].mxu0
    %v1450 = vadd.f32 %v1385, %v1449
    %v1451 = vpop.f32.mrb[0].mxu0
    %v1452 = vpop.f32.mrb[0].mxu0
    %v1453 = vadd.f32 %v1385, %v1452
    %v1454 = vpop.f32.mrb[0].mxu0
    %1455 = vdwg.mxu0
    %v1456 = vadd.f32 %v1301, %v1450
    %v1457 = vadd.f32 %v1302, %v1453
    %v1458 = vsel %vm219, %v1456, 0.0
    %1459 = vadd.xlane.f32.xlu0 %v1458
    %v1460 = vpop.xlane.xlu0 %1459
    %v1461 = vsel %vm219, %v1457, 0.0
    %1462 = vadd.xlane.f32.xlu0 %v1461
    %v1463 = vpop.xlane.xlu0 %1462
    %v1464 = vmul.f32 %v1460, %v1266
    %v1465 = vmul.f32 %v1463, %v1266
    %v1466 = vsub.f32 %v1456, %v1464
    %v1467 = vsub.f32 %v1457, %v1465
    %v1468 = vmul.f32 %v1466, %v1466
    %v1469 = vmul.f32 %v1467, %v1467
    %v1470 = vsel %vm219, %v1468, 0.0
    %1471 = vadd.xlane.f32.xlu0 %v1470
    %v1472 = vpop.xlane.xlu0 %1471
    %v1473 = vsel %vm219, %v1469, 0.0
    %1474 = vadd.xlane.f32.xlu0 %v1473
    %v1475 = vpop.xlane.xlu0 %1474
    %v1476 = vmul.f32 %v1472, %v1266
    %v1477 = vmul.f32 %v1475, %v1266
    %v1478 = vadd.f32 %v1476, 1e-05
    %v1479 = vadd.f32 %v1477, 1e-05
    %v1480 = vrsqrt.pop %v1478
    %v1481 = vrsqrt.pop %v1479
    %v1482 = vmul.f32 %v1466, %v1480
    %v1483 = vmul.f32 %v1467, %v1481
    %v1485 = vlaneseq
    %v1486 = vshrl.u32 %v1485, 7
    %v1487 = vsub.s32 0, %v1486
    %v1488 = vrot.slane %v127, %v1487
    %v1490 = vmul.f32 %v1482, %v1488
    %v1491 = vmul.f32 %v1483, %v1488
    %v1493 = vlaneseq
    %v1494 = vshrl.u32 %v1493, 7
    %v1495 = vsub.s32 0, %v1494
    %v1496 = vrot.slane %v128, %v1495
    %v1498 = vadd.f32 %v1490, %v1496
    %v1499 = vadd.f32 %v1491, %v1496
    %v1500 = vpack.c.bf16 %v1499, %v1498
    %v1501 = vld [vmem:[%s15] sm:$0xf]
    %v1502 = vld [vmem:[%s15 + $0x4] sm:$0xf]
    %v1503 = vld [vmem:[%s15 + $0x8] sm:$0xf]
    %v1504 = vld [vmem:[%s15 + $0xc] sm:$0xf]
    %v1506 = vlaneseq
    %v1507 = vshrl.u32 %v1506, 7
    %v1508 = vsub.s32 0, %v1507
    %v1509 = vrot.slane %v129, %v1508
    %v1515 = vunpack.c.l.b16 %v1501
    %v1516 = vunpack.c.l.b16 %v1502
    %v1517 = vunpack.c.l.b16 %v1503
    %v1518 = vunpack.c.l.b16 %v1504
    %v1519 = vpack.c.b16 %v1516, %v1515
    %v1520 = vpack.c.b16 %v1518, %v1517
    %v1524 = vsel %vm219, %v1500, 0
    %1526 = vmatprep.subr.bf16.mxu0 0
    %1527 = vmatpush1.bf16.msra.mxu0 %v1519
    %1528 = vmatprep.subr.bf16.mxu0 0
    %1529 = vmatpush1.bf16.msra.mxu0 %v1520
    %1530 = vmatprep.subr.bf16.mxu0 0
    %1531 = vmatpush1.bf16.msra.mxu0 0
    %1532 = vmatprep.subr.bf16.mxu0 0
    %1533 = vmatpush1.bf16.msra.mxu0 0
    %1534 = vmatprep.subr.bf16.mxu0 0
    %1535 = vmatpush1.bf16.msra.mxu0 0
    %1536 = vmatprep.subr.bf16.mxu0 0
    %1537 = vmatpush1.bf16.msra.mxu0 0
    %1538 = vmatprep.subr.bf16.mxu0 0
    %1539 = vmatpush1.bf16.msra.mxu0 0
    %1540 = vmatprep.subr.bf16.mxu0 0
    %1541 = vmatpush1.bf16.msra.mxu0 0
    %1542 = vmatprep.subr.bf16.mxu0 0
    %1543 = vmatpush1.bf16.msra.mxu0 0
    %1544 = vmatprep.subr.bf16.mxu0 0
    %1545 = vmatpush1.bf16.msra.mxu0 0
    %1546 = vmatprep.subr.bf16.mxu0 0
    %1547 = vmatpush1.bf16.msra.mxu0 0
    %1548 = vmatprep.subr.bf16.mxu0 0
    %1549 = vmatpush1.bf16.msra.mxu0 0
    %1550 = vmatprep.subr.bf16.mxu0 0
    %1551 = vmatpush1.bf16.msra.mxu0 0
    %1552 = vmatprep.subr.bf16.mxu0 0
    %1553 = vmatpush1.bf16.msra.mxu0 0
    %1554 = vmatprep.subr.bf16.mxu0 0
    %1555 = vmatpush1.bf16.msra.mxu0 0
    %1556 = vmatprep.subr.bf16.mxu0 0
    %1557 = vmatpush1.bf16.msra.mxu0 0
    %1558 = vmatprep.mubr.bf16.mxu0 0
    %1559 = vmatmul.mubr.bf16.gmra.mrb[0].mxu0 %v1524
    %v1560 = vpop.f32.mrb[0].mxu0
    %v1561 = vadd.f32 %v1509, %v1560
    %v1562 = vpop.f32.mrb[0].mxu0
    %v1563 = vpop.f32.mrb[0].mxu0
    %v1564 = vadd.f32 %v1509, %v1563
    %v1565 = vpop.f32.mrb[0].mxu0
    %1566 = vdwg.mxu0
    %v1567 = vpack.c.bf16 %v1564, %v1561
    %v1569 = vunpack.c.l.b16 %v1567
    %v1570 = vunpack.c.h.b16 %v1567
    %v1571 = vpack.c.b16 %v1569, %v1569
    %v1572 = vpack.c.b16 %v1570, %v1570
    %1575 = vst [vmem:[#allocation12] sm:$0xf] %v1571
    %1576 = vst [vmem:[#allocation12 + $0x4] sm:$0xf] %v1572
    // Predicated region
    $region90: #{tpu_custom_call.1} parent=1 // pred_check
      _
    $region91: #{tpu_custom_call.1} parent=1 // pred_check_branch
      %1578 = sbr.rel (0) target = $region93
    $region92: #{tpu_custom_call.1} parent=1 // pred_region
      %s1580 = ssub.s32 128, 128
      %1581 = vsyncadd [#allocation5], %s1580
      %s1582 = sshll.u32 [#allocation12], 4
      %s1583 = int_to_ptr.vmem [resolvable:$true] %s1582
      %1588 = dma.vmem_to_hbm [thread:$0]  %s1583, 128, %s17, [#allocation5], 64, 64, 4
    $region93: #{tpu_custom_call.1} parent=1 // pred_fallthru
      _
    // Predicated region
    $region94: #{tpu_custom_call.1} parent=1 // pred_check
      _
    $region95: #{tpu_custom_call.1} parent=1 // pred_check_branch
      %1590 = sbr.rel (0) target = $region97
    $region96: #{tpu_custom_call.1} parent=1 // pred_region
      %1591 = dma.done [#allocation5], 128
    $region97: #{tpu_custom_call.1} parent=1 // pred_fallthru
      _
    %1592 = vsyncpa [#allocation4], 1
    %1593 = vsyncpa [#allocation7], 1
    %1594 = vsyncpa [#allocation10], 1
    %1595 = vsyncpa [#allocation5], 1

// kernel: tpu_custom_call.1
$region0: #{tpu_custom_call.1}
  #allocation0 [shape = 'u32[]', space=smem, size = 0x4, offset = 0x4, fixed_abs, tag = 'smem constant byte address 0x4 - core index']
  #allocation1 [shape = 'u32[144,128]{1,0:T(1,128)}', space=vmem, size = 0x12000, scoped, tag = 'internal scratch']
  #allocation2 [shape = 'f32[16,32]{1,0:T(8,128)}', space=vmem, size = 0x2000, scoped, tag = 'scratch operand']
  %s0 = inlined_call_operand.hbm [shape: bf16[16,16], index: 0, kind: input, shape index: {}]
  %s1 = inlined_call_operand.hbm [shape: bf16[16,32], index: 1, kind: input, shape index: {}]
  %s2 = inlined_call_operand.vmem [shape: f32[1,32], index: 2, kind: input, shape index: {}]
  %s3 = inlined_call_operand.vmem [shape: bf16[32,96], index: 3, kind: input, shape index: {}]
  %s4 = inlined_call_operand.vmem [shape: f32[1,96], index: 4, kind: input, shape index: {}]
  %s5 = inlined_call_operand.vmem [shape: bf16[32,32], index: 5, kind: input, shape index: {}]
  %s6 = inlined_call_operand.hbm [shape: f32[1,32], index: 6, kind: input, shape index: {}]
  %s7 = inlined_call_operand.hbm [shape: f32[1,32], index: 7, kind: input, shape index: {}]
  %s8 = inlined_call_operand.hbm [shape: f32[1,32], index: 8, kind: input, shape index: {}]
  %s9 = inlined_call_operand.vmem [shape: bf16[32,64], index: 9, kind: input, shape index: {}]
  %s10 = inlined_call_operand.vmem [shape: f32[1,64], index: 10, kind: input, shape index: {}]
  %s11 = inlined_call_operand.vmem [shape: bf16[64,32], index: 11, kind: input, shape index: {}]
  %s12 = inlined_call_operand.vmem [shape: f32[1,32], index: 12, kind: input, shape index: {}]
  %s13 = inlined_call_operand.vmem [shape: f32[1,32], index: 13, kind: input, shape index: {}]
  %s14 = inlined_call_operand.vmem [shape: f32[1,32], index: 14, kind: input, shape index: {}]
  %s15 = inlined_call_operand.vmem [shape: bf16[32,128], index: 15, kind: input, shape index: {}]
  %s16 = inlined_call_operand.vmem [shape: f32[1,128], index: 16, kind: input, shape index: {}]
  %s17 = inlined_call_operand.hbm [shape: bf16[16,128], index: 17, kind: output, shape index: {}]
  %s18 = sld [smem:[#allocation0]]
  $region98: #{tpu_custom_call.1} parent=0
    _
  %s20 = ssub.s32 1, %s18
  %s21 = scalar_select 0, %s20, %s18
  $region1: #{tpu_custom_call.1} parent=0
    #allocation3 [shape = 'u8[4096]{0}', space=vmem, size = 0x1000, scoped, tag = 'input window, operand 0, single buffered']
    #allocation4 [shape = 's32[1]{0}', space=sflag, size = 0x4, scoped, tag = 'scoped memory for tpu_custom_call.1']
    #allocation5 [shape = 's32[1]{0}', space=sflag, size = 0x4, scoped, tag = 'scoped memory for tpu_custom_call.1']
    #allocation6 [shape = 'u8[4096]{0}', space=vmem, size = 0x1000, scoped, tag = 'input window, operand 1, single buffered']
    #allocation7 [shape = 's32[1]{0}', space=sflag, size = 0x4, scoped, tag = 'scoped memory for tpu_custom_call.1']
    #allocation8 [shape = 'u8[512]{0}', space=vmem, size = 0x400, scoped, tag = 'input window, operand 6, single buffered']
    #allocation9 [shape = 'u8[512]{0}', space=vmem, size = 0x400, scoped, tag = 'input window, operand 7, single buffered']
    #allocation10 [shape = 's32[1]{0}', space=sflag, size = 0x4, scoped, tag = 'scoped memory for tpu_custom_call.1']
    #allocation11 [shape = 'u8[512]{0}', space=vmem, size = 0x400, scoped, tag = 'input window, operand 8, single buffered']
    #allocation12 [shape = 'u8[4096]{0}', space=vmem, size = 0x1000, scoped, tag = 'output window, operand 0, single buffered']
    %22 = vsyncpa [#allocation4], 0
    %23 = vsyncpa [#allocation7], 0
    %24 = vsyncpa [#allocation10], 0
    %25 = vsyncpa [#allocation5], 0
    // Predicated region
    $region2: #{tpu_custom_call.1} parent=1 // pred_check
      _
    $region3: #{tpu_custom_call.1} parent=1 // pred_check_branch
      %27 = sbr.rel (0) target = $region5
    $region4: #{tpu_custom_call.1} parent=1 // pred_region
      %s29 = ssub.s32 128, 128
      %30 = vsyncadd [#allocation4], %s29
      %s31 = sshll.u32 [#allocation3], 4
      %s32 = int_to_ptr.vmem [resolvable:$true] %s31
      %37 = dma.hbm_to_vmem [thread:$0]  %s0, 128, %s32, [#allocation4], 64, 64, 4
    $region5: #{tpu_custom_call.1} parent=1 // pred_fallthru
      _
    // Predicated region
    $region6: #{tpu_custom_call.1} parent=1 // pred_check
      _
    $region7: #{tpu_custom_call.1} parent=1 // pred_check_branch
      %39 = sbr.rel (0) target = $region9
    $region8: #{tpu_custom_call.1} parent=1 // pred_region
      %s41 = ssub.s32 128, 128
      %42 = vsyncadd [#allocation7], %s41
      %s43 = sshll.u32 [#allocation6], 4
      %s44 = int_to_ptr.vmem [resolvable:$true] %s43
      %49 = dma.hbm_to_vmem [thread:$0]  %s1, 128, %s44, [#allocation7], 64, 64, 4
    $region9: #{tpu_custom_call.1} parent=1 // pred_fallthru
      _
    // Predicated region
    $region10: #{tpu_custom_call.1} parent=1 // pred_check
      _
    $region11: #{tpu_custom_call.1} parent=1 // pred_check_branch
      %51 = sbr.rel (0) target = $region13
    $region12: #{tpu_custom_call.1} parent=1 // pred_region
      _
    $region13: #{tpu_custom_call.1} parent=1 // pred_fallthru
      _
    // Predicated region
    $region14: #{tpu_custom_call.1} parent=1 // pred_check
      _
    $region15: #{tpu_custom_call.1} parent=1 // pred_check_branch
      %53 = sbr.rel (0) target = $region17
    $region16: #{tpu_custom_call.1} parent=1 // pred_region
      _
    $region17: #{tpu_custom_call.1} parent=1 // pred_fallthru
      _
    // Predicated region
    $region18: #{tpu_custom_call.1} parent=1 // pred_check
      _
    $region19: #{tpu_custom_call.1} parent=1 // pred_check_branch
      %55 = sbr.rel (0) target = $region21
    $region20: #{tpu_custom_call.1} parent=1 // pred_region
      _
    $region21: #{tpu_custom_call.1} parent=1 // pred_fallthru
      _
    // Predicated region
    $region22: #{tpu_custom_call.1} parent=1 // pred_check
      _
    $region23: #{tpu_custom_call.1} parent=1 // pred_check_branch
      %57 = sbr.rel (0) target = $region25
    $region24: #{tpu_custom_call.1} parent=1 // pred_region
      _
    $region25: #{tpu_custom_call.1} parent=1 // pred_fallthru
      _
    // Predicated region
    $region26: #{tpu_custom_call.1} parent=1 // pred_check
      _
    $region27: #{tpu_custom_call.1} parent=1 // pred_check_branch
      %59 = sbr.rel (0) target = $region29
    $region28: #{tpu_custom_call.1} parent=1 // pred_region
      %s61 = ssub.s32 16, 16
      %62 = vsyncadd [#allocation7], %s61
      %s64 = sshll.u32 [#allocation8], 4
      %s65 = int_to_ptr.vmem [resolvable:$true] %s64
      %67 = dma.hbm_to_vmem [thread:$0]  %s6, 16, %s65, [#allocation7]
    $region29: #{tpu_custom_call.1} parent=1 // pred_fallthru
      _
    // Predicated region
    $region30: #{tpu_custom_call.1} parent=1 // pred_check
      _
    $region31: #{tpu_custom_call.1} parent=1 // pred_check_branch
      %69 = sbr.rel (0) target = $region33
    $region32: #{tpu_custom_call.1} parent=1 // pred_region
      %s71 = ssub.s32 16, 16
      %72 = vsyncadd [#allocation10], %s71
      %s74 = sshll.u32 [#allocation9], 4
      %s75 = int_to_ptr.vmem [resolvable:$true] %s74
      %77 = dma.hbm_to_vmem [thread:$0]  %s7, 16, %s75, [#allocation10]
    $region33: #{tpu_custom_call.1} parent=1 // pred_fallthru
      _
    // Predicated region
    $region34: #{tpu_custom_call.1} parent=1 // pred_check
      _
    $region35: #{tpu_custom_call.1} parent=1 // pred_check_branch
      %79 = sbr.rel (0) target = $region37
    $region36: #{tpu_custom_call.1} parent=1 // pred_region
      %s81 = ssub.s32 16, 16
      %82 = vsyncadd [#allocation10], %s81
      %s84 = sshll.u32 [#allocation11], 4
      %s85 = int_to_ptr.vmem [resolvable:$true] %s84
      %87 = dma.hbm_to_vmem [thread:$0]  %s8, 16, %s85, [#allocation10]
    $region37: #{tpu_custom_call.1} parent=1 // pred_fallthru
      _
    // Predicated region
    $region38: #{tpu_custom_call.1} parent=1 // pred_check
      _
    $region39: #{tpu_custom_call.1} parent=1 // pred_check_branch
      %89 = sbr.rel (0) target = $region41
    $region40: #{tpu_custom_call.1} parent=1 // pred_region
      _
    $region41: #{tpu_custom_call.1} parent=1 // pred_fallthru
      _
    // Predicated region
    $region42: #{tpu_custom_call.1} parent=1 // pred_check
      _
    $region43: #{tpu_custom_call.1} parent=1 // pred_check_branch
      %91 = sbr.rel (0) target = $region45
    $region44: #{tpu_custom_call.1} parent=1 // pred_region
      _
    $region45: #{tpu_custom_call.1} parent=1 // pred_fallthru
      _
    // Predicated region
    $region46: #{tpu_custom_call.1} parent=1 // pred_check
      _
    $region47: #{tpu_custom_call.1} parent=1 // pred_check_branch
      %93 = sbr.rel (0) target = $region49
    $region48: #{tpu_custom_call.1} parent=1 // pred_region
      _
    $region49: #{tpu_custom_call.1} parent=1 // pred_fallthru
      _
    // Predicated region
    $region50: #{tpu_custom_call.1} parent=1 // pred_check
      _
    $region51: #{tpu_custom_call.1} parent=1 // pred_check_branch
      %95 = sbr.rel (0) target = $region53
    $region52: #{tpu_custom_call.1} parent=1 // pred_region
      _
    $region53: #{tpu_custom_call.1} parent=1 // pred_fallthru
      _
    // Predicated region
    $region54: #{tpu_custom_call.1} parent=1 // pred_check
      _
    $region55: #{tpu_custom_call.1} parent=1 // pred_check_branch
      %97 = sbr.rel (0) target = $region57
    $region56: #{tpu_custom_call.1} parent=1 // pred_region
      _
    $region57: #{tpu_custom_call.1} parent=1 // pred_fallthru
      _
    // Predicated region
    $region58: #{tpu_custom_call.1} parent=1 // pred_check
      _
    $region59: #{tpu_custom_call.1} parent=1 // pred_check_branch
      %99 = sbr.rel (0) target = $region61
    $region60: #{tpu_custom_call.1} parent=1 // pred_region
      _
    $region61: #{tpu_custom_call.1} parent=1 // pred_fallthru
      _
    // Predicated region
    $region62: #{tpu_custom_call.1} parent=1 // pred_check
      _
    $region63: #{tpu_custom_call.1} parent=1 // pred_check_branch
      %101 = sbr.rel (0) target = $region65
    $region64: #{tpu_custom_call.1} parent=1 // pred_region
      _
    $region65: #{tpu_custom_call.1} parent=1 // pred_fallthru
      _
    // Predicated region
    $region66: #{tpu_custom_call.1} parent=1 // pred_check
      _
    $region67: #{tpu_custom_call.1} parent=1 // pred_check_branch
      %103 = sbr.rel (0) target = $region69
    $region68: #{tpu_custom_call.1} parent=1 // pred_region
      _
    $region69: #{tpu_custom_call.1} parent=1 // pred_fallthru
      _
    // Predicated region
    $region70: #{tpu_custom_call.1} parent=1 // pred_check
      _
    $region71: #{tpu_custom_call.1} parent=1 // pred_check_branch
      %105 = sbr.rel (0) target = $region73
    $region72: #{tpu_custom_call.1} parent=1 // pred_region
      %106 = dma.done [#allocation4], 128
    $region73: #{tpu_custom_call.1} parent=1 // pred_fallthru
      _
    // Predicated region
    $region74: #{tpu_custom_call.1} parent=1 // pred_check
      _
    $region75: #{tpu_custom_call.1} parent=1 // pred_check_branch
      %108 = sbr.rel (0) target = $region77
    $region76: #{tpu_custom_call.1} parent=1 // pred_region
      %109 = dma.done [#allocation7], 128
    $region77: #{tpu_custom_call.1} parent=1 // pred_fallthru
      _
    // Predicated region
    $region78: #{tpu_custom_call.1} parent=1 // pred_check
      _
    $region79: #{tpu_custom_call.1} parent=1 // pred_check_branch
      %111 = sbr.rel (0) target = $region81
    $region80: #{tpu_custom_call.1} parent=1 // pred_region
      %112 = dma.done [#allocation7], 16
    $region81: #{tpu_custom_call.1} parent=1 // pred_fallthru
      _
    // Predicated region
    $region82: #{tpu_custom_call.1} parent=1 // pred_check
      _
    $region83: #{tpu_custom_call.1} parent=1 // pred_check_branch
      %114 = sbr.rel (0) target = $region85
    $region84: #{tpu_custom_call.1} parent=1 // pred_region
      %115 = dma.done [#allocation10], 16
    $region85: #{tpu_custom_call.1} parent=1 // pred_fallthru
      _
    // Predicated region
    $region86: #{tpu_custom_call.1} parent=1 // pred_check
      _
    $region87: #{tpu_custom_call.1} parent=1 // pred_check_branch
      %117 = sbr.rel (0) target = $region89
    $region88: #{tpu_custom_call.1} parent=1 // pred_region
      %118 = dma.done [#allocation10], 16
    $region89: #{tpu_custom_call.1} parent=1 // pred_fallthru
      _
    %v120 = vld [vmem:[%s2] sm:$0x1]
    %v121 = vld [vmem:[%s4] sm:$0x1]
    %v122 = vld [vmem:[#allocation8] sm:$0x1]
    %v123 = vld [vmem:[#allocation9] sm:$0x1]
    %v124 = vld [vmem:[#allocation11] sm:$0x1]
    %v125 = vld [vmem:[%s10] sm:$0x1]
    %v126 = vld [vmem:[%s12] sm:$0x1]
    %v127 = vld [vmem:[%s13] sm:$0x1]
    %v128 = vld [vmem:[%s14] sm:$0x1]
    %v129 = vld [vmem:[%s16] sm:$0x1]
    %v130 = vld [vmem:[#allocation3] sm:$0xf]
    %v131 = vld [vmem:[#allocation3 + $0x4] sm:$0xf]
    %v132 = vld [vmem:[#allocation6] sm:$0xf]
    %v133 = vld [vmem:[#allocation6 + $0x4] sm:$0xf]
    %v135 = vlaneseq
    %v136 = vshrl.u32 %v135, 7
    %v137 = vsub.s32 0, %v136
    %v138 = vrot.slane %v120, %v137
    %v142 = vunpack.c.l.b16 %v130
    %v143 = vunpack.c.l.b16 %v131
    %v144 = vpack.c.b16 %v143, %v142
    %v147 = vunpack.c.l.b16 %v132
    %v148 = vunpack.c.l.b16 %v133
    %v149 = vpack.c.b16 %v148, %v147
    %vm151 = vcmask 130048
    %v153 = vsel %vm151, %v144, 0
    %155 = vmatprep.subr.bf16.mxu0 0
    %156 = vmatpush1.bf16.msra.mxu0 %v149
    %157 = vmatprep.subr.bf16.mxu0 0
    %158 = vmatpush1.bf16.msra.mxu0 0
    %159 = vmatprep.subr.bf16.mxu0 0
    %160 = vmatpush1.bf16.msra.mxu0 0
    %161 = vmatprep.subr.bf16.mxu0 0
    %162 = vmatpush1.bf16.msra.mxu0 0
    %163 = vmatprep.subr.bf16.mxu0 0
    %164 = vmatpush1.bf16.msra.mxu0 0
    %165 = vmatprep.subr.bf16.mxu0 0
    %166 = vmatpush1.bf16.msra.mxu0 0
    %167 = vmatprep.subr.bf16.mxu0 0
    %168 = vmatpush1.bf16.msra.mxu0 0
    %169 = vmatprep.subr.bf16.mxu0 0
    %170 = vmatpush1.bf16.msra.mxu0 0
    %171 = vmatprep.subr.bf16.mxu0 0
    %172 = vmatpush1.bf16.msra.mxu0 0
    %173 = vmatprep.subr.bf16.mxu0 0
    %174 = vmatpush1.bf16.msra.mxu0 0
    %175 = vmatprep.subr.bf16.mxu0 0
    %176 = vmatpush1.bf16.msra.mxu0 0
    %177 = vmatprep.subr.bf16.mxu0 0
    %178 = vmatpush1.bf16.msra.mxu0 0
    %179 = vmatprep.subr.bf16.mxu0 0
    %180 = vmatpush1.bf16.msra.mxu0 0
    %181 = vmatprep.subr.bf16.mxu0 0
    %182 = vmatpush1.bf16.msra.mxu0 0
    %183 = vmatprep.subr.bf16.mxu0 0
    %184 = vmatpush1.bf16.msra.mxu0 0
    %185 = vmatprep.subr.bf16.mxu0 0
    %186 = vmatpush1.bf16.msra.mxu0 0
    %187 = vmatprep.mubr.bf16.mxu0 0
    %188 = vmatmul.mubr.bf16.gmra.mrb[0].mxu0 %v153
    %v189 = vpop.f32.mrb[0].mxu0
    %v190 = vadd.f32 %v138, %v189
    %v191 = vpop.f32.mrb[0].mxu0
    %v192 = vpop.f32.mrb[0].mxu0
    %v193 = vadd.f32 %v138, %v192
    %v194 = vpop.f32.mrb[0].mxu0
    %195 = vdwg.mxu0
    %v196 = vpack.c.bf16 %v193, %v190
    %v197 = vld [vmem:[%s3] sm:$0xf]
    %v198 = vld [vmem:[%s3 + $0x4] sm:$0xf]
    %v199 = vld [vmem:[%s3 + $0x8] sm:$0xf]
    %v200 = vld [vmem:[%s3 + $0xc] sm:$0xf]
    %v202 = vlaneseq
    %v203 = vshrl.u32 %v202, 7
    %v204 = vsub.s32 0, %v203
    %v205 = vrot.slane %v121, %v204
    %v211 = vunpack.c.l.b16 %v197
    %v212 = vunpack.c.l.b16 %v198
    %v213 = vunpack.c.l.b16 %v199
    %v214 = vunpack.c.l.b16 %v200
    %v215 = vpack.c.b16 %v212, %v211
    %v216 = vpack.c.b16 %v214, %v213
    %vm219 = vcmask 261120
    %v221 = vsel %vm219, %v196, 0
    %223 = vmatprep.subr.bf16.mxu0 0
    %224 = vmatpush1.bf16.msra.mxu0 %v215
    %225 = vmatprep.subr.bf16.mxu0 0
    %226 = vmatpush1.bf16.msra.mxu0 %v216
    %227 = vmatprep.subr.bf16.mxu0 0
    %228 = vmatpush1.bf16.msra.mxu0 0
    %229 = vmatprep.subr.bf16.mxu0 0
    %230 = vmatpush1.bf16.msra.mxu0 0
    %231 = vmatprep.subr.bf16.mxu0 0
    %232 = vmatpush1.bf16.msra.mxu0 0
    %233 = vmatprep.subr.bf16.mxu0 0
    %234 = vmatpush1.bf16.msra.mxu0 0
    %235 = vmatprep.subr.bf16.mxu0 0
    %236 = vmatpush1.bf16.msra.mxu0 0
    %237 = vmatprep.subr.bf16.mxu0 0
    %238 = vmatpush1.bf16.msra.mxu0 0
    %239 = vmatprep.subr.bf16.mxu0 0
    %240 = vmatpush1.bf16.msra.mxu0 0
    %241 = vmatprep.subr.bf16.mxu0 0
    %242 = vmatpush1.bf16.msra.mxu0 0
    %243 = vmatprep.subr.bf16.mxu0 0
    %244 = vmatpush1.bf16.msra.mxu0 0
    %245 = vmatprep.subr.bf16.mxu0 0
    %246 = vmatpush1.bf16.msra.mxu0 0
    %247 = vmatprep.subr.bf16.mxu0 0
    %248 = vmatpush1.bf16.msra.mxu0 0
    %249 = vmatprep.subr.bf16.mxu0 0
    %250 = vmatpush1.bf16.msra.mxu0 0
    %251 = vmatprep.subr.bf16.mxu0 0
    %252 = vmatpush1.bf16.msra.mxu0 0
    %253 = vmatprep.subr.bf16.mxu0 0
    %254 = vmatpush1.bf16.msra.mxu0 0
    %255 = vmatprep.mubr.bf16.mxu0 0
    %256 = vmatmul.mubr.bf16.gmra.mrb[0].mxu0 %v221
    %v257 = vpop.f32.mrb[0].mxu0
    %v258 = vadd.f32 %v205, %v257
    %v259 = vpop.f32.mrb[0].mxu0
    %v260 = vpop.f32.mrb[0].mxu0
    %v261 = vadd.f32 %v205, %v260
    %v262 = vpop.f32.mrb[0].mxu0
    %263 = vdwg.mxu0
    %v264 = vpack.c.bf16 %v258, %v258
    %266 = vrot.lane.b32.xlu0 %v264, 96
    %v267 = vpop.permute.xlu0 %266
    %vm268 = vcmask 64512
    %v270 = vsel %vm268, %v264, 0
    %v273 = vsel %vm268, %v267, 0
    %275 = vmatprep.subr.bf16.mxu0 0
    %276 = vmatpush1.bf16.xpose.msra.mxu0 %v273
    %277 = vmatprep.subr.bf16.mxu0 0
    %278 = vmatpush1.bf16.xpose.msra.mxu0 0
    %279 = vmatprep.subr.bf16.mxu0 0
    %280 = vmatpush1.bf16.xpose.msra.mxu0 0
    %281 = vmatprep.subr.bf16.mxu0 0
    %282 = vmatpush1.bf16.xpose.msra.mxu0 0
    %283 = vmatprep.subr.bf16.mxu0 0
    %284 = vmatpush1.bf16.xpose.msra.mxu0 0
    %285 = vmatprep.subr.bf16.mxu0 0
    %286 = vmatpush1.bf16.xpose.msra.mxu0 0
    %287 = vmatprep.subr.bf16.mxu0 0
    %288 = vmatpush1.bf16.xpose.msra.mxu0 0
    %289 = vmatprep.subr.bf16.mxu0 0
    %290 = vmatpush1.bf16.xpose.msra.mxu0 0
    %291 = vmatprep.subr.bf16.mxu0 0
    %292 = vmatpush1.bf16.xpose.msra.mxu0 0
    %293 = vmatprep.subr.bf16.mxu0 0
    %294 = vmatpush1.bf16.xpose.msra.mxu0 0
    %295 = vmatprep.subr.bf16.mxu0 0
    %296 = vmatpush1.bf16.xpose.msra.mxu0 0
    %297 = vmatprep.subr.bf16.mxu0 0
    %298 = vmatpush1.bf16.xpose.msra.mxu0 0
    %299 = vmatprep.subr.bf16.mxu0 0
    %300 = vmatpush1.bf16.xpose.msra.mxu0 0
    %301 = vmatprep.subr.bf16.mxu0 0
    %302 = vmatpush1.bf16.xpose.msra.mxu0 0
    %303 = vmatprep.subr.bf16.mxu0 0
    %304 = vmatpush1.bf16.xpose.msra.mxu0 0
    %305 = vmatprep.subr.bf16.mxu0 0
    %306 = vmatpush1.bf16.xpose.msra.mxu0 0
    %307 = vmatprep.mubr.bf16.mxu0 0
    %308 = vmatmul.mubr.bf16.gmra.mrb[0].mxu0 %v270
    %v309 = vpop.f32.mrb[0].mxu0
    %v310 = vadd.f32 0.0, %v309
    %v311 = vpop.f32.mrb[0].mxu0
    %v312 = vpop.f32.mrb[0].mxu0
    %v313 = vpop.f32.mrb[0].mxu0
    %314 = vdwg.mxu0
    %v315 = vmul.f32 %v310, 0.35355338
    %v316 = vsel %vm268, %v315, -inf
    %317 = vmax.xlane.f32.xlu0 %v316
    %v318 = vpop.xlane.xlu0 %317
    %v319 = vsub.f32 %v315, %v318
    %v320 = vmul.f32 %v319, 1.442695
    %v321 = vpow.pop %v320
    %v322 = vsel %vm268, %v321, 0.0
    %323 = vadd.xlane.f32.xlu0 %v322
    %v324 = vpop.xlane.xlu0 %323
    %v325 = vrcp.pop %v324
    %v326 = vmul.f32 %v321, %v325
    %v327 = vpack.c.bf16 %v326, %v326
    %328 = vrot.lane.b32.xlu0 %v264, 64
    %v329 = vpop.permute.xlu0 %328
    %v331 = vsel %vm268, %v327, 0
    %vm333 = vcmask 1043456
    %v335 = vsel %vm333, %v329, 0
    %337 = vmatprep.subr.bf16.mxu0 0
    %338 = vmatpush1.bf16.msra.mxu0 %v335
    %339 = vmatprep.subr.bf16.mxu0 0
    %340 = vmatpush1.bf16.msra.mxu0 0
    %341 = vmatprep.subr.bf16.mxu0 0
    %342 = vmatpush1.bf16.msra.mxu0 0
    %343 = vmatprep.subr.bf16.mxu0 0
    %344 = vmatpush1.bf16.msra.mxu0 0
    %345 = vmatprep.subr.bf16.mxu0 0
    %346 = vmatpush1.bf16.msra.mxu0 0
    %347 = vmatprep.subr.bf16.mxu0 0
    %348 = vmatpush1.bf16.msra.mxu0 0
    %349 = vmatprep.subr.bf16.mxu0 0
    %350 = vmatpush1.bf16.msra.mxu0 0
    %351 = vmatprep.subr.bf16.mxu0 0
    %352 = vmatpush1.bf16.msra.mxu0 0
    %353 = vmatprep.subr.bf16.mxu0 0
    %354 = vmatpush1.bf16.msra.mxu0 0
    %355 = vmatprep.subr.bf16.mxu0 0
    %356 = vmatpush1.bf16.msra.mxu0 0
    %357 = vmatprep.subr.bf16.mxu0 0
    %358 = vmatpush1.bf16.msra.mxu0 0
    %359 = vmatprep.subr.bf16.mxu0 0
    %360 = vmatpush1.bf16.msra.mxu0 0
    %361 = vmatprep.subr.bf16.mxu0 0
    %362 = vmatpush1.bf16.msra.mxu0 0
    %363 = vmatprep.subr.bf16.mxu0 0
    %364 = vmatpush1.bf16.msra.mxu0 0
    %365 = vmatprep.subr.bf16.mxu0 0
    %366 = vmatpush1.bf16.msra.mxu0 0
    %367 = vmatprep.subr.bf16.mxu0 0
    %368 = vmatpush1.bf16.msra.mxu0 0
    %369 = vmatprep.mubr.bf16.mxu0 0
    %370 = vmatmul.mubr.bf16.gmra.mrb[0].mxu0 %v331
    %v371 = vpop.f32.mrb[0].mxu0
    %v372 = vadd.f32 0.0, %v371
    %v373 = vpop.f32.mrb[0].mxu0
    %v374 = vpop.f32.mrb[0].mxu0
    %v375 = vpop.f32.mrb[0].mxu0
    %376 = vdwg.mxu0
    %377 = vst.msk [vmem:[#allocation2] sm:$0xff] %vm268, %v372
    %378 = vrot.lane.b32.xlu0 %v264, 120
    %v379 = vpop.permute.xlu0 %378
    %380 = vrot.lane.b32.xlu0 %v264, 88
    %v381 = vpop.permute.xlu0 %380
    %v383 = vsel %vm268, %v379, 0
    %v386 = vsel %vm268, %v381, 0
    %388 = vmatprep.subr.bf16.mxu0 0
    %389 = vmatpush1.bf16.xpose.msra.mxu0 %v386
    %390 = vmatprep.subr.bf16.mxu0 0
    %391 = vmatpush1.bf16.xpose.msra.mxu0 0
    %392 = vmatprep.subr.bf16.mxu0 0
    %393 = vmatpush1.bf16.xpose.msra.mxu0 0
    %394 = vmatprep.subr.bf16.mxu0 0
    %395 = vmatpush1.bf16.xpose.msra.mxu0 0
    %396 = vmatprep.subr.bf16.mxu0 0
    %397 = vmatpush1.bf16.xpose.msra.mxu0 0
    %398 = vmatprep.subr.bf16.mxu0 0
    %399 = vmatpush1.bf16.xpose.msra.mxu0 0
    %400 = vmatprep.subr.bf16.mxu0 0
    %401 = vmatpush1.bf16.xpose.msra.mxu0 0
    %402 = vmatprep.subr.bf16.mxu0 0
    %403 = vmatpush1.bf16.xpose.msra.mxu0 0
    %404 = vmatprep.subr.bf16.mxu0 0
    %405 = vmatpush1.bf16.xpose.msra.mxu0 0
    %406 = vmatprep.subr.bf16.mxu0 0
    %407 = vmatpush1.bf16.xpose.msra.mxu0 0
    %408 = vmatprep.subr.bf16.mxu0 0
    %409 = vmatpush1.bf16.xpose.msra.mxu0 0
    %410 = vmatprep.subr.bf16.mxu0 0
    %411 = vmatpush1.bf16.xpose.msra.mxu0 0
    %412 = vmatprep.subr.bf16.mxu0 0
    %413 = vmatpush1.bf16.xpose.msra.mxu0 0
    %414 = vmatprep.subr.bf16.mxu0 0
    %415 = vmatpush1.bf16.xpose.msra.mxu0 0
    %416 = vmatprep.subr.bf16.mxu0 0
    %417 = vmatpush1.bf16.xpose.msra.mxu0 0
    %418 = vmatprep.subr.bf16.mxu0 0
    %419 = vmatpush1.bf16.xpose.msra.mxu0 0
    %420 = vmatprep.mubr.bf16.mxu0 0
    %421 = vmatmul.mubr.bf16.gmra.mrb[0].mxu0 %v383
    %v422 = vpop.f32.mrb[0].mxu0
    %v423 = vadd.f32 0.0, %v422
    %v424 = vpop.f32.mrb[0].mxu0
    %v425 = vpop.f32.mrb[0].mxu0
    %v426 = vpop.f32.mrb[0].mxu0
    %427 = vdwg.mxu0
    %v428 = vmul.f32 %v423, 0.35355338
    %v429 = vsel %vm268, %v428, -inf
    %430 = vmax.xlane.f32.xlu0 %v429
    %v431 = vpop.xlane.xlu0 %430
    %v432 = vsub.f32 %v428, %v431
    %v433 = vmul.f32 %v432, 1.442695
    %v434 = vpow.pop %v433
    %v435 = vsel %vm268, %v434, 0.0
    %436 = vadd.xlane.f32.xlu0 %v435
    %v437 = vpop.xlane.xlu0 %436
    %v438 = vrcp.pop %v437
    %v439 = vmul.f32 %v434, %v438
    %v440 = vpack.c.bf16 %v439, %v439
    %441 = vrot.lane.b32.xlu0 %v264, 56
    %v442 = vpop.permute.xlu0 %441
    %v444 = vsel %vm268, %v440, 0
    %v447 = vsel %vm333, %v442, 0
    %449 = vmatprep.subr.bf16.mxu0 0
    %450 = vmatpush1.bf16.msra.mxu0 %v447
    %451 = vmatprep.subr.bf16.mxu0 0
    %452 = vmatpush1.bf16.msra.mxu0 0
    %453 = vmatprep.subr.bf16.mxu0 0
    %454 = vmatpush1.bf16.msra.mxu0 0
    %455 = vmatprep.subr.bf16.mxu0 0
    %456 = vmatpush1.bf16.msra.mxu0 0
    %457 = vmatprep.subr.bf16.mxu0 0
    %458 = vmatpush1.bf16.msra.mxu0 0
    %459 = vmatprep.subr.bf16.mxu0 0
    %460 = vmatpush1.bf16.msra.mxu0 0
    %461 = vmatprep.subr.bf16.mxu0 0
    %462 = vmatpush1.bf16.msra.mxu0 0
    %463 = vmatprep.subr.bf16.mxu0 0
    %464 = vmatpush1.bf16.msra.mxu0 0
    %465 = vmatprep.subr.bf16.mxu0 0
    %466 = vmatpush1.bf16.msra.mxu0 0
    %467 = vmatprep.subr.bf16.mxu0 0
    %468 = vmatpush1.bf16.msra.mxu0 0
    %469 = vmatprep.subr.bf16.mxu0 0
    %470 = vmatpush1.bf16.msra.mxu0 0
    %471 = vmatprep.subr.bf16.mxu0 0
    %472 = vmatpush1.bf16.msra.mxu0 0
    %473 = vmatprep.subr.bf16.mxu0 0
    %474 = vmatpush1.bf16.msra.mxu0 0
    %475 = vmatprep.subr.bf16.mxu0 0
    %476 = vmatpush1.bf16.msra.mxu0 0
    %477 = vmatprep.subr.bf16.mxu0 0
    %478 = vmatpush1.bf16.msra.mxu0 0
    %479 = vmatprep.subr.bf16.mxu0 0
    %480 = vmatpush1.bf16.msra.mxu0 0
    %481 = vmatprep.mubr.bf16.mxu0 0
    %482 = vmatmul.mubr.bf16.gmra.mrb[0].mxu0 %v444
    %v483 = vpop.f32.mrb[0].mxu0
    %v484 = vadd.f32 0.0, %v483
    %v485 = vpop.f32.mrb[0].mxu0
    %v486 = vpop.f32.mrb[0].mxu0
    %v487 = vpop.f32.mrb[0].mxu0
    %488 = vdwg.mxu0
    %490 = vrot.lane.b32.xlu0 %v484, 8
    %v491 = vpop.permute.xlu0 %490
    %vm493 = vcmask 130112
    %494 = vst.msk [vmem:[#allocation2] sm:$0xff] %vm493, %v491
    %495 = vrot.lane.b32.xlu0 %v264, 112
    %v496 = vpop.permute.xlu0 %495
    %497 = vrot.lane.b32.xlu0 %v264, 80
    %v498 = vpop.permute.xlu0 %497
    %v500 = vsel %vm268, %v496, 0
    %v503 = vsel %vm268, %v498, 0
    %505 = vmatprep.subr.bf16.mxu0 0
    %506 = vmatpush1.bf16.xpose.msra.mxu0 %v503
    %507 = vmatprep.subr.bf16.mxu0 0
    %508 = vmatpush1.bf16.xpose.msra.mxu0 0
    %509 = vmatprep.subr.bf16.mxu0 0
    %510 = vmatpush1.bf16.xpose.msra.mxu0 0
    %511 = vmatprep.subr.bf16.mxu0 0
    %512 = vmatpush1.bf16.xpose.msra.mxu0 0
    %513 = vmatprep.subr.bf16.mxu0 0
    %514 = vmatpush1.bf16.xpose.msra.mxu0 0
    %515 = vmatprep.subr.bf16.mxu0 0
    %516 = vmatpush1.bf16.xpose.msra.mxu0 0
    %517 = vmatprep.subr.bf16.mxu0 0
    %518 = vmatpush1.bf16.xpose.msra.mxu0 0
    %519 = vmatprep.subr.bf16.mxu0 0
    %520 = vmatpush1.bf16.xpose.msra.mxu0 0
    %521 = vmatprep.subr.bf16.mxu0 0
    %522 = vmatpush1.bf16.xpose.msra.mxu0 0
    %523 = vmatprep.subr.bf16.mxu0 0
    %524 = vmatpush1.bf16.xpose.msra.mxu0 0
    %525 = vmatprep.subr.bf16.mxu0 0
    %526 = vmatpush1.bf16.xpose.msra.mxu0 0
    %527 = vmatprep.subr.bf16.mxu0 0
    %528 = vmatpush1.bf16.xpose.msra.mxu0 0
    %529 = vmatprep.subr.bf16.mxu0 0
    %530 = vmatpush1.bf16.xpose.msra.mxu0 0
    %531 = vmatprep.subr.bf16.mxu0 0
    %532 = vmatpush1.bf16.xpose.msra.mxu0 0
    %533 = vmatprep.subr.bf16.mxu0 0
    %534 = vmatpush1.bf16.xpose.msra.mxu0 0
    %535 = vmatprep.subr.bf16.mxu0 0
    %536 = vmatpush1.bf16.xpose.msra.mxu0 0
    %537 = vmatprep.mubr.bf16.mxu0 0
    %538 = vmatmul.mubr.bf16.gmra.mrb[0].mxu0 %v500
    %v539 = vpop.f32.mrb[0].mxu0
    %v540 = vadd.f32 0.0, %v539
    %v541 = vpop.f32.mrb[0].mxu0
    %v542 = vpop.f32.mrb[0].mxu0
    %v543 = vpop.f32.mrb[0].mxu0
    %544 = vdwg.mxu0
    %v545 = vmul.f32 %v540, 0.35355338
    %v546 = vsel %vm268, %v545, -inf
    %547 = vmax.xlane.f32.xlu0 %v546
    %v548 = vpop.xlane.xlu0 %547
    %v549 = vsub.f32 %v545, %v548
    %v550 = vmul.f32 %v549, 1.442695
    %v551 = vpow.pop %v550
    %v552 = vsel %vm268, %v551, 0.0
    %553 = vadd.xlane.f32.xlu0 %v552
    %v554 = vpop.xlane.xlu0 %553
    %v555 = vrcp.pop %v554
    %v556 = vmul.f32 %v551, %v555
    %v557 = vpack.c.bf16 %v556, %v556
    %558 = vrot.lane.b32.xlu0 %v264, 48
    %v559 = vpop.permute.xlu0 %558
    %v561 = vsel %vm268, %v557, 0
    %v564 = vsel %vm333, %v559, 0
    %566 = vmatprep.subr.bf16.mxu0 0
    %567 = vmatpush1.bf16.msra.mxu0 %v564
    %568 = vmatprep.subr.bf16.mxu0 0
    %569 = vmatpush1.bf16.msra.mxu0 0
    %570 = vmatprep.subr.bf16.mxu0 0
    %571 = vmatpush1.bf16.msra.mxu0 0
    %572 = vmatprep.subr.bf16.mxu0 0
    %573 = vmatpush1.bf16.msra.mxu0 0
    %574 = vmatprep.subr.bf16.mxu0 0
    %575 = vmatpush1.bf16.msra.mxu0 0
    %576 = vmatprep.subr.bf16.mxu0 0
    %577 = vmatpush1.bf16.msra.mxu0 0
    %578 = vmatprep.subr.bf16.mxu0 0
    %579 = vmatpush1.bf16.msra.mxu0 0
    %580 = vmatprep.subr.bf16.mxu0 0
    %581 = vmatpush1.bf16.msra.mxu0 0
    %582 = vmatprep.subr.bf16.mxu0 0
    %583 = vmatpush1.bf16.msra.mxu0 0
    %584 = vmatprep.subr.bf16.mxu0 0
    %585 = vmatpush1.bf16.msra.mxu0 0
    %586 = vmatprep.subr.bf16.mxu0 0
    %587 = vmatpush1.bf16.msra.mxu0 0
    %588 = vmatprep.subr.bf16.mxu0 0
    %589 = vmatpush1.bf16.msra.mxu0 0
    %590 = vmatprep.subr.bf16.mxu0 0
    %591 = vmatpush1.bf16.msra.mxu0 0
    %592 = vmatprep.subr.bf16.mxu0 0
    %593 = vmatpush1.bf16.msra.mxu0 0
    %594 = vmatprep.subr.bf16.mxu0 0
    %595 = vmatpush1.bf16.msra.mxu0 0
    %596 = vmatprep.subr.bf16.mxu0 0
    %597 = vmatpush1.bf16.msra.mxu0 0
    %598 = vmatprep.mubr.bf16.mxu0 0
    %599 = vmatmul.mubr.bf16.gmra.mrb[0].mxu0 %v561
    %v600 = vpop.f32.mrb[0].mxu0
    %v601 = vadd.f32 0.0, %v600
    %v602 = vpop.f32.mrb[0].mxu0
    %v603 = vpop.f32.mrb[0].mxu0
    %v604 = vpop.f32.mrb[0].mxu0
    %605 = vdwg.mxu0
    %607 = vrot.lane.b32.xlu0 %v601, 16
    %v608 = vpop.permute.xlu0 %607
    %vm610 = vcmask 195712
    %611 = vst.msk [vmem:[#allocation2] sm:$0xff] %vm610, %v608
    %612 = vrot.lane.b32.xlu0 %v264, 104
    %v613 = vpop.permute.xlu0 %612
    %614 = vrot.lane.b32.xlu0 %v264, 72
    %v615 = vpop.permute.xlu0 %614
    %v617 = vsel %vm268, %v613, 0
    %v620 = vsel %vm268, %v615, 0
    %622 = vmatprep.subr.bf16.mxu0 0
    %623 = vmatpush1.bf16.xpose.msra.mxu0 %v620
    %624 = vmatprep.subr.bf16.mxu0 0
    %625 = vmatpush1.bf16.xpose.msra.mxu0 0
    %626 = vmatprep.subr.bf16.mxu0 0
    %627 = vmatpush1.bf16.xpose.msra.mxu0 0
    %628 = vmatprep.subr.bf16.mxu0 0
    %629 = vmatpush1.bf16.xpose.msra.mxu0 0
    %630 = vmatprep.subr.bf16.mxu0 0
    %631 = vmatpush1.bf16.xpose.msra.mxu0 0
    %632 = vmatprep.subr.bf16.mxu0 0
    %633 = vmatpush1.bf16.xpose.msra.mxu0 0
    %634 = vmatprep.subr.bf16.mxu0 0
    %635 = vmatpush1.bf16.xpose.msra.mxu0 0
    %636 = vmatprep.subr.bf16.mxu0 0
    %637 = vmatpush1.bf16.xpose.msra.mxu0 0
    %638 = vmatprep.subr.bf16.mxu0 0
    %639 = vmatpush1.bf16.xpose.msra.mxu0 0
    %640 = vmatprep.subr.bf16.mxu0 0
    %641 = vmatpush1.bf16.xpose.msra.mxu0 0
    %642 = vmatprep.subr.bf16.mxu0 0
    %643 = vmatpush1.bf16.xpose.msra.mxu0 0
    %644 = vmatprep.subr.bf16.mxu0 0
    %645 = vmatpush1.bf16.xpose.msra.mxu0 0
    %646 = vmatprep.subr.bf16.mxu0 0
    %647 = vmatpush1.bf16.xpose.msra.mxu0 0
    %648 = vmatprep.subr.bf16.mxu0 0
    %649 = vmatpush1.bf16.xpose.msra.mxu0 0
    %650 = vmatprep.subr.bf16.mxu0 0
    %651 = vmatpush1.bf16.xpose.msra.mxu0 0
    %652 = vmatprep.subr.bf16.mxu0 0
    %653 = vmatpush1.bf16.xpose.msra.mxu0 0
    %654 = vmatprep.mubr.bf16.mxu0 0
    %655 = vmatmul.mubr.bf16.gmra.mrb[0].mxu0 %v617
    %v656 = vpop.f32.mrb[0].mxu0
    %v657 = vadd.f32 0.0, %v656
    %v658 = vpop.f32.mrb[0].mxu0
    %v659 = vpop.f32.mrb[0].mxu0
    %v660 = vpop.f32.mrb[0].mxu0
    %661 = vdwg.mxu0
    %v662 = vmul.f32 %v657, 0.35355338
    %v663 = vsel %vm268, %v662, -inf
    %664 = vmax.xlane.f32.xlu0 %v663
    %v665 = vpop.xlane.xlu0 %664
    %v666 = vsub.f32 %v662, %v665
    %v667 = vmul.f32 %v666, 1.442695
    %v668 = vpow.pop %v667
    %v669 = vsel %vm268, %v668, 0.0
    %670 = vadd.xlane.f32.xlu0 %v669
    %v671 = vpop.xlane.xlu0 %670
    %v672 = vrcp.pop %v671
    %v673 = vmul.f32 %v668, %v672
    %v674 = vpack.c.bf16 %v673, %v673
    %675 = vrot.lane.b32.xlu0 %v264, 40
    %v676 = vpop.permute.xlu0 %675
    %v678 = vsel %vm268, %v674, 0
    %v681 = vsel %vm333, %v676, 0
    %683 = vmatprep.subr.bf16.mxu0 0
    %684 = vmatpush1.bf16.msra.mxu0 %v681
    %685 = vmatprep.subr.bf16.mxu0 0
    %686 = vmatpush1.bf16.msra.mxu0 0
    %687 = vmatprep.subr.bf16.mxu0 0
    %688 = vmatpush1.bf16.msra.mxu0 0
    %689 = vmatprep.subr.bf16.mxu0 0
    %690 = vmatpush1.bf16.msra.mxu0 0
    %691 = vmatprep.subr.bf16.mxu0 0
    %692 = vmatpush1.bf16.msra.mxu0 0
    %693 = vmatprep.subr.bf16.mxu0 0
    %694 = vmatpush1.bf16.msra.mxu0 0
    %695 = vmatprep.subr.bf16.mxu0 0
    %696 = vmatpush1.bf16.msra.mxu0 0
    %697 = vmatprep.subr.bf16.mxu0 0
    %698 = vmatpush1.bf16.msra.mxu0 0
    %699 = vmatprep.subr.bf16.mxu0 0
    %700 = vmatpush1.bf16.msra.mxu0 0
    %701 = vmatprep.subr.bf16.mxu0 0
    %702 = vmatpush1.bf16.msra.mxu0 0
    %703 = vmatprep.subr.bf16.mxu0 0
    %704 = vmatpush1.bf16.msra.mxu0 0
    %705 = vmatprep.subr.bf16.mxu0 0
    %706 = vmatpush1.bf16.msra.mxu0 0
    %707 = vmatprep.subr.bf16.mxu0 0
    %708 = vmatpush1.bf16.msra.mxu0 0
    %709 = vmatprep.subr.bf16.mxu0 0
    %710 = vmatpush1.bf16.msra.mxu0 0
    %711 = vmatprep.subr.bf16.mxu0 0
    %712 = vmatpush1.bf16.msra.mxu0 0
    %713 = vmatprep.subr.bf16.mxu0 0
    %714 = vmatpush1.bf16.msra.mxu0 0
    %715 = vmatprep.mubr.bf16.mxu0 0
    %716 = vmatmul.mubr.bf16.gmra.mrb[0].mxu0 %v678
    %v717 = vpop.f32.mrb[0].mxu0
    %v718 = vadd.f32 0.0, %v717
    %v719 = vpop.f32.mrb[0].mxu0
    %v720 = vpop.f32.mrb[0].mxu0
    %v721 = vpop.f32.mrb[0].mxu0
    %722 = vdwg.mxu0
    %724 = vrot.lane.b32.xlu0 %v718, 24
    %v725 = vpop.permute.xlu0 %724
    %vm727 = vcmask 261312
    %728 = vst.msk [vmem:[#allocation2] sm:$0xff] %vm727, %v725
    %v729 = vpack.c.bf16 %v261, %v261
    %731 = vrot.lane.b32.xlu0 %v729, 96
    %v732 = vpop.permute.xlu0 %731
    %v734 = vsel %vm268, %v729, 0
    %v737 = vsel %vm268, %v732, 0
    %739 = vmatprep.subr.bf16.mxu0 0
    %740 = vmatpush1.bf16.xpose.msra.mxu0 %v737
    %741 = vmatprep.subr.bf16.mxu0 0
    %742 = vmatpush1.bf16.xpose.msra.mxu0 0
    %743 = vmatprep.subr.bf16.mxu0 0
    %744 = vmatpush1.bf16.xpose.msra.mxu0 0
    %745 = vmatprep.subr.bf16.mxu0 0
    %746 = vmatpush1.bf16.xpose.msra.mxu0 0
    %747 = vmatprep.subr.bf16.mxu0 0
    %748 = vmatpush1.bf16.xpose.msra.mxu0 0
    %749 = vmatprep.subr.bf16.mxu0 0
    %750 = vmatpush1.bf16.xpose.msra.mxu0 0
    %751 = vmatprep.subr.bf16.mxu0 0
    %752 = vmatpush1.bf16.xpose.msra.mxu0 0
    %753 = vmatprep.subr.bf16.mxu0 0
    %754 = vmatpush1.bf16.xpose.msra.mxu0 0
    %755 = vmatprep.subr.bf16.mxu0 0
    %756 = vmatpush1.bf16.xpose.msra.mxu0 0
    %757 = vmatprep.subr.bf16.mxu0 0
    %758 = vmatpush1.bf16.xpose.msra.mxu0 0
    %759 = vmatprep.subr.bf16.mxu0 0
    %760 = vmatpush1.bf16.xpose.msra.mxu0 0
    %761 = vmatprep.subr.bf16.mxu0 0
    %762 = vmatpush1.bf16.xpose.msra.mxu0 0
    %763 = vmatprep.subr.bf16.mxu0 0
    %764 = vmatpush1.bf16.xpose.msra.mxu0 0
    %765 = vmatprep.subr.bf16.mxu0 0
    %766 = vmatpush1.bf16.xpose.msra.mxu0 0
    %767 = vmatprep.subr.bf16.mxu0 0
    %768 = vmatpush1.bf16.xpose.msra.mxu0 0
    %769 = vmatprep.subr.bf16.mxu0 0
    %770 = vmatpush1.bf16.xpose.msra.mxu0 0
    %771 = vmatprep.mubr.bf16.mxu0 0
    %772 = vmatmul.mubr.bf16.gmra.mrb[0].mxu0 %v734
    %v773 = vpop.f32.mrb[0].mxu0
    %v774 = vadd.f32 0.0, %v773
    %v775 = vpop.f32.mrb[0].mxu0
    %v776 = vpop.f32.mrb[0].mxu0
    %v777 = vpop.f32.mrb[0].mxu0
    %778 = vdwg.mxu0
    %v779 = vmul.f32 %v774, 0.35355338
    %v780 = vsel %vm268, %v779, -inf
    %781 = vmax.xlane.f32.xlu0 %v780
    %v782 = vpop.xlane.xlu0 %781
    %v783 = vsub.f32 %v779, %v782
    %v784 = vmul.f32 %v783, 1.442695
    %v785 = vpow.pop %v784
    %v786 = vsel %vm268, %v785, 0.0
    %787 = vadd.xlane.f32.xlu0 %v786
    %v788 = vpop.xlane.xlu0 %787
    %v789 = vrcp.pop %v788
    %v790 = vmul.f32 %v785, %v789
    %v791 = vpack.c.bf16 %v790, %v790
    %792 = vrot.lane.b32.xlu0 %v729, 64
    %v793 = vpop.permute.xlu0 %792
    %v795 = vsel %vm268, %v791, 0
    %v798 = vsel %vm333, %v793, 0
    %800 = vmatprep.subr.bf16.mxu0 0
    %801 = vmatpush1.bf16.msra.mxu0 %v798
    %802 = vmatprep.subr.bf16.mxu0 0
    %803 = vmatpush1.bf16.msra.mxu0 0
    %804 = vmatprep.subr.bf16.mxu0 0
    %805 = vmatpush1.bf16.msra.mxu0 0
    %806 = vmatprep.subr.bf16.mxu0 0
    %807 = vmatpush1.bf16.msra.mxu0 0
    %808 = vmatprep.subr.bf16.mxu0 0
    %809 = vmatpush1.bf16.msra.mxu0 0
    %810 = vmatprep.subr.bf16.mxu0 0
    %811 = vmatpush1.bf16.msra.mxu0 0
    %812 = vmatprep.subr.bf16.mxu0 0
    %813 = vmatpush1.bf16.msra.mxu0 0
    %814 = vmatprep.subr.bf16.mxu0 0
    %815 = vmatpush1.bf16.msra.mxu0 0
    %816 = vmatprep.subr.bf16.mxu0 0
    %817 = vmatpush1.bf16.msra.mxu0 0
    %818 = vmatprep.subr.bf16.mxu0 0
    %819 = vmatpush1.bf16.msra.mxu0 0
    %820 = vmatprep.subr.bf16.mxu0 0
    %821 = vmatpush1.bf16.msra.mxu0 0
    %822 = vmatprep.subr.bf16.mxu0 0
    %823 = vmatpush1.bf16.msra.mxu0 0
    %824 = vmatprep.subr.bf16.mxu0 0
    %825 = vmatpush1.bf16.msra.mxu0 0
    %826 = vmatprep.subr.bf16.mxu0 0
    %827 = vmatpush1.bf16.msra.mxu0 0
    %828 = vmatprep.subr.bf16.mxu0 0
    %829 = vmatpush1.bf16.msra.mxu0 0
    %830 = vmatprep.subr.bf16.mxu0 0
    %831 = vmatpush1.bf16.msra.mxu0 0
    %832 = vmatprep.mubr.bf16.mxu0 0
    %833 = vmatmul.mubr.bf16.gmra.mrb[0].mxu0 %v795
    %v834 = vpop.f32.mrb[0].mxu0
    %v835 = vadd.f32 0.0, %v834
    %v836 = vpop.f32.mrb[0].mxu0
    %v837 = vpop.f32.mrb[0].mxu0
    %v838 = vpop.f32.mrb[0].mxu0
    %839 = vdwg.mxu0
    %840 = vst.msk [vmem:[#allocation2 + $0x8] sm:$0xff] %vm268, %v835
    %841 = vrot.lane.b32.xlu0 %v729, 120
    %v842 = vpop.permute.xlu0 %841
    %843 = vrot.lane.b32.xlu0 %v729, 88
    %v844 = vpop.permute.xlu0 %843
    %v846 = vsel %vm268, %v842, 0
    %v849 = vsel %vm268, %v844, 0
    %851 = vmatprep.subr.bf16.mxu0 0
    %852 = vmatpush1.bf16.xpose.msra.mxu0 %v849
    %853 = vmatprep.subr.bf16.mxu0 0
    %854 = vmatpush1.bf16.xpose.msra.mxu0 0
    %855 = vmatprep.subr.bf16.mxu0 0
    %856 = vmatpush1.bf16.xpose.msra.mxu0 0
    %857 = vmatprep.subr.bf16.mxu0 0
    %858 = vmatpush1.bf16.xpose.msra.mxu0 0
    %859 = vmatprep.subr.bf16.mxu0 0
    %860 = vmatpush1.bf16.xpose.msra.mxu0 0
    %861 = vmatprep.subr.bf16.mxu0 0
    %862 = vmatpush1.bf16.xpose.msra.mxu0 0
    %863 = vmatprep.subr.bf16.mxu0 0
    %864 = vmatpush1.bf16.xpose.msra.mxu0 0
    %865 = vmatprep.subr.bf16.mxu0 0
    %866 = vmatpush1.bf16.xpose.msra.mxu0 0
    %867 = vmatprep.subr.bf16.mxu0 0
    %868 = vmatpush1.bf16.xpose.msra.mxu0 0
    %869 = vmatprep.subr.bf16.mxu0 0
    %870 = vmatpush1.bf16.xpose.msra.mxu0 0
    %871 = vmatprep.subr.bf16.mxu0 0
    %872 = vmatpush1.bf16.xpose.msra.mxu0 0
    %873 = vmatprep.subr.bf16.mxu0 0
    %874 = vmatpush1.bf16.xpose.msra.mxu0 0
    %875 = vmatprep.subr.bf16.mxu0 0
    %876 = vmatpush1.bf16.xpose.msra.mxu0 0
    %877 = vmatprep.subr.bf16.mxu0 0
    %878 = vmatpush1.bf16.xpose.msra.mxu0 0
    %879 = vmatprep.subr.bf16.mxu0 0
    %880 = vmatpush1.bf16.xpose.msra.mxu0 0
    %881 = vmatprep.subr.bf16.mxu0 0
    %882 = vmatpush1.bf16.xpose.msra.mxu0 0
    %883 = vmatprep.mubr.bf16.mxu0 0
    %884 = vmatmul.mubr.bf16.gmra.mrb[0].mxu0 %v846
    %v885 = vpop.f32.mrb[0].mxu0
    %v886 = vadd.f32 0.0, %v885
    %v887 = vpop.f32.mrb[0].mxu0
    %v888 = vpop.f32.mrb[0].mxu0
    %v889 = vpop.f32.mrb[0].mxu0
    %890 = vdwg.mxu0
    %v891 = vmul.f32 %v886, 0.35355338
    %v892 = vsel %vm268, %v891, -inf
    %893 = vmax.xlane.f32.xlu0 %v892
    %v894 = vpop.xlane.xlu0 %893
    %v895 = vsub.f32 %v891, %v894
    %v896 = vmul.f32 %v895, 1.442695
    %v897 = vpow.pop %v896
    %v898 = vsel %vm268, %v897, 0.0
    %899 = vadd.xlane.f32.xlu0 %v898
    %v900 = vpop.xlane.xlu0 %899
    %v901 = vrcp.pop %v900
    %v902 = vmul.f32 %v897, %v901
    %v903 = vpack.c.bf16 %v902, %v902
    %904 = vrot.lane.b32.xlu0 %v729, 56
    %v905 = vpop.permute.xlu0 %904
    %v907 = vsel %vm268, %v903, 0
    %v910 = vsel %vm333, %v905, 0
    %912 = vmatprep.subr.bf16.mxu0 0
    %913 = vmatpush1.bf16.msra.mxu0 %v910
    %914 = vmatprep.subr.bf16.mxu0 0
    %915 = vmatpush1.bf16.msra.mxu0 0
    %916 = vmatprep.subr.bf16.mxu0 0
    %917 = vmatpush1.bf16.msra.mxu0 0
    %918 = vmatprep.subr.bf16.mxu0 0
    %919 = vmatpush1.bf16.msra.mxu0 0
    %920 = vmatprep.subr.bf16.mxu0 0
    %921 = vmatpush1.bf16.msra.mxu0 0
    %922 = vmatprep.subr.bf16.mxu0 0
    %923 = vmatpush1.bf16.msra.mxu0 0
    %924 = vmatprep.subr.bf16.mxu0 0
    %925 = vmatpush1.bf16.msra.mxu0 0
    %926 = vmatprep.subr.bf16.mxu0 0
    %927 = vmatpush1.bf16.msra.mxu0 0
    %928 = vmatprep.subr.bf16.mxu0 0
    %929 = vmatpush1.bf16.msra.mxu0 0
    %930 = vmatprep.subr.bf16.mxu0 0
    %931 = vmatpush1.bf16.msra.mxu0 0
    %932 = vmatprep.subr.bf16.mxu0 0
    %933 = vmatpush1.bf16.msra.mxu0 0
    %934 = vmatprep.subr.bf16.mxu0 0
    %935 = vmatpush1.bf16.msra.mxu0 0
    %936 = vmatprep.subr.bf16.mxu0 0
    %937 = vmatpush1.bf16.msra.mxu0 0
    %938 = vmatprep.subr.bf16.mxu0 0
    %939 = vmatpush1.bf16.msra.mxu0 0
    %940 = vmatprep.subr.bf16.mxu0 0
    %941 = vmatpush1.bf16.msra.mxu0 0
    %942 = vmatprep.subr.bf16.mxu0 0
    %943 = vmatpush1.bf16.msra.mxu0 0
    %944 = vmatprep.mubr.bf16.mxu0 0
    %945 = vmatmul.mubr.bf16.gmra.mrb[0].mxu0 %v907
    %v946 = vpop.f32.mrb[0].mxu0
    %v947 = vadd.f32 0.0, %v946
    %v948 = vpop.f32.mrb[0].mxu0
    %v949 = vpop.f32.mrb[0].mxu0
    %v950 = vpop.f32.mrb[0].mxu0
    %951 = vdwg.mxu0
    %953 = vrot.lane.b32.xlu0 %v947, 8
    %v954 = vpop.permute.xlu0 %953
    %956 = vst.msk [vmem:[#allocation2 + $0x8] sm:$0xff] %vm493, %v954
    %957 = vrot.lane.b32.xlu0 %v729, 112
    %v958 = vpop.permute.xlu0 %957
    %959 = vrot.lane.b32.xlu0 %v729, 80
    %v960 = vpop.permute.xlu0 %959
    %v962 = vsel %vm268, %v958, 0
    %v965 = vsel %vm268, %v960, 0
    %967 = vmatprep.subr.bf16.mxu0 0
    %968 = vmatpush1.bf16.xpose.msra.mxu0 %v965
    %969 = vmatprep.subr.bf16.mxu0 0
    %970 = vmatpush1.bf16.xpose.msra.mxu0 0
    %971 = vmatprep.subr.bf16.mxu0 0
    %972 = vmatpush1.bf16.xpose.msra.mxu0 0
    %973 = vmatprep.subr.bf16.mxu0 0
    %974 = vmatpush1.bf16.xpose.msra.mxu0 0
    %975 = vmatprep.subr.bf16.mxu0 0
    %976 = vmatpush1.bf16.xpose.msra.mxu0 0
    %977 = vmatprep.subr.bf16.mxu0 0
    %978 = vmatpush1.bf16.xpose.msra.mxu0 0
    %979 = vmatprep.subr.bf16.mxu0 0
    %980 = vmatpush1.bf16.xpose.msra.mxu0 0
    %981 = vmatprep.subr.bf16.mxu0 0
    %982 = vmatpush1.bf16.xpose.msra.mxu0 0
    %983 = vmatprep.subr.bf16.mxu0 0
    %984 = vmatpush1.bf16.xpose.msra.mxu0 0
    %985 = vmatprep.subr.bf16.mxu0 0
    %986 = vmatpush1.bf16.xpose.msra.mxu0 0
    %987 = vmatprep.subr.bf16.mxu0 0
    %988 = vmatpush1.bf16.xpose.msra.mxu0 0
    %989 = vmatprep.subr.bf16.mxu0 0
    %990 = vmatpush1.bf16.xpose.msra.mxu0 0
    %991 = vmatprep.subr.bf16.mxu0 0
    %992 = vmatpush1.bf16.xpose.msra.mxu0 0
    %993 = vmatprep.subr.bf16.mxu0 0
    %994 = vmatpush1.bf16.xpose.msra.mxu0 0
    %995 = vmatprep.subr.bf16.mxu0 0
    %996 = vmatpush1.bf16.xpose.msra.mxu0 0
    %997 = vmatprep.subr.bf16.mxu0 0
    %998 = vmatpush1.bf16.xpose.msra.mxu0 0
    %999 = vmatprep.mubr.bf16.mxu0 0
    %1000 = vmatmul.mubr.bf16.gmra.mrb[0].mxu0 %v962
    %v1001 = vpop.f32.mrb[0].mxu0
    %v1002 = vadd.f32 0.0, %v1001
    %v1003 = vpop.f32.mrb[0].mxu0
    %v1004 = vpop.f32.mrb[0].mxu0
    %v1005 = vpop.f32.mrb[0].mxu0
    %1006 = vdwg.mxu0
    %v1007 = vmul.f32 %v1002, 0.35355338
    %v1008 = vsel %vm268, %v1007, -inf
    %1009 = vmax.xlane.f32.xlu0 %v1008
    %v1010 = vpop.xlane.xlu0 %1009
    %v1011 = vsub.f32 %v1007, %v1010
    %v1012 = vmul.f32 %v1011, 1.442695
    %v1013 = vpow.pop %v1012
    %v1014 = vsel %vm268, %v1013, 0.0
    %1015 = vadd.xlane.f32.xlu0 %v1014
    %v1016 = vpop.xlane.xlu0 %1015
    %v1017 = vrcp.pop %v1016
    %v1018 = vmul.f32 %v1013, %v1017
    %v1019 = vpack.c.bf16 %v1018, %v1018
    %1020 = vrot.lane.b32.xlu0 %v729, 48
    %v1021 = vpop.permute.xlu0 %1020
    %v1023 = vsel %vm268, %v1019, 0
    %v1026 = vsel %vm333, %v1021, 0
    %1028 = vmatprep.subr.bf16.mxu0 0
    %1029 = vmatpush1.bf16.msra.mxu0 %v1026
    %1030 = vmatprep.subr.bf16.mxu0 0
    %1031 = vmatpush1.bf16.msra.mxu0 0
    %1032 = vmatprep.subr.bf16.mxu0 0
    %1033 = vmatpush1.bf16.msra.mxu0 0
    %1034 = vmatprep.subr.bf16.mxu0 0
    %1035 = vmatpush1.bf16.msra.mxu0 0
    %1036 = vmatprep.subr.bf16.mxu0 0
    %1037 = vmatpush1.bf16.msra.mxu0 0
    %1038 = vmatprep.subr.bf16.mxu0 0
    %1039 = vmatpush1.bf16.msra.mxu0 0
    %1040 = vmatprep.subr.bf16.mxu0 0
    %1041 = vmatpush1.bf16.msra.mxu0 0
    %1042 = vmatprep.subr.bf16.mxu0 0
    %1043 = vmatpush1.bf16.msra.mxu0 0
    %1044 = vmatprep.subr.bf16.mxu0 0
    %1045 = vmatpush1.bf16.msra.mxu0 0
    %1046 = vmatprep.subr.bf16.mxu0 0
    %1047 = vmatpush1.bf16.msra.mxu0 0
    %1048 = vmatprep.subr.bf16.mxu0 0
    %1049 = vmatpush1.bf16.msra.mxu0 0
    %1050 = vmatprep.subr.bf16.mxu0 0
    %1051 = vmatpush1.bf16.msra.mxu0 0
    %1052 = vmatprep.subr.bf16.mxu0 0
    %1053 = vmatpush1.bf16.msra.mxu0 0
    %1054 = vmatprep.subr.bf16.mxu0 0
    %1055 = vmatpush1.bf16.msra.mxu0 0
    %1056 = vmatprep.subr.bf16.mxu0 0
    %1057 = vmatpush1.bf16.msra.mxu0 0
    %1058 = vmatprep.subr.bf16.mxu0 0
    %1059 = vmatpush1.bf16.msra.mxu0 0
    %1060 = vmatprep.mubr.bf16.mxu0 0
    %1061 = vmatmul.mubr.bf16.gmra.mrb[0].mxu0 %v1023
    %v1062 = vpop.f32.mrb[0].mxu0
    %v1063 = vadd.f32 0.0, %v1062
    %v1064 = vpop.f32.mrb[0].mxu0
    %v1065 = vpop.f32.mrb[0].mxu0
    %v1066 = vpop.f32.mrb[0].mxu0
    %1067 = vdwg.mxu0
    %1069 = vrot.lane.b32.xlu0 %v1063, 16
    %v1070 = vpop.permute.xlu0 %1069
    %1072 = vst.msk [vmem:[#allocation2 + $0x8] sm:$0xff] %vm610, %v1070
    %1073 = vrot.lane.b32.xlu0 %v729, 104
    %v1074 = vpop.permute.xlu0 %1073
    %1075 = vrot.lane.b32.xlu0 %v729, 72
    %v1076 = vpop.permute.xlu0 %1075
    %v1078 = vsel %vm268, %v1074, 0
    %v1081 = vsel %vm268, %v1076, 0
    %1083 = vmatprep.subr.bf16.mxu0 0
    %1084 = vmatpush1.bf16.xpose.msra.mxu0 %v1081
    %1085 = vmatprep.subr.bf16.mxu0 0
    %1086 = vmatpush1.bf16.xpose.msra.mxu0 0
    %1087 = vmatprep.subr.bf16.mxu0 0
    %1088 = vmatpush1.bf16.xpose.msra.mxu0 0
    %1089 = vmatprep.subr.bf16.mxu0 0
    %1090 = vmatpush1.bf16.xpose.msra.mxu0 0
    %1091 = vmatprep.subr.bf16.mxu0 0
    %1092 = vmatpush1.bf16.xpose.msra.mxu0 0
    %1093 = vmatprep.subr.bf16.mxu0 0
    %1094 = vmatpush1.bf16.xpose.msra.mxu0 0
    %1095 = vmatprep.subr.bf16.mxu0 0
    %1096 = vmatpush1.bf16.xpose.msra.mxu0 0
    %1097 = vmatprep.subr.bf16.mxu0 0
    %1098 = vmatpush1.bf16.xpose.msra.mxu0 0
    %1099 = vmatprep.subr.bf16.mxu0 0
    %1100 = vmatpush1.bf16.xpose.msra.mxu0 0
    %1101 = vmatprep.subr.bf16.mxu0 0
    %1102 = vmatpush1.bf16.xpose.msra.mxu0 0
    %1103 = vmatprep.subr.bf16.mxu0 0
    %1104 = vmatpush1.bf16.xpose.msra.mxu0 0
    %1105 = vmatprep.subr.bf16.mxu0 0
    %1106 = vmatpush1.bf16.xpose.msra.mxu0 0
    %1107 = vmatprep.subr.bf16.mxu0 0
    %1108 = vmatpush1.bf16.xpose.msra.mxu0 0
    %1109 = vmatprep.subr.bf16.mxu0 0
    %1110 = vmatpush1.bf16.xpose.msra.mxu0 0
    %1111 = vmatprep.subr.bf16.mxu0 0
    %1112 = vmatpush1.bf16.xpose.msra.mxu0 0
    %1113 = vmatprep.subr.bf16.mxu0 0
    %1114 = vmatpush1.bf16.xpose.msra.mxu0 0
    %1115 = vmatprep.mubr.bf16.mxu0 0
    %1116 = vmatmul.mubr.bf16.gmra.mrb[0].mxu0 %v1078
    %v1117 = vpop.f32.mrb[0].mxu0
    %v1118 = vadd.f32 0.0, %v1117
    %v1119 = vpop.f32.mrb[0].mxu0
    %v1120 = vpop.f32.mrb[0].mxu0
    %v1121 = vpop.f32.mrb[0].mxu0
    %1122 = vdwg.mxu0
    %v1123 = vmul.f32 %v1118, 0.35355338
    %v1124 = vsel %vm268, %v1123, -inf
    %1125 = vmax.xlane.f32.xlu0 %v1124
    %v1126 = vpop.xlane.xlu0 %1125
    %v1127 = vsub.f32 %v1123, %v1126
    %v1128 = vmul.f32 %v1127, 1.442695
    %v1129 = vpow.pop %v1128
    %v1130 = vsel %vm268, %v1129, 0.0
    %1131 = vadd.xlane.f32.xlu0 %v1130
    %v1132 = vpop.xlane.xlu0 %1131
    %v1133 = vrcp.pop %v1132
    %v1134 = vmul.f32 %v1129, %v1133
    %v1135 = vpack.c.bf16 %v1134, %v1134
    %1136 = vrot.lane.b32.xlu0 %v729, 40
    %v1137 = vpop.permute.xlu0 %1136
    %v1139 = vsel %vm268, %v1135, 0
    %v1142 = vsel %vm333, %v1137, 0
    %1144 = vmatprep.subr.bf16.mxu0 0
    %1145 = vmatpush1.bf16.msra.mxu0 %v1142
    %1146 = vmatprep.subr.bf16.mxu0 0
    %1147 = vmatpush1.bf16.msra.mxu0 0
    %1148 = vmatprep.subr.bf16.mxu0 0
    %1149 = vmatpush1.bf16.msra.mxu0 0
    %1150 = vmatprep.subr.bf16.mxu0 0
    %1151 = vmatpush1.bf16.msra.mxu0 0
    %1152 = vmatprep.subr.bf16.mxu0 0
    %1153 = vmatpush1.bf16.msra.mxu0 0
    %1154 = vmatprep.subr.bf16.mxu0 0
    %1155 = vmatpush1.bf16.msra.mxu0 0
    %1156 = vmatprep.subr.bf16.mxu0 0
    %1157 = vmatpush1.bf16.msra.mxu0 0
    %1158 = vmatprep.subr.bf16.mxu0 0
    %1159 = vmatpush1.bf16.msra.mxu0 0
    %1160 = vmatprep.subr.bf16.mxu0 0
    %1161 = vmatpush1.bf16.msra.mxu0 0
    %1162 = vmatprep.subr.bf16.mxu0 0
    %1163 = vmatpush1.bf16.msra.mxu0 0
    %1164 = vmatprep.subr.bf16.mxu0 0
    %1165 = vmatpush1.bf16.msra.mxu0 0
    %1166 = vmatprep.subr.bf16.mxu0 0
    %1167 = vmatpush1.bf16.msra.mxu0 0
    %1168 = vmatprep.subr.bf16.mxu0 0
    %1169 = vmatpush1.bf16.msra.mxu0 0
    %1170 = vmatprep.subr.bf16.mxu0 0
    %1171 = vmatpush1.bf16.msra.mxu0 0
    %1172 = vmatprep.subr.bf16.mxu0 0
    %1173 = vmatpush1.bf16.msra.mxu0 0
    %1174 = vmatprep.subr.bf16.mxu0 0
    %1175 = vmatpush1.bf16.msra.mxu0 0
    %1176 = vmatprep.mubr.bf16.mxu0 0
    %1177 = vmatmul.mubr.bf16.gmra.mrb[0].mxu0 %v1139
    %v1178 = vpop.f32.mrb[0].mxu0
    %v1179 = vadd.f32 0.0, %v1178
    %v1180 = vpop.f32.mrb[0].mxu0
    %v1181 = vpop.f32.mrb[0].mxu0
    %v1182 = vpop.f32.mrb[0].mxu0
    %1183 = vdwg.mxu0
    %1185 = vrot.lane.b32.xlu0 %v1179, 24
    %v1186 = vpop.permute.xlu0 %1185
    %1188 = vst.msk [vmem:[#allocation2 + $0x8] sm:$0xff] %vm727, %v1186
    %v1189 = vld [vmem:[#allocation2] sm:$0xff]
    %v1190 = vld [vmem:[#allocation2 + $0x8] sm:$0xff]
    %v1191 = vpack.c.bf16 %v1190, %v1189
    %v1192 = vld [vmem:[%s5] sm:$0xf]
    %v1193 = vld [vmem:[%s5 + $0x4] sm:$0xf]
    %v1194 = vld [vmem:[%s5 + $0x8] sm:$0xf]
    %v1195 = vld [vmem:[%s5 + $0xc] sm:$0xf]
    %v1197 = vlaneseq
    %v1198 = vshrl.u32 %v1197, 7
    %v1199 = vsub.s32 0, %v1198
    %v1200 = vrot.slane %v122, %v1199
    %v1206 = vunpack.c.l.b16 %v1192
    %v1207 = vunpack.c.l.b16 %v1193
    %v1208 = vunpack.c.l.b16 %v1194
    %v1209 = vunpack.c.l.b16 %v1195
    %v1210 = vpack.c.b16 %v1207, %v1206
    %v1211 = vpack.c.b16 %v1209, %v1208
    %v1215 = vsel %vm219, %v1191, 0
    %1217 = vmatprep.subr.bf16.mxu0 0
    %1218 = vmatpush1.bf16.msra.mxu0 %v1210
    %1219 = vmatprep.subr.bf16.mxu0 0
    %1220 = vmatpush1.bf16.msra.mxu0 %v1211
    %1221 = vmatprep.subr.bf16.mxu0 0
    %1222 = vmatpush1.bf16.msra.mxu0 0
    %1223 = vmatprep.subr.bf16.mxu0 0
    %1224 = vmatpush1.bf16.msra.mxu0 0
    %1225 = vmatprep.subr.bf16.mxu0 0
    %1226 = vmatpush1.bf16.msra.mxu0 0
    %1227 = vmatprep.subr.bf16.mxu0 0
    %1228 = vmatpush1.bf16.msra.mxu0 0
    %1229 = vmatprep.subr.bf16.mxu0 0
    %1230 = vmatpush1.bf16.msra.mxu0 0
    %1231 = vmatprep.subr.bf16.mxu0 0
    %1232 = vmatpush1.bf16.msra.mxu0 0
    %1233 = vmatprep.subr.bf16.mxu0 0
    %1234 = vmatpush1.bf16.msra.mxu0 0
    %1235 = vmatprep.subr.bf16.mxu0 0
    %1236 = vmatpush1.bf16.msra.mxu0 0
    %1237 = vmatprep.subr.bf16.mxu0 0
    %1238 = vmatpush1.bf16.msra.mxu0 0
    %1239 = vmatprep.subr.bf16.mxu0 0
    %1240 = vmatpush1.bf16.msra.mxu0 0
    %1241 = vmatprep.subr.bf16.mxu0 0
    %1242 = vmatpush1.bf16.msra.mxu0 0
    %1243 = vmatprep.subr.bf16.mxu0 0
    %1244 = vmatpush1.bf16.msra.mxu0 0
    %1245 = vmatprep.subr.bf16.mxu0 0
    %1246 = vmatpush1.bf16.msra.mxu0 0
    %1247 = vmatprep.subr.bf16.mxu0 0
    %1248 = vmatpush1.bf16.msra.mxu0 0
    %1249 = vmatprep.mubr.bf16.mxu0 0
    %1250 = vmatmul.mubr.bf16.gmra.mrb[0].mxu0 %v1215
    %v1251 = vpop.f32.mrb[0].mxu0
    %v1252 = vadd.f32 %v1200, %v1251
    %v1253 = vpop.f32.mrb[0].mxu0
    %v1254 = vpop.f32.mrb[0].mxu0
    %v1255 = vadd.f32 %v1200, %v1254
    %v1256 = vpop.f32.mrb[0].mxu0
    %1257 = vdwg.mxu0
    %v1258 = vadd.f32 %v190, %v1252
    %v1259 = vadd.f32 %v193, %v1255
    %v1260 = vsel %vm219, %v1258, 0.0
    %1261 = vadd.xlane.f32.xlu0 %v1260
    %v1262 = vpop.xlane.xlu0 %1261
    %v1263 = vsel %vm219, %v1259, 0.0
    %1264 = vadd.xlane.f32.xlu0 %v1263
    %v1265 = vpop.xlane.xlu0 %1264
    %v1266 = vrcp.pop 32.0
    %v1267 = vmul.f32 %v1262, %v1266
    %v1268 = vmul.f32 %v1265, %v1266
    %v1269 = vsub.f32 %v1258, %v1267
    %v1270 = vsub.f32 %v1259, %v1268
    %v1271 = vmul.f32 %v1269, %v1269
    %v1272 = vmul.f32 %v1270, %v1270
    %v1273 = vsel %vm219, %v1271, 0.0
    %1274 = vadd.xlane.f32.xlu0 %v1273
    %v1275 = vpop.xlane.xlu0 %1274
    %v1276 = vsel %vm219, %v1272, 0.0
    %1277 = vadd.xlane.f32.xlu0 %v1276
    %v1278 = vpop.xlane.xlu0 %1277
    %v1279 = vmul.f32 %v1275, %v1266
    %v1280 = vmul.f32 %v1278, %v1266
    %v1281 = vadd.f32 %v1279, 1e-05
    %v1282 = vadd.f32 %v1280, 1e-05
    %v1283 = vrsqrt.pop %v1281
    %v1284 = vrsqrt.pop %v1282
    %v1285 = vmul.f32 %v1269, %v1283
    %v1286 = vmul.f32 %v1270, %v1284
    %v1288 = vlaneseq
    %v1289 = vshrl.u32 %v1288, 7
    %v1290 = vsub.s32 0, %v1289
    %v1291 = vrot.slane %v123, %v1290
    %v1293 = vmul.f32 %v1285, %v1291
    %v1294 = vmul.f32 %v1286, %v1291
    %v1296 = vlaneseq
    %v1297 = vshrl.u32 %v1296, 7
    %v1298 = vsub.s32 0, %v1297
    %v1299 = vrot.slane %v124, %v1298
    %v1301 = vadd.f32 %v1293, %v1299
    %v1302 = vadd.f32 %v1294, %v1299
    %v1303 = vpack.c.bf16 %v1302, %v1301
    %v1304 = vld [vmem:[%s9] sm:$0xf]
    %v1305 = vld [vmem:[%s9 + $0x4] sm:$0xf]
    %v1306 = vld [vmem:[%s9 + $0x8] sm:$0xf]
    %v1307 = vld [vmem:[%s9 + $0xc] sm:$0xf]
    %v1309 = vlaneseq
    %v1310 = vshrl.u32 %v1309, 7
    %v1311 = vsub.s32 0, %v1310
    %v1312 = vrot.slane %v125, %v1311
    %v1318 = vunpack.c.l.b16 %v1304
    %v1319 = vunpack.c.l.b16 %v1305
    %v1320 = vunpack.c.l.b16 %v1306
    %v1321 = vunpack.c.l.b16 %v1307
    %v1322 = vpack.c.b16 %v1319, %v1318
    %v1323 = vpack.c.b16 %v1321, %v1320
    %v1327 = vsel %vm219, %v1303, 0
    %1329 = vmatprep.subr.bf16.mxu0 0
    %1330 = vmatpush1.bf16.msra.mxu0 %v1322
    %1331 = vmatprep.subr.bf16.mxu0 0
    %1332 = vmatpush1.bf16.msra.mxu0 %v1323
    %1333 = vmatprep.subr.bf16.mxu0 0
    %1334 = vmatpush1.bf16.msra.mxu0 0
    %1335 = vmatprep.subr.bf16.mxu0 0
    %1336 = vmatpush1.bf16.msra.mxu0 0
    %1337 = vmatprep.subr.bf16.mxu0 0
    %1338 = vmatpush1.bf16.msra.mxu0 0
    %1339 = vmatprep.subr.bf16.mxu0 0
    %1340 = vmatpush1.bf16.msra.mxu0 0
    %1341 = vmatprep.subr.bf16.mxu0 0
    %1342 = vmatpush1.bf16.msra.mxu0 0
    %1343 = vmatprep.subr.bf16.mxu0 0
    %1344 = vmatpush1.bf16.msra.mxu0 0
    %1345 = vmatprep.subr.bf16.mxu0 0
    %1346 = vmatpush1.bf16.msra.mxu0 0
    %1347 = vmatprep.subr.bf16.mxu0 0
    %1348 = vmatpush1.bf16.msra.mxu0 0
    %1349 = vmatprep.subr.bf16.mxu0 0
    %1350 = vmatpush1.bf16.msra.mxu0 0
    %1351 = vmatprep.subr.bf16.mxu0 0
    %1352 = vmatpush1.bf16.msra.mxu0 0
    %1353 = vmatprep.subr.bf16.mxu0 0
    %1354 = vmatpush1.bf16.msra.mxu0 0
    %1355 = vmatprep.subr.bf16.mxu0 0
    %1356 = vmatpush1.bf16.msra.mxu0 0
    %1357 = vmatprep.subr.bf16.mxu0 0
    %1358 = vmatpush1.bf16.msra.mxu0 0
    %1359 = vmatprep.subr.bf16.mxu0 0
    %1360 = vmatpush1.bf16.msra.mxu0 0
    %1361 = vmatprep.mubr.bf16.mxu0 0
    %1362 = vmatmul.mubr.bf16.gmra.mrb[0].mxu0 %v1327
    %v1363 = vpop.f32.mrb[0].mxu0
    %v1364 = vadd.f32 %v1312, %v1363
    %v1365 = vpop.f32.mrb[0].mxu0
    %v1366 = vpop.f32.mrb[0].mxu0
    %v1367 = vadd.f32 %v1312, %v1366
    %v1368 = vpop.f32.mrb[0].mxu0
    %1369 = vdwg.mxu0
    %v1370 = vmax.f32 %v1364, 0.0
    %v1371 = vmax.f32 %v1367, 0.0
    %v1372 = vpack.c.bf16 %v1371, %v1370
    %v1373 = vld [vmem:[%s11] sm:$0xf]
    %v1374 = vld [vmem:[%s11 + $0x4] sm:$0xf]
    %v1375 = vld [vmem:[%s11 + $0x8] sm:$0xf]
    %v1376 = vld [vmem:[%s11 + $0xc] sm:$0xf]
    %v1377 = vld [vmem:[%s11 + $0x10] sm:$0xf]
    %v1378 = vld [vmem:[%s11 + $0x14] sm:$0xf]
    %v1379 = vld [vmem:[%s11 + $0x18] sm:$0xf]
    %v1380 = vld [vmem:[%s11 + $0x1c] sm:$0xf]
    %v1382 = vlaneseq
    %v1383 = vshrl.u32 %v1382, 7
    %v1384 = vsub.s32 0, %v1383
    %v1385 = vrot.slane %v126, %v1384
    %v1395 = vunpack.c.l.b16 %v1373
    %v1396 = vunpack.c.l.b16 %v1374
    %v1397 = vunpack.c.l.b16 %v1375
    %v1398 = vunpack.c.l.b16 %v1376
    %v1399 = vunpack.c.l.b16 %v1377
    %v1400 = vunpack.c.l.b16 %v1378
    %v1401 = vunpack.c.l.b16 %v1379
    %v1402 = vunpack.c.l.b16 %v1380
    %v1403 = vpack.c.b16 %v1396, %v1395
    %v1404 = vpack.c.b16 %v1398, %v1397
    %v1405 = vpack.c.b16 %v1400, %v1399
    %v1406 = vpack.c.b16 %v1402, %v1401
    %vm1411 = vcmask 523264
    %v1413 = vsel %vm1411, %v1372, 0
    %1415 = vmatprep.subr.bf16.mxu0 0
    %1416 = vmatpush1.bf16.msra.mxu0 %v1403
    %1417 = vmatprep.subr.bf16.mxu0 0
    %1418 = vmatpush1.bf16.msra.mxu0 %v1404
    %1419 = vmatprep.subr.bf16.mxu0 0
    %1420 = vmatpush1.bf16.msra.mxu0 %v1405
    %1421 = vmatprep.subr.bf16.mxu0 0
    %1422 = vmatpush1.bf16.msra.mxu0 %v1406
    %1423 = vmatprep.subr.bf16.mxu0 0
    %1424 = vmatpush1.bf16.msra.mxu0 0
    %1425 = vmatprep.subr.bf16.mxu0 0
    %1426 = vmatpush1.bf16.msra.mxu0 0
    %1427 = vmatprep.subr.bf16.mxu0 0
    %1428 = vmatpush1.bf16.msra.mxu0 0
    %1429 = vmatprep.subr.bf16.mxu0 0
    %1430 = vmatpush1.bf16.msra.mxu0 0
    %1431 = vmatprep.subr.bf16.mxu0 0
    %1432 = vmatpush1.bf16.msra.mxu0 0
    %1433 = vmatprep.subr.bf16.mxu0 0
    %1434 = vmatpush1.bf16.msra.mxu0 0
    %1435 = vmatprep.subr.bf16.mxu0 0
    %1436 = vmatpush1.bf16.msra.mxu0 0
    %1437 = vmatprep.subr.bf16.mxu0 0
    %1438 = vmatpush1.bf16.msra.mxu0 0
    %1439 = vmatprep.subr.bf16.mxu0 0
    %1440 = vmatpush1.bf16.msra.mxu0 0
    %1441 = vmatprep.subr.bf16.mxu0 0
    %1442 = vmatpush1.bf16.msra.mxu0 0
    %1443 = vmatprep.subr.bf16.mxu0 0
    %1444 = vmatpush1.bf16.msra.mxu0 0
    %1445 = vmatprep.subr.bf16.mxu0 0
    %1446 = vmatpush1.bf16.msra.mxu0 0
    %1447 = vmatprep.mubr.bf16.mxu0 0
    %1448 = vmatmul.mubr.bf16.gmra.mrb[0].mxu0 %v1413
    %v1449 = vpop.f32.mrb[0].mxu0
    %v1450 = vadd.f32 %v1385, %v1449
    %v1451 = vpop.f32.mrb[0].mxu0
    %v1452 = vpop.f32.mrb[0].mxu0
    %v1453 = vadd.f32 %v1385, %v1452
    %v1454 = vpop.f32.mrb[0].mxu0
    %1455 = vdwg.mxu0
    %v1456 = vadd.f32 %v1301, %v1450
    %v1457 = vadd.f32 %v1302, %v1453
    %v1458 = vsel %vm219, %v1456, 0.0
    %1459 = vadd.xlane.f32.xlu0 %v1458
    %v1460 = vpop.xlane.xlu0 %1459
    %v1461 = vsel %vm219, %v1457, 0.0
    %1462 = vadd.xlane.f32.xlu0 %v1461
    %v1463 = vpop.xlane.xlu0 %1462
    %v1464 = vmul.f32 %v1460, %v1266
    %v1465 = vmul.f32 %v1463, %v1266
    %v1466 = vsub.f32 %v1456, %v1464
    %v1467 = vsub.f32 %v1457, %v1465
    %v1468 = vmul.f32 %v1466, %v1466
    %v1469 = vmul.f32 %v1467, %v1467
    %v1470 = vsel %vm219, %v1468, 0.0
    %1471 = vadd.xlane.f32.xlu0 %v1470
    %v1472 = vpop.xlane.xlu0 %1471
    %v1473 = vsel %vm219, %v1469, 0.0
    %1474 = vadd.xlane.f32.xlu0 %v1473
    %v1475 = vpop.xlane.xlu0 %1474
    %v1476 = vmul.f32 %v1472, %v1266
    %v1477 = vmul.f32 %v1475, %v1266
    %v1478 = vadd.f32 %v1476, 1e-05
    %v1479 = vadd.f32 %v1477, 1e-05
    %v1480 = vrsqrt.pop %v1478
    %v1481 = vrsqrt.pop %v1479
    %v1482 = vmul.f32 %v1466, %v1480
    %v1483 = vmul.f32 %v1467, %v1481
    %v1485 = vlaneseq
    %v1486 = vshrl.u32 %v1485, 7
    %v1487 = vsub.s32 0, %v1486
    %v1488 = vrot.slane %v127, %v1487
    %v1490 = vmul.f32 %v1482, %v1488
    %v1491 = vmul.f32 %v1483, %v1488
    %v1493 = vlaneseq
    %v1494 = vshrl.u32 %v1493, 7
    %v1495 = vsub.s32 0, %v1494
    %v1496 = vrot.slane %v128, %v1495
    %v1498 = vadd.f32 %v1490, %v1496
    %v1499 = vadd.f32 %v1491, %v1496
    %v1500 = vpack.c.bf16 %v1499, %v1498
    %v1501 = vld [vmem:[%s15] sm:$0xf]
    %v1502 = vld [vmem:[%s15 + $0x4] sm:$0xf]
    %v1503 = vld [vmem:[%s15 + $0x8] sm:$0xf]
    %v1504 = vld [vmem:[%s15 + $0xc] sm:$0xf]
    %v1506 = vlaneseq
    %v1507 = vshrl.u32 %v1506, 7
    %v1508 = vsub.s32 0, %v1507
    %v1509 = vrot.slane %v129, %v1508
    %v1515 = vunpack.c.l.b16 %v1501
    %v1516 = vunpack.c.l.b16 %v1502
    %v1517 = vunpack.c.l.b16 %v1503
    %v1518 = vunpack.c.l.b16 %v1504
    %v1519 = vpack.c.b16 %v1516, %v1515
    %v1520 = vpack.c.b16 %v1518, %v1517
    %v1524 = vsel %vm219, %v1500, 0
    %1526 = vmatprep.subr.bf16.mxu0 0
    %1527 = vmatpush1.bf16.msra.mxu0 %v1519
    %1528 = vmatprep.subr.bf16.mxu0 0
    %1529 = vmatpush1.bf16.msra.mxu0 %v1520
    %1530 = vmatprep.subr.bf16.mxu0 0
    %1531 = vmatpush1.bf16.msra.mxu0 0
    %1532 = vmatprep.subr.bf16.mxu0 0
    %1533 = vmatpush1.bf16.msra.mxu0 0
    %1534 = vmatprep.subr.bf16.mxu0 0
    %1535 = vmatpush1.bf16.msra.mxu0 0
    %1536 = vmatprep.subr.bf16.mxu0 0
    %1537 = vmatpush1.bf16.msra.mxu0 0
    %1538 = vmatprep.subr.bf16.mxu0 0
    %1539 = vmatpush1.bf16.msra.mxu0 0
    %1540 = vmatprep.subr.bf16.mxu0 0
    %1541 = vmatpush1.bf16.msra.mxu0 0
    %1542 = vmatprep.subr.bf16.mxu0 0
    %1543 = vmatpush1.bf16.msra.mxu0 0
    %1544 = vmatprep.subr.bf16.mxu0 0
    %1545 = vmatpush1.bf16.msra.mxu0 0
    %1546 = vmatprep.subr.bf16.mxu0 0
    %1547 = vmatpush1.bf16.msra.mxu0 0
    %1548 = vmatprep.subr.bf16.mxu0 0
    %1549 = vmatpush1.bf16.msra.mxu0 0
    %1550 = vmatprep.subr.bf16.mxu0 0
    %1551 = vmatpush1.bf16.msra.mxu0 0
    %1552 = vmatprep.subr.bf16.mxu0 0
    %1553 = vmatpush1.bf16.msra.mxu0 0
    %1554 = vmatprep.subr.bf16.mxu0 0
    %1555 = vmatpush1.bf16.msra.mxu0 0
    %1556 = vmatprep.subr.bf16.mxu0 0
    %1557 = vmatpush1.bf16.msra.mxu0 0
    %1558 = vmatprep.mubr.bf16.mxu0 0
    %1559 = vmatmul.mubr.bf16.gmra.mrb[0].mxu0 %v1524
    %v1560 = vpop.f32.mrb[0].mxu0
    %v1561 = vadd.f32 %v1509, %v1560
    %v1562 = vpop.f32.mrb[0].mxu0
    %v1563 = vpop.f32.mrb[0].mxu0
    %v1564 = vadd.f32 %v1509, %v1563
    %v1565 = vpop.f32.mrb[0].mxu0
    %1566 = vdwg.mxu0
    %v1567 = vpack.c.bf16 %v1564, %v1561
    %v1569 = vunpack.c.l.b16 %v1567
    %v1570 = vunpack.c.h.b16 %v1567
    %v1571 = vpack.c.b16 %v1569, %v1569
    %v1572 = vpack.c.b16 %v1570, %v1570
    %1575 = vst [vmem:[#allocation12] sm:$0xf] %v1571
    %1576 = vst [vmem:[#allocation12 + $0x4] sm:$0xf] %v1572
    // Predicated region
    $region90: #{tpu_custom_call.1} parent=1 // pred_check
      _
    $region91: #{tpu_custom_call.1} parent=1 // pred_check_branch
      %1578 = sbr.rel (0) target = $region93
    $region92: #{tpu_custom_call.1} parent=1 // pred_region
      %s1580 = ssub.s32 128, 128
      %1581 = vsyncadd [#allocation5], %s1580
      %s1582 = sshll.u32 [#allocation12], 4
      %s1583 = int_to_ptr.vmem [resolvable:$true] %s1582
      %1588 = dma.vmem_to_hbm [thread:$0]  %s1583, 128, %s17, [#allocation5], 64, 64, 4
    $region93: #{tpu_custom_call.1} parent=1 // pred_fallthru
      _
    // Predicated region
    $region94: #{tpu_custom_call.1} parent=1 // pred_check
      _
    $region95: #{tpu_custom_call.1} parent=1 // pred_check_branch
      %1590 = sbr.rel (0) target = $region97
    $region96: #{tpu_custom_call.1} parent=1 // pred_region
      %1591 = dma.done [#allocation5], 128
    $region97: #{tpu_custom_call.1} parent=1 // pred_fallthru
      _
    %1592 = vsyncpa [#allocation4], 1
    %1593 = vsyncpa [#allocation7], 1
    %1594 = vsyncpa [#allocation10], 1
    %1595 = vsyncpa [#allocation5], 1

</llo_original>
